<compile_context>
chip_gen: v7x
topology: tpu7x:2x2x1
jax: 0.10.0
libtpu: 0.0.40
codegen_flags: <defaults>
</compile_context>

<pallas_src>
import jax
import jax.numpy as jnp
import numpy as np
from jax import lax
from jax.experimental import pallas as pl
from jax.experimental.pallas import tpu as pltpu


# ----------------------------------------------------------------------------
# Pallas kernels (row-tiled).  TI / single_row_block are trace-time constants.
# ----------------------------------------------------------------------------
def _make_density_mulliken_kernel(ti, single_row_block):
    """rho row-tile + Mulliken q row-tile.  C and occ are resident across i."""

    def kernel(occ_ref, eigvec_ref, over_ref, rho_ref, q_ref):
        c = eigvec_ref[...]                              # (TB, Np, Np) resident
        occ = occ_ref[...]                               # (TB, Np)
        if single_row_block:
            c_rows = c                                   # TI == Np
        else:
            row0 = pl.multiple_of(pl.program_id(1) * ti, ti)
            c_rows = eigvec_ref[:, pl.ds(row0, ti), :]   # (TB, TI, Np)
        c_occ = c_rows * occ[:, None, :]                 # scale eigvec COLUMNS
        # rho[b,i,k] = sum_j C[b,i,j]*occ[b,j]*C[b,k,j]  (rows of C diag(occ) C^T)
        rho = lax.dot_general(
            c_occ, c,
            dimension_numbers=(((2,), (2,)), ((0,), (0,))),
            preferred_element_type=jnp.float32)          # (TB, TI, Np)
        rho_ref[...] = rho.astype(rho_ref.dtype)
        # q_orb[b,i] = sum_k S[b,i,k]*rho[b,i,k]   (lane reduce on the XLU)
        q_ref[...] = jnp.sum(over_ref[...] * rho, axis=-1)

    return kernel


def _make_mulliken_only_kernel(ti, single_row_block):
    """Charges-only path: q = rowsum(occ * C * (S @ C)); never forms rho."""

    def kernel(occ_ref, eigvec_ref, over_ref, q_ref):
        c = eigvec_ref[...]                              # (TB, Np, Np) resident
        occ = occ_ref[...]                               # (TB, Np)
        if single_row_block:
            c_rows = c
        else:
            row0 = pl.multiple_of(pl.program_id(1) * ti, ti)
            c_rows = eigvec_ref[:, pl.ds(row0, ti), :]   # (TB, TI, Np)
        # T = S_rows @ C : natural MXU orientation (S last dim x C 2nd-to-last)
        t = lax.dot_general(
            over_ref[...], c,
            dimension_numbers=(((2,), (1,)), ((0,), (0,))),
            preferred_element_type=jnp.float32)          # (TB, TI, Np)
        q_ref[...] = jnp.sum(c_rows * occ[:, None, :] * t, axis=-1)

    return kernel


# ----------------------------------------------------------------------------
# Generation-aware tile / VMEM budgeting.
# ----------------------------------------------------------------------------
def _vmem_capacity_bytes():
    try:
        return int(pltpu.get_tpu_info().vmem_capacity_bytes)
    except Exception:
        return 64 << 20          # assume the smallest part (v7x) if query fails


def _bytes_per_step(tb, ti, np_, compute_rho):
    f = 4                                      # f32
    resident_c = 2 * tb * np_ * np_ * f        # full eigvec block (double-buffered)
    occ_b = 2 * tb * np_ * f
    s_rows = 2 * tb * ti * np_ * f             # overlap row tile
    rho_out = (2 * tb * ti * np_ * f) if compute_rho else 0
    q_out = 2 * tb * ti * f
    temps = 3 * tb * ti * np_ * f              # c_rows slice + c_occ/T + f32 result
    return resident_c + occ_b + s_rows + rho_out + q_out + temps


def _choose_tiles(batch, np_, budget, compute_rho, row_tiling_ok):
    """Largest (TB, TI) fitting the budget; TB divides B (no batch padding)."""
    tb_cands = [d for d in range(min(batch, 16), 0, -1) if batch % d == 0]
    if row_tiling_ok:
        ti_cands = []
        for t in (np_, 1024, 512, 256, 128):
            if t <= np_ and np_ % t == 0 and t not in ti_cands:
                ti_cands.append(t)
    else:
        ti_cands = [np_]
    best = None
    for tb in tb_cands:
        for ti in ti_cands:
            if _bytes_per_step(tb, ti, np_, compute_rho) <= budget:
                key = (tb * ti, ti)
                if best is None or key > best[0]:
                    best = (key, tb, ti)
    if best is None:
        # TODO(synk): very large N (resident C alone exceeds the budget) needs
        # contraction-axis tiling of C from HBM; fall back to the smallest tile.
        return 1, ti_cands[-1]
    return best[1], best[2]


# ----------------------------------------------------------------------------
# Wrapper: rho (optional) + Mulliken orbital populations.
# ----------------------------------------------------------------------------
def density_and_mulliken(occ, eigvec, overlap, *, compute_rho=True,
                         block_b=None, block_rows=None):
    """rho[b] = C diag(occ) C^T (optional); q_orb[b,i] = sum_j (S*rho)[b,i,j].

    Row-tiled Pallas kernel: grid = (B/TB, Np/TI).  eigvec + occ stay resident
    in VMEM across the row axis; overlap / rho / q move as (TB, TI, Np) tiles.
    """
    B, N, _ = eigvec.shape
    occ = occ.astype(jnp.float32)
    eigvec = eigvec.astype(jnp.float32)
    overlap = overlap.astype(jnp.float32)

    # Lane-dense padding only when it costs <= ~33% extra area; otherwise use
    # full-dim (masked) blocks -- at N=32, padding to 128 would be a 16x traffic
    # blow-up for a memory-bound kernel.
    n_aligned = ((N + 127) // 128) * 128
    Np = n_aligned if (N == n_aligned or N >= 0.75 * n_aligned) else N
    if Np != N:
        # Zero padding: padded occ columns / eigvec rows are zero, so padded
        # rho and q entries are exactly zero and are sliced off below.
        occ = jnp.pad(occ, ((0, 0), (0, Np - N)))
        eigvec = jnp.pad(eigvec, ((0, 0), (0, Np - N), (0, Np - N)))
        overlap = jnp.pad(overlap, ((0, 0), (0, Np - N), (0, Np - N)))

    cap = _vmem_capacity_bytes()
    budget = max(8 << 20, int(cap * 0.35))     # ~22 MiB on v7x, ~45 MiB on v5e/v6e
    row_tiling_ok = (Np % 128 == 0)
    TB, TI = _choose_tiles(B, Np, budget, compute_rho, row_tiling_ok)
    if block_b is not None:
        TB = int(block_b)
    if block_rows is not None:
        TI = int(block_rows)
    assert B % TB == 0 and Np % TI == 0, (B, TB, Np, TI)

    grid = (B // TB, Np // TI)
    occ_spec = pl.BlockSpec((TB, Np), lambda b, i: (b, 0))
    c_spec = pl.BlockSpec((TB, Np, Np), lambda b, i: (b, 0, 0))
    row_mat_spec = pl.BlockSpec((TB, TI, Np), lambda b, i: (b, i, 0))
    q_spec = pl.BlockSpec((TB, TI), lambda b, i: (b, i))
    in_specs = [occ_spec, c_spec, row_mat_spec]

    # Honest VMEM estimate (includes in-kernel f32 temporaries); never request
    # more than 75% of physical VMEM (v7x has only 64 MiB per TensorCore).
    est = _bytes_per_step(TB, TI, Np, compute_rho)
    vmem_limit = int(min(max(est + (8 << 20), 32 << 20), 0.75 * cap))
    compiler_params = pltpu.CompilerParams(
        dimension_semantics=("parallel", "parallel"),
        vmem_limit_bytes=vmem_limit)

    flops = 2.0 * B * Np * Np * Np + 4.0 * B * Np * Np
    in_bytes = 4 * (B * Np + 2 * B * Np * Np)
    out_bytes = 4 * (B * Np + (B * Np * Np if compute_rho else 0))
    cost = pl.CostEstimate(flops=int(flops), transcendentals=0,
                           bytes_accessed=int(in_bytes + out_bytes))

    single_row_block = (grid[1] == 1)
    if compute_rho:
        rho_p, q_p = pl.pallas_call(
            _make_density_mulliken_kernel(TI, single_row_block),
            out_shape=(
                jax.ShapeDtypeStruct((B, Np, Np), jnp.float32),
                jax.ShapeDtypeStruct((B, Np), jnp.float32),
            ),
            grid_spec=pltpu.PrefetchScalarGridSpec(
                num_scalar_prefetch=0, grid=grid,
                in_specs=in_specs, out_specs=[row_mat_spec, q_spec]),
            compiler_params=compiler_params,
            cost_estimate=cost,
        )(occ, eigvec, overlap)
        if Np != N:
            rho_p = rho_p[:, :N, :N]
            q_p = q_p[:, :N]
        return rho_p, q_p
    else:
        q_p = pl.pallas_call(
            _make_mulliken_only_kernel(TI, single_row_block),
            out_shape=jax.ShapeDtypeStruct((B, Np), jnp.float32),
            grid_spec=pltpu.PrefetchScalarGridSpec(
                num_scalar_prefetch=0, grid=grid,
                in_specs=in_specs, out_specs=q_spec),
            compiler_params=compiler_params,
            cost_estimate=cost,
        )(occ, eigvec, overlap)
        if Np != N:
            q_p = q_p[:, :N]
        return None, q_p


# ----------------------------------------------------------------------------
# Plain-JAX glue: generalized eigensolve + Fermi search + smearing.
# ----------------------------------------------------------------------------
# TODO(synk): generalized symmetric eigendecomposition (maths.eighb) and the
# scalar Fermi-level bisection have no clean Pallas equivalent; kept in JAX.
def eighb(H, S):
    """Solve H C = S C E via Cholesky reduction to a standard eigenproblem."""
    L = jnp.linalg.cholesky(S)                                    # (B, N, N)
    X = jax.scipy.linalg.solve_triangular(L, H, lower=True)       # L^{-1} H
    Hp = jax.scipy.linalg.solve_triangular(
        L, X.swapaxes(-1, -2), lower=True).swapaxes(-1, -2)       # L^{-1} H L^{-T}
    w, v = jnp.linalg.eigh(Hp)
    C = jax.scipy.linalg.solve_triangular(
        L.swapaxes(-1, -2), v, lower=False)                       # L^{-T} v
    return w, C


def fermi_search(epsilon, n_electrons, kT, iters=80):
    """Bisection for Ef so that sum_i 2*f(e_i) == n_electrons (per batch)."""
    lo = jnp.min(epsilon, axis=-1) - 20.0
    hi = jnp.max(epsilon, axis=-1) + 20.0

    def n_at(ef):
        return jnp.sum(2.0 / (1.0 + jnp.exp((epsilon - ef[:, None]) / kT)), axis=-1)

    def body(_, carry):
        lo, hi = carry
        mid = 0.5 * (lo + hi)
        too_many = n_at(mid) > n_electrons
        return jnp.where(too_many, lo, mid), jnp.where(too_many, mid, hi)

    lo, hi = lax.fori_loop(0, iters, body, (lo, hi))
    return 0.5 * (lo + hi)


def fermi_smearing(epsilon, Ef, kT):
    return 1.0 / (1.0 + jnp.exp((epsilon - Ef[:, None]) / kT))


def dftb_forward(hamiltonian, overlap, n_electrons, n_atoms, orb_per_atom, kT):
    """Reproduces Dftb.forward (non-periodic branch) semantics; returns q_new."""
    epsilon, eigvec = eighb(hamiltonian, overlap)
    Ef = fermi_search(epsilon, n_electrons, kT)
    occ = fermi_smearing(epsilon, Ef, kT) * 2.0
    # rho is stored by the module (self.rho) so we materialize it here; SCF hot
    # loops that only need charges should call compute_rho=False instead.
    rho, q_orb = density_and_mulliken(occ, eigvec, overlap, compute_rho=True)
    # TODO(synk): general ragged per-atom segment sum (atom_orbitals varies per
    # atom in TBMaLT); uniform shells per atom assumed here.
    B = q_orb.shape[0]
    q_new = q_orb.reshape(B, n_atoms, orb_per_atom).sum(-1)
    return q_new, rho, occ, epsilon


# ----------------------------------------------------------------------------
if __name__ == "__main__":
    B = 2            # batch of molecules
    n_atoms = 8
    orb_per_atom = 4
    N = n_atoms * orb_per_atom          # 32 orbitals -> no-pad fast path
    kT = 300.0 * 3.166811563e-6         # temperature * k_B in Hartree
    n_electrons = jnp.full((B,), 4.0 * n_atoms, dtype=jnp.float32)  # qzero.sum(-1)

    key = jax.random.PRNGKey(0)
    k1, k2 = jax.random.split(key)

    # Symmetric Hamiltonian and SPD overlap (deterministic, synthetic).
    a = jax.random.normal(k1, (B, N, N), dtype=jnp.float32)
    H = 0.5 * (a + a.swapaxes(-1, -2))
    m = 0.1 * jax.random.normal(k2, (B, N, N), dtype=jnp.float32)
    S = jnp.eye(N, dtype=jnp.float32)[None] + jnp.einsum('bik,bjk->bij', m, m)

    q_new, rho, occ, epsilon = jax.jit(
        dftb_forward, static_argnums=(3, 4))(H, S, n_electrons, n_atoms,
                                             orb_per_atom, kT)
    jax.block_until_ready((q_new, rho))

    # Pure-JAX reference for the Pallas-covered part.
    _, C = eighb(H, S)
    Ef = fermi_search(epsilon, n_electrons, kT)
    occ_ref = fermi_smearing(epsilon, Ef, kT) * 2.0
    rho_ref = jnp.einsum('bij,bj,bkj->bik', C, occ_ref, C)
    q_orb_ref = jnp.sum(S * rho_ref, axis=-1)
    q_ref = q_orb_ref.reshape(B, n_atoms, orb_per_atom).sum(-1)

    np.testing.assert_allclose(np.asarray(rho), np.asarray(rho_ref),
                               rtol=1e-4, atol=1e-4)
    np.testing.assert_allclose(np.asarray(q_new), np.asarray(q_ref),
                               rtol=1e-4, atol=1e-4)
    # Sanity: Mulliken charges must sum to the electron count.
    np.testing.assert_allclose(np.asarray(q_new.sum(-1)),
                               np.asarray(n_electrons), rtol=1e-3, atol=1e-3)

    # Charges-only variant (SCF hot loop, no rho writeback) must agree too.
    _, q_orb_only = density_and_mulliken(occ, C, S, compute_rho=False)
    jax.block_until_ready(q_orb_only)
    q_only = q_orb_only.reshape(B, n_atoms, orb_per_atom).sum(-1)
    np.testing.assert_allclose(np.asarray(q_only), np.asarray(q_ref),
                               rtol=1e-4, atol=1e-4)

    # Exercise the padded, row-tiled path (N=200 -> Np=256, TI=128) for both
    # kernels, including the dynamic sublane slice of the resident eigvec.
    N2 = 200
    k3, k4, k5 = jax.random.split(jax.random.PRNGKey(1), 3)
    C2 = jax.random.normal(k3, (B, N2, N2), dtype=jnp.float32) / np.sqrt(N2)
    occ2 = jax.nn.sigmoid(jax.random.normal(k4, (B, N2), dtype=jnp.float32)) * 2.0
    m2 = 0.1 * jax.random.normal(k5, (B, N2, N2), dtype=jnp.float32)
    S2 = jnp.eye(N2, dtype=jnp.float32)[None] + jnp.einsum('bik,bjk->bij', m2, m2)

    rho2, q2 = density_and_mulliken(occ2, C2, S2, compute_rho=True,
                                    block_b=1, block_rows=128)
    _, q2b = density_and_mulliken(occ2, C2, S2, compute_rho=False,
                                  block_b=1, block_rows=128)
    jax.block_until_ready((rho2, q2, q2b))

    rho2_ref = jnp.einsum('bij,bj,bkj->bik', C2, occ2, C2)
    q2_ref = jnp.sum(S2 * rho2_ref, axis=-1)
    np.testing.assert_allclose(np.asarray(rho2), np.asarray(rho2_ref),
                               rtol=1e-3, atol=1e-3)
    np.testing.assert_allclose(np.asarray(q2), np.asarray(q2_ref),
                               rtol=1e-3, atol=1e-3)
    np.testing.assert_allclose(np.asarray(q2b), np.asarray(q2_ref),
                               rtol=1e-3, atol=1e-3)

    print("KERNEL_OK")
</pallas_src>

<mosaic_0001>
module attributes {stable_mosaic.version = 11 : i64} {
  func.func @kernel(%arg0: i32, %arg1: i32, %arg2: memref<2x32xf32, #tpu.memory_space<vmem>>, %arg3: memref<2x32x32xf32, #tpu.memory_space<vmem>>, %arg4: memref<2x32x32xf32, #tpu.memory_space<vmem>>, %arg5: memref<2x32x32xf32, #tpu.memory_space<vmem>>, %arg6: memref<2x32xf32, #tpu.memory_space<vmem>>) attributes {dimension_semantics = [#tpu.dimension_semantics<parallel>, #tpu.dimension_semantics<parallel>], iteration_bounds = array<i64: 1, 1>, scalar_prefetch = 0 : i64, scratch_operands = 0 : i64, tpu.core_type = #tpu.core_type<tc>, window_params = [{transform_indices = @transform_0, window_bounds = array<i64: 2, 32>}, {transform_indices = @transform_1, window_bounds = array<i64: 2, 32, 32>}, {transform_indices = @transform_2, window_bounds = array<i64: 2, 32, 32>}, {transform_indices = @transform_3, window_bounds = array<i64: 2, 32, 32>}, {transform_indices = @transform_4, window_bounds = array<i64: 2, 32>}]} {
    %c0 = arith.constant 0 : index
    %c0_0 = arith.constant 0 : index
    %c0_1 = arith.constant 0 : index
    %0 = vector.load %arg3[%c0, %c0_0, %c0_1] : memref<2x32x32xf32, #tpu.memory_space<vmem>>, vector<2x32x32xf32>
    %c0_2 = arith.constant 0 : index
    %c0_3 = arith.constant 0 : index
    %1 = vector.load %arg2[%c0_2, %c0_3] : memref<2x32xf32, #tpu.memory_space<vmem>>, vector<2x32xf32>
    %2 = vector.shape_cast %1 : vector<2x32xf32> to vector<2x1x32xf32>
    %3 = vector.broadcast %2 : vector<2x1x32xf32> to vector<2x32x32xf32>
    %4 = arith.mulf %0, %3 : vector<2x32x32xf32>
    %cst = arith.constant dense<0.000000e+00> : vector<2x32x32xf32>
    %5 = tpu.matmul %4, %0, %cst {dimension_numbers = #tpu.dot_dimension_numbers<[2], [2], [1], [1], [0, 0, 0, 1, 1, 1], [0], [0]>} : vector<2x32x32xf32>, vector<2x32x32xf32>, vector<2x32x32xf32> -> vector<2x32x32xf32>
    %c0_4 = arith.constant 0 : index
    %c0_5 = arith.constant 0 : index
    %c0_6 = arith.constant 0 : index
    %6 = vector.load %arg5[%c0_4, %c0_5, %c0_6] : memref<2x32x32xf32, #tpu.memory_space<vmem>>, vector<2x32x32xf32>
    tpu.vector_store %arg5[%c0_4, %c0_5, %c0_6], %5 {strides = array<i32>} : memref<2x32x32xf32, #tpu.memory_space<vmem>>, vector<2x32x32xf32>,
    %c0_7 = arith.constant 0 : index
    %c0_8 = arith.constant 0 : index
    %c0_9 = arith.constant 0 : index
    %7 = vector.load %arg4[%c0_7, %c0_8, %c0_9] : memref<2x32x32xf32, #tpu.memory_space<vmem>>, vector<2x32x32xf32>
    %8 = arith.mulf %7, %5 : vector<2x32x32xf32>
    %cst_10 = arith.constant dense<0.000000e+00> : vector<2x32xf32>
    %9 = vector.multi_reduction <add>, %8, %cst_10 [2] : vector<2x32x32xf32> to vector<2x32xf32>
    %c0_11 = arith.constant 0 : index
    %c0_12 = arith.constant 0 : index
    %10 = vector.load %arg6[%c0_11, %c0_12] : memref<2x32xf32, #tpu.memory_space<vmem>>, vector<2x32xf32>
    tpu.vector_store %arg6[%c0_11, %c0_12], %9 {strides = array<i32>} : memref<2x32xf32, #tpu.memory_space<vmem>>, vector<2x32xf32>,
    return
  }
  func.func @transform_0(%arg0: i32, %arg1: i32) -> (i32, i32) {
    %c0_i32 = arith.constant 0 : i32
    %c0_i32_0 = arith.constant 0 : i32
    return %arg0, %c0_i32 : i32, i32
  }
  func.func @transform_1(%arg0: i32, %arg1: i32) -> (i32, i32, i32) {
    %c0_i32 = arith.constant 0 : i32
    %c0_i32_0 = arith.constant 0 : i32
    %c0_i32_1 = arith.constant 0 : i32
    return %arg0, %c0_i32, %c0_i32_0 : i32, i32, i32
  }
  func.func @transform_2(%arg0: i32, %arg1: i32) -> (i32, i32, i32) {
    %c0_i32 = arith.constant 0 : i32
    %c0_i32_0 = arith.constant 0 : i32
    return %arg0, %arg1, %c0_i32 : i32, i32, i32
  }
  func.func @transform_3(%arg0: i32, %arg1: i32) -> (i32, i32, i32) {
    %c0_i32 = arith.constant 0 : i32
    %c0_i32_0 = arith.constant 0 : i32
    return %arg0, %arg1, %c0_i32 : i32, i32, i32
  }
  func.func @transform_4(%arg0: i32, %arg1: i32) -> (i32, i32) {
    %c0_i32 = arith.constant 0 : i32
    return %arg0, %arg1 : i32, i32
  }
}

</mosaic_0001>

<llo_original>
// kernel: custom-call.8
$region0: #{custom-call.8}
  %s0 = inlined_call_operand.vmem [shape: f32[2,32,32], index: 0, kind: input, shape index: {}]
  %s1 = inlined_call_operand.vmem [shape: f32[2,32,32], index: 1, kind: output, shape index: {}]
  $region1: #{custom-call.8} parent=0
    #allocation0 [shape = 'u8[32768]{0}', space=vmem, size = 0x8000, scoped, tag = 'operand span for operand 0']
    #allocation1 [shape = 'u8[32768]{0}', space=vmem, size = 0x8000, scoped, tag = 'operand span for operand 1']
    loop: start=0, step=1, limit=4
    $region2: #{custom-call.8} parent=1 // loop_pre_header
      _
    $region3: #{custom-call.8} parent=1 // loop_header
      %s3 = sphi 0, %s7
      %p4 = scmp.ge.s32.totalorder %s3, 4
      %s10 = sphi 0, %s29
      %s11 = sphi 0, %s25
      %s12 = sphi 0, %s21
      %s13 = sphi 0, %s10
      %s14 = sphi 0, %s11
      %s15 = sphi 0, %s12
      %s16 = sphi 0, %s13
      %s17 = sphi 0, %s14
      %s18 = sphi 0, %s15
    $region4: #{custom-call.8} parent=1 // loop_header_branch
      %6 = sbr.rel (%p4) target = $region8
    $region5: #{custom-call.8} parent=1 // loop_body
      %s8 = ssub.s32 %s3, 1
      %s9 = ssub.s32 %s3, 2
      %s19 = sadd.s32 1, %s12
      %p20 = scmp.ge.s32.totalorder %s19, 1
      %s21 = scalar_select %p20, 0, %s19
      %s22 = sadd.s32 1, %s11
      %s23 = scalar_select %p20, %s22, %s11
      %p24 = scmp.ge.s32.totalorder %s23, 1
      %s25 = scalar_select %p24, 0, %s23
      %s26 = sadd.s32 1, %s10
      %s27 = scalar_select %p24, %s26, %s10
      %p28 = scmp.ge.s32.totalorder %s27, 2
      %s29 = scalar_select %p28, 0, %s27
      %p30 = scmp.le.s32.totalorder 1, %s3
      %p31 = scmp.lt.s32.totalorder %s3, 3
      %p32 = pnand %p30, %p31
      %p33 = pneg %p32
      // Predicated region
      $region9: #{custom-call.8} parent=5 // pred_check
        _
      $region10: #{custom-call.8} parent=5 // pred_check_branch
        %35 = sbr.rel (%p32) target = $region12
      $region11: #{custom-call.8} parent=5 // pred_region
        %s36 = ssub.s32 %s3, 1
      $region12: #{custom-call.8} parent=5 // pred_fallthru
        _
      %p37 = scmp.lt.s32.totalorder %s3, 2
      // Predicated region
      $region13: #{custom-call.8} parent=5 // pred_check
        %p38 = pneg %p37
      $region14: #{custom-call.8} parent=5 // pred_check_branch
        %40 = sbr.rel (%p38) target = $region16
      $region15: #{custom-call.8} parent=5 // pred_region
        %s41 = sand.u32 %s3, 1
        %s42 = sand.u32 %s3, 1
        %s43 = smul.addr %s42, 32
        %s44 = scalar_lea.vmem [#allocation0], %s43
        %s45 = sadd.s32 %s12, %s11
        %s46 = smul.addr %s10, 4
        %s47 = sadd.s32 %s45, %s46
        %s48 = smul.addr %s47, 8
        %s49 = scalar_lea.vmem %s0, %s48
        // Predicated region
        $region17: #{custom-call.8} parent=15 // pred_check
          _
        $region18: #{custom-call.8} parent=15 // pred_check_branch
          %51 = sbr.rel (0) target = $region20
        $region19: #{custom-call.8} parent=15 // pred_region
          // Predicated region
          $region21: #{custom-call.8} parent=19 // pred_check
            _
          $region22: #{custom-call.8} parent=19 // pred_check_branch
            %53 = sbr.rel (0) target = $region24
          $region23: #{custom-call.8} parent=19 // pred_region
            // Predicated region
            $region36: #{custom-call.8} parent=23 // pred_check
              _
            $region37: #{custom-call.8} parent=23 // pred_check_branch
              %74 = sbr.rel (0) target = $region39
            $region38: #{custom-call.8} parent=23 // pred_region
              loop: start=0, step=1, limit=1
              $region40: #{custom-call.8} parent=38 // loop_pre_header
                _
              $region41: #{custom-call.8} parent=38 // loop_header
                %s76 = sphi 0, %s80
                %p77 = scmp.ge.s32.totalorder %s76, 1
                %s81 = sphi %s49, %s49
                %s82 = sphi %s44, %s44
              $region42: #{custom-call.8} parent=38 // loop_header_branch
                %79 = sbr.rel (%p77) target = $region46
              $region43: #{custom-call.8} parent=38 // loop_body
                %v83 = vld [vmem:[%s81] sm:$0xff]
                %84 = vst [vmem:[%s82] sm:$0xff] %v83
                %v85 = vld [vmem:[%s81 + $0x8] sm:$0xff]
                %86 = vst [vmem:[%s82 + $0x8] sm:$0xff] %v85
                %v87 = vld [vmem:[%s81 + $0x10] sm:$0xff]
                %88 = vst [vmem:[%s82 + $0x10] sm:$0xff] %v87
                %v89 = vld [vmem:[%s81 + $0x18] sm:$0xff]
                %90 = vst [vmem:[%s82 + $0x18] sm:$0xff] %v89
              $region44: #{custom-call.8} parent=38 // loop_footer
                %s80 = sadd.s32 1, %s76
              $region45: #{custom-call.8} parent=38 // loop_footer_branch
                %75 = sbr.rel target = $region41
              $region46: #{custom-call.8} parent=38 // loop_exit
                _
            $region39: #{custom-call.8} parent=23 // pred_fallthru
              _
            // Predicated region
            $region47: #{custom-call.8} parent=23 // pred_check
              _
            $region48: #{custom-call.8} parent=23 // pred_check_branch
              %92 = sbr.rel target = $region50
            $region49: #{custom-call.8} parent=23 // pred_region
              _
            $region50: #{custom-call.8} parent=23 // pred_fallthru
              _
          $region24: #{custom-call.8} parent=19 // pred_fallthru
            _
          // Predicated region
          $region25: #{custom-call.8} parent=19 // pred_check
            _
          $region26: #{custom-call.8} parent=19 // pred_check_branch
            %55 = sbr.rel target = $region28
          $region27: #{custom-call.8} parent=19 // pred_region
            loop: start=0, step=1, limit=1
            $region29: #{custom-call.8} parent=27 // loop_pre_header
              _
            $region30: #{custom-call.8} parent=27 // loop_header
              %s58 = sphi 0, %s62
              %p59 = scmp.ge.s32.totalorder %s58, 1
              %s63 = sphi %s49, %s49
              %s64 = sphi %s44, %s44
            $region31: #{custom-call.8} parent=27 // loop_header_branch
              %61 = sbr.rel (%p59) target = $region35
            $region32: #{custom-call.8} parent=27 // loop_body
              %v65 = vld [vmem:[%s63] sm:$0xff]
              %66 = vst [vmem:[%s64] sm:$0xff] %v65
              %v67 = vld [vmem:[%s63 + $0x8] sm:$0xff]
              %68 = vst [vmem:[%s64 + $0x8] sm:$0xff] %v67
              %v69 = vld [vmem:[%s63 + $0x10] sm:$0xff]
              %70 = vst [vmem:[%s64 + $0x10] sm:$0xff] %v69
              %v71 = vld [vmem:[%s63 + $0x18] sm:$0xff]
              %72 = vst [vmem:[%s64 + $0x18] sm:$0xff] %v71
            $region33: #{custom-call.8} parent=27 // loop_footer
              %s62 = sadd.s32 1, %s58
            $region34: #{custom-call.8} parent=27 // loop_footer_branch
              %57 = sbr.rel target = $region30
            $region35: #{custom-call.8} parent=27 // loop_exit
              _
          $region28: #{custom-call.8} parent=19 // pred_fallthru
            _
        $region20: #{custom-call.8} parent=15 // pred_fallthru
          _
        %93 = vnop
      $region16: #{custom-call.8} parent=5 // pred_fallthru
        _
      %p94 = scmp.le.s32.totalorder 1, %s3
      %p95 = scmp.lt.s32.totalorder %s3, 3
      %p96 = pnand %p94, %p95
      %p97 = pneg %p96
      // Predicated region
      $region51: #{custom-call.8} parent=5 // pred_check
        _
      $region52: #{custom-call.8} parent=5 // pred_check_branch
        %99 = sbr.rel (%p96) target = $region54
      $region53: #{custom-call.8} parent=5 // pred_region
        %s100 = ssub.s32 %s3, 1
        %s101 = sand.u32 %s8, 1
        %s102 = sand.u32 %s8, 1
        %s103 = smul.addr %s102, 32
        %s104 = scalar_lea.vmem [#allocation0], %s103
        %s105 = sand.u32 %s8, 1
        %s106 = sand.u32 %s8, 1
        %s107 = smul.addr %s106, 32
        %s108 = scalar_lea.vmem [#allocation0], %s107
        %s109 = sand.u32 %s8, 1
        %s110 = sand.u32 %s8, 1
        %s111 = smul.addr %s110, 32
        %s112 = scalar_lea.vmem [#allocation1], %s111
        %113 = vst [vmem:[%s112] sm:$0xff] 0.0
        %s114 = scalar_lea.vmem %s112, 8 [#allocation1]
        %115 = vst [vmem:[%s114] sm:$0xff] 0.0
        %s116 = scalar_lea.vmem %s112, 16 [#allocation1]
        %117 = vst [vmem:[%s116] sm:$0xff] 0.0
        %s118 = scalar_lea.vmem %s112, 24 [#allocation1]
        %119 = vst [vmem:[%s118] sm:$0xff] 0.0
        %vm120 = vcmask 7168
        %v121 = vld [vmem:[%s112] ss:$0 sm:$0xff]
        %v122 = vld [vmem:[%s104] ss:$0 sm:$0xff]
        %v123 = vmul.f32 %v121, %v121
        %124 = vadd.xlane.f32.xlu0 %v123
        %v125 = vpop.xlane.xlu0 %124
        %v126 = vsub.f32 %v122, %v125
        %v127 = vrsqrt.pop %v126
        %v128 = vld [vmem:[%s104] sm:$0xff]
        %v129 = vld [vmem:[%s112] sm:$0xff]
        %v130 = vmul.f32 %v129, %v121
        %131 = vadd.xlane.f32.xlu0 %v130
        %v132 = vpop.xlane.xlu0 %131
        %v133 = vsub.f32 %v128, %v132
        %v134 = vmul.f32 %v133, %v127
        %v135 = vsel %vm120, %v134, 0.0
        %v136 = vadd.f32 %v129, %v135
        %137 = vst [vmem:[%s112] sm:$0xff] %v136
        %s138 = scalar_lea.vmem %s104, 8 [#allocation0]
        %v139 = vld [vmem:[%s138] sm:$0xff]
        %s140 = scalar_lea.vmem %s112, 8 [#allocation1]
        %v141 = vld [vmem:[%s140] sm:$0xff]
        %v142 = vmul.f32 %v141, %v121
        %143 = vadd.xlane.f32.xlu0 %v142
        %v144 = vpop.xlane.xlu0 %143
        %v145 = vsub.f32 %v139, %v144
        %v146 = vmul.f32 %v145, %v127
        %v147 = vsel %vm120, %v146, 0.0
        %v148 = vadd.f32 %v141, %v147
        %s149 = scalar_lea.vmem %s112, 8 [#allocation1]
        %150 = vst [vmem:[%s149] sm:$0xff] %v148
        %s151 = scalar_lea.vmem %s104, 16 [#allocation0]
        %v152 = vld [vmem:[%s151] sm:$0xff]
        %s153 = scalar_lea.vmem %s112, 16 [#allocation1]
        %v154 = vld [vmem:[%s153] sm:$0xff]
        %v155 = vmul.f32 %v154, %v121
        %156 = vadd.xlane.f32.xlu0 %v155
        %v157 = vpop.xlane.xlu0 %156
        %v158 = vsub.f32 %v152, %v157
        %v159 = vmul.f32 %v158, %v127
        %v160 = vsel %vm120, %v159, 0.0
        %v161 = vadd.f32 %v154, %v160
        %s162 = scalar_lea.vmem %s112, 16 [#allocation1]
        %163 = vst [vmem:[%s162] sm:$0xff] %v161
        %s164 = scalar_lea.vmem %s104, 24 [#allocation0]
        %v165 = vld [vmem:[%s164] sm:$0xff]
        %s166 = scalar_lea.vmem %s112, 24 [#allocation1]
        %v167 = vld [vmem:[%s166] sm:$0xff]
        %v168 = vmul.f32 %v167, %v121
        %169 = vadd.xlane.f32.xlu0 %v168
        %v170 = vpop.xlane.xlu0 %169
        %v171 = vsub.f32 %v165, %v170
        %v172 = vmul.f32 %v171, %v127
        %v173 = vsel %vm120, %v172, 0.0
        %v174 = vadd.f32 %v167, %v173
        %s175 = scalar_lea.vmem %s112, 24 [#allocation1]
        %176 = vst [vmem:[%s175] sm:$0xff] %v174
        %vm177 = vcmask 15368
        %s178 = scalar_lea.vmem %s112, 1 [#allocation1]
        %v179 = vld [vmem:[%s178] ss:$0 sm:$0xff]
        %s180 = scalar_lea.vmem %s104, 1 [#allocation0]
        %v181 = vld [vmem:[%s180] ss:$0 sm:$0xff]
        %v182 = vmul.f32 %v179, %v179
        %183 = vadd.xlane.f32.xlu0 %v182
        %v184 = vpop.xlane.xlu0 %183
        %v185 = vsub.f32 %v181, %v184
        %v186 = vrsqrt.pop %v185
        %v187 = vld [vmem:[%s104] sm:$0xff]
        %v188 = vld [vmem:[%s112] sm:$0xff]
        %v189 = vmul.f32 %v188, %v179
        %190 = vadd.xlane.f32.xlu0 %v189
        %v191 = vpop.xlane.xlu0 %190
        %v192 = vsub.f32 %v187, %v191
        %v193 = vmul.f32 %v192, %v186
        %vm194 = vcmask 1047553
        %vm195 = vmand %vm177, %vm194
        %v196 = vsel %vm195, %v193, 0.0
        %v197 = vadd.f32 %v188, %v196
        %198 = vst [vmem:[%s112] sm:$0xff] %v197
        %s199 = scalar_lea.vmem %s104, 8 [#allocation0]
        %v200 = vld [vmem:[%s199] sm:$0xff]
        %s201 = scalar_lea.vmem %s112, 8 [#allocation1]
        %v202 = vld [vmem:[%s201] sm:$0xff]
        %v203 = vmul.f32 %v202, %v179
        %204 = vadd.xlane.f32.xlu0 %v203
        %v205 = vpop.xlane.xlu0 %204
        %v206 = vsub.f32 %v200, %v205
        %v207 = vmul.f32 %v206, %v186
        %v208 = vsel %vm177, %v207, 0.0
        %v209 = vadd.f32 %v202, %v208
        %s210 = scalar_lea.vmem %s112, 8 [#allocation1]
        %211 = vst [vmem:[%s210] sm:$0xff] %v209
        %s212 = scalar_lea.vmem %s104, 16 [#allocation0]
        %v213 = vld [vmem:[%s212] sm:$0xff]
        %s214 = scalar_lea.vmem %s112, 16 [#allocation1]
        %v215 = vld [vmem:[%s214] sm:$0xff]
        %v216 = vmul.f32 %v215, %v179
        %217 = vadd.xlane.f32.xlu0 %v216
        %v218 = vpop.xlane.xlu0 %217
        %v219 = vsub.f32 %v213, %v218
        %v220 = vmul.f32 %v219, %v186
        %v221 = vsel %vm177, %v220, 0.0
        %v222 = vadd.f32 %v215, %v221
        %s223 = scalar_lea.vmem %s112, 16 [#allocation1]
        %224 = vst [vmem:[%s223] sm:$0xff] %v222
        %s225 = scalar_lea.vmem %s104, 24 [#allocation0]
        %v226 = vld [vmem:[%s225] sm:$0xff]
        %s227 = scalar_lea.vmem %s112, 24 [#allocation1]
        %v228 = vld [vmem:[%s227] sm:$0xff]
        %v229 = vmul.f32 %v228, %v179
        %230 = vadd.xlane.f32.xlu0 %v229
        %v231 = vpop.xlane.xlu0 %230
        %v232 = vsub.f32 %v226, %v231
        %v233 = vmul.f32 %v232, %v186
        %v234 = vsel %vm177, %v233, 0.0
        %v235 = vadd.f32 %v228, %v234
        %s236 = scalar_lea.vmem %s112, 24 [#allocation1]
        %237 = vst [vmem:[%s236] sm:$0xff] %v235
        %vm238 = vcmask 23568
        %s239 = scalar_lea.vmem %s112, 2 [#allocation1]
        %v240 = vld [vmem:[%s239] ss:$0 sm:$0xff]
        %s241 = scalar_lea.vmem %s104, 2 [#allocation0]
        %v242 = vld [vmem:[%s241] ss:$0 sm:$0xff]
        %v243 = vmul.f32 %v240, %v240
        %244 = vadd.xlane.f32.xlu0 %v243
        %v245 = vpop.xlane.xlu0 %244
        %v246 = vsub.f32 %v242, %v245
        %v247 = vrsqrt.pop %v246
        %v248 = vld [vmem:[%s104] sm:$0xff]
        %v249 = vld [vmem:[%s112] sm:$0xff]
        %v250 = vmul.f32 %v249, %v240
        %251 = vadd.xlane.f32.xlu0 %v250
        %v252 = vpop.xlane.xlu0 %251
        %v253 = vsub.f32 %v248, %v252
        %v254 = vmul.f32 %v253, %v247
        %vm255 = vcmask 1047554
        %vm256 = vmand %vm238, %vm255
        %v257 = vsel %vm256, %v254, 0.0
        %v258 = vadd.f32 %v249, %v257
        %259 = vst [vmem:[%s112] sm:$0xff] %v258
        %s260 = scalar_lea.vmem %s104, 8 [#allocation0]
        %v261 = vld [vmem:[%s260] sm:$0xff]
        %s262 = scalar_lea.vmem %s112, 8 [#allocation1]
        %v263 = vld [vmem:[%s262] sm:$0xff]
        %v264 = vmul.f32 %v263, %v240
        %265 = vadd.xlane.f32.xlu0 %v264
        %v266 = vpop.xlane.xlu0 %265
        %v267 = vsub.f32 %v261, %v266
        %v268 = vmul.f32 %v267, %v247
        %v269 = vsel %vm238, %v268, 0.0
        %v270 = vadd.f32 %v263, %v269
        %s271 = scalar_lea.vmem %s112, 8 [#allocation1]
        %272 = vst [vmem:[%s271] sm:$0xff] %v270
        %s273 = scalar_lea.vmem %s104, 16 [#allocation0]
        %v274 = vld [vmem:[%s273] sm:$0xff]
        %s275 = scalar_lea.vmem %s112, 16 [#allocation1]
        %v276 = vld [vmem:[%s275] sm:$0xff]
        %v277 = vmul.f32 %v276, %v240
        %278 = vadd.xlane.f32.xlu0 %v277
        %v279 = vpop.xlane.xlu0 %278
        %v280 = vsub.f32 %v274, %v279
        %v281 = vmul.f32 %v280, %v247
        %v282 = vsel %vm238, %v281, 0.0
        %v283 = vadd.f32 %v276, %v282
        %s284 = scalar_lea.vmem %s112, 16 [#allocation1]
        %285 = vst [vmem:[%s284] sm:$0xff] %v283
        %s286 = scalar_lea.vmem %s104, 24 [#allocation0]
        %v287 = vld [vmem:[%s286] sm:$0xff]
        %s288 = scalar_lea.vmem %s112, 24 [#allocation1]
        %v289 = vld [vmem:[%s288] sm:$0xff]
        %v290 = vmul.f32 %v289, %v240
        %291 = vadd.xlane.f32.xlu0 %v290
        %v292 = vpop.xlane.xlu0 %291
        %v293 = vsub.f32 %v287, %v292
        %v294 = vmul.f32 %v293, %v247
        %v295 = vsel %vm238, %v294, 0.0
        %v296 = vadd.f32 %v289, %v295
        %s297 = scalar_lea.vmem %s112, 24 [#allocation1]
        %298 = vst [vmem:[%s297] sm:$0xff] %v296
        %vm299 = vcmask 31768
        %s300 = scalar_lea.vmem %s112, 3 [#allocation1]
        %v301 = vld [vmem:[%s300] ss:$0 sm:$0xff]
        %s302 = scalar_lea.vmem %s104, 3 [#allocation0]
        %v303 = vld [vmem:[%s302] ss:$0 sm:$0xff]
        %v304 = vmul.f32 %v301, %v301
        %305 = vadd.xlane.f32.xlu0 %v304
        %v306 = vpop.xlane.xlu0 %305
        %v307 = vsub.f32 %v303, %v306
        %v308 = vrsqrt.pop %v307
        %v309 = vld [vmem:[%s104] sm:$0xff]
        %v310 = vld [vmem:[%s112] sm:$0xff]
        %v311 = vmul.f32 %v310, %v301
        %312 = vadd.xlane.f32.xlu0 %v311
        %v313 = vpop.xlane.xlu0 %312
        %v314 = vsub.f32 %v309, %v313
        %v315 = vmul.f32 %v314, %v308
        %vm316 = vcmask 1047555
        %vm317 = vmand %vm299, %vm316
        %v318 = vsel %vm317, %v315, 0.0
        %v319 = vadd.f32 %v310, %v318
        %320 = vst [vmem:[%s112] sm:$0xff] %v319
        %s321 = scalar_lea.vmem %s104, 8 [#allocation0]
        %v322 = vld [vmem:[%s321] sm:$0xff]
        %s323 = scalar_lea.vmem %s112, 8 [#allocation1]
        %v324 = vld [vmem:[%s323] sm:$0xff]
        %v325 = vmul.f32 %v324, %v301
        %326 = vadd.xlane.f32.xlu0 %v325
        %v327 = vpop.xlane.xlu0 %326
        %v328 = vsub.f32 %v322, %v327
        %v329 = vmul.f32 %v328, %v308
        %v330 = vsel %vm299, %v329, 0.0
        %v331 = vadd.f32 %v324, %v330
        %s332 = scalar_lea.vmem %s112, 8 [#allocation1]
        %333 = vst [vmem:[%s332] sm:$0xff] %v331
        %s334 = scalar_lea.vmem %s104, 16 [#allocation0]
        %v335 = vld [vmem:[%s334] sm:$0xff]
        %s336 = scalar_lea.vmem %s112, 16 [#allocation1]
        %v337 = vld [vmem:[%s336] sm:$0xff]
        %v338 = vmul.f32 %v337, %v301
        %339 = vadd.xlane.f32.xlu0 %v338
        %v340 = vpop.xlane.xlu0 %339
        %v341 = vsub.f32 %v335, %v340
        %v342 = vmul.f32 %v341, %v308
        %v343 = vsel %vm299, %v342, 0.0
        %v344 = vadd.f32 %v337, %v343
        %s345 = scalar_lea.vmem %s112, 16 [#allocation1]
        %346 = vst [vmem:[%s345] sm:$0xff] %v344
        %s347 = scalar_lea.vmem %s104, 24 [#allocation0]
        %v348 = vld [vmem:[%s347] sm:$0xff]
        %s349 = scalar_lea.vmem %s112, 24 [#allocation1]
        %v350 = vld [vmem:[%s349] sm:$0xff]
        %v351 = vmul.f32 %v350, %v301
        %352 = vadd.xlane.f32.xlu0 %v351
        %v353 = vpop.xlane.xlu0 %352
        %v354 = vsub.f32 %v348, %v353
        %v355 = vmul.f32 %v354, %v308
        %v356 = vsel %vm299, %v355, 0.0
        %v357 = vadd.f32 %v350, %v356
        %s358 = scalar_lea.vmem %s112, 24 [#allocation1]
        %359 = vst [vmem:[%s358] sm:$0xff] %v357
        %vm360 = vcmask 39968
        %s361 = scalar_lea.vmem %s112, 4 [#allocation1]
        %v362 = vld [vmem:[%s361] ss:$0 sm:$0xff]
        %s363 = scalar_lea.vmem %s104, 4 [#allocation0]
        %v364 = vld [vmem:[%s363] ss:$0 sm:$0xff]
        %v365 = vmul.f32 %v362, %v362
        %366 = vadd.xlane.f32.xlu0 %v365
        %v367 = vpop.xlane.xlu0 %366
        %v368 = vsub.f32 %v364, %v367
        %v369 = vrsqrt.pop %v368
        %v370 = vld [vmem:[%s104] sm:$0xff]
        %v371 = vld [vmem:[%s112] sm:$0xff]
        %v372 = vmul.f32 %v371, %v362
        %373 = vadd.xlane.f32.xlu0 %v372
        %v374 = vpop.xlane.xlu0 %373
        %v375 = vsub.f32 %v370, %v374
        %v376 = vmul.f32 %v375, %v369
        %vm377 = vcmask 1047556
        %vm378 = vmand %vm360, %vm377
        %v379 = vsel %vm378, %v376, 0.0
        %v380 = vadd.f32 %v371, %v379
        %381 = vst [vmem:[%s112] sm:$0xff] %v380
        %s382 = scalar_lea.vmem %s104, 8 [#allocation0]
        %v383 = vld [vmem:[%s382] sm:$0xff]
        %s384 = scalar_lea.vmem %s112, 8 [#allocation1]
        %v385 = vld [vmem:[%s384] sm:$0xff]
        %v386 = vmul.f32 %v385, %v362
        %387 = vadd.xlane.f32.xlu0 %v386
        %v388 = vpop.xlane.xlu0 %387
        %v389 = vsub.f32 %v383, %v388
        %v390 = vmul.f32 %v389, %v369
        %v391 = vsel %vm360, %v390, 0.0
        %v392 = vadd.f32 %v385, %v391
        %s393 = scalar_lea.vmem %s112, 8 [#allocation1]
        %394 = vst [vmem:[%s393] sm:$0xff] %v392
        %s395 = scalar_lea.vmem %s104, 16 [#allocation0]
        %v396 = vld [vmem:[%s395] sm:$0xff]
        %s397 = scalar_lea.vmem %s112, 16 [#allocation1]
        %v398 = vld [vmem:[%s397] sm:$0xff]
        %v399 = vmul.f32 %v398, %v362
        %400 = vadd.xlane.f32.xlu0 %v399
        %v401 = vpop.xlane.xlu0 %400
        %v402 = vsub.f32 %v396, %v401
        %v403 = vmul.f32 %v402, %v369
        %v404 = vsel %vm360, %v403, 0.0
        %v405 = vadd.f32 %v398, %v404
        %s406 = scalar_lea.vmem %s112, 16 [#allocation1]
        %407 = vst [vmem:[%s406] sm:$0xff] %v405
        %s408 = scalar_lea.vmem %s104, 24 [#allocation0]
        %v409 = vld [vmem:[%s408] sm:$0xff]
        %s410 = scalar_lea.vmem %s112, 24 [#allocation1]
        %v411 = vld [vmem:[%s410] sm:$0xff]
        %v412 = vmul.f32 %v411, %v362
        %413 = vadd.xlane.f32.xlu0 %v412
        %v414 = vpop.xlane.xlu0 %413
        %v415 = vsub.f32 %v409, %v414
        %v416 = vmul.f32 %v415, %v369
        %v417 = vsel %vm360, %v416, 0.0
        %v418 = vadd.f32 %v411, %v417
        %s419 = scalar_lea.vmem %s112, 24 [#allocation1]
        %420 = vst [vmem:[%s419] sm:$0xff] %v418
        %vm421 = vcmask 48168
        %s422 = scalar_lea.vmem %s112, 5 [#allocation1]
        %v423 = vld [vmem:[%s422] ss:$0 sm:$0xff]
        %s424 = scalar_lea.vmem %s104, 5 [#allocation0]
        %v425 = vld [vmem:[%s424] ss:$0 sm:$0xff]
        %v426 = vmul.f32 %v423, %v423
        %427 = vadd.xlane.f32.xlu0 %v426
        %v428 = vpop.xlane.xlu0 %427
        %v429 = vsub.f32 %v425, %v428
        %v430 = vrsqrt.pop %v429
        %v431 = vld [vmem:[%s104] sm:$0xff]
        %v432 = vld [vmem:[%s112] sm:$0xff]
        %v433 = vmul.f32 %v432, %v423
        %434 = vadd.xlane.f32.xlu0 %v433
        %v435 = vpop.xlane.xlu0 %434
        %v436 = vsub.f32 %v431, %v435
        %v437 = vmul.f32 %v436, %v430
        %vm438 = vcmask 1047557
        %vm439 = vmand %vm421, %vm438
        %v440 = vsel %vm439, %v437, 0.0
        %v441 = vadd.f32 %v432, %v440
        %442 = vst [vmem:[%s112] sm:$0xff] %v441
        %s443 = scalar_lea.vmem %s104, 8 [#allocation0]
        %v444 = vld [vmem:[%s443] sm:$0xff]
        %s445 = scalar_lea.vmem %s112, 8 [#allocation1]
        %v446 = vld [vmem:[%s445] sm:$0xff]
        %v447 = vmul.f32 %v446, %v423
        %448 = vadd.xlane.f32.xlu0 %v447
        %v449 = vpop.xlane.xlu0 %448
        %v450 = vsub.f32 %v444, %v449
        %v451 = vmul.f32 %v450, %v430
        %v452 = vsel %vm421, %v451, 0.0
        %v453 = vadd.f32 %v446, %v452
        %s454 = scalar_lea.vmem %s112, 8 [#allocation1]
        %455 = vst [vmem:[%s454] sm:$0xff] %v453
        %s456 = scalar_lea.vmem %s104, 16 [#allocation0]
        %v457 = vld [vmem:[%s456] sm:$0xff]
        %s458 = scalar_lea.vmem %s112, 16 [#allocation1]
        %v459 = vld [vmem:[%s458] sm:$0xff]
        %v460 = vmul.f32 %v459, %v423
        %461 = vadd.xlane.f32.xlu0 %v460
        %v462 = vpop.xlane.xlu0 %461
        %v463 = vsub.f32 %v457, %v462
        %v464 = vmul.f32 %v463, %v430
        %v465 = vsel %vm421, %v464, 0.0
        %v466 = vadd.f32 %v459, %v465
        %s467 = scalar_lea.vmem %s112, 16 [#allocation1]
        %468 = vst [vmem:[%s467] sm:$0xff] %v466
        %s469 = scalar_lea.vmem %s104, 24 [#allocation0]
        %v470 = vld [vmem:[%s469] sm:$0xff]
        %s471 = scalar_lea.vmem %s112, 24 [#allocation1]
        %v472 = vld [vmem:[%s471] sm:$0xff]
        %v473 = vmul.f32 %v472, %v423
        %474 = vadd.xlane.f32.xlu0 %v473
        %v475 = vpop.xlane.xlu0 %474
        %v476 = vsub.f32 %v470, %v475
        %v477 = vmul.f32 %v476, %v430
        %v478 = vsel %vm421, %v477, 0.0
        %v479 = vadd.f32 %v472, %v478
        %s480 = scalar_lea.vmem %s112, 24 [#allocation1]
        %481 = vst [vmem:[%s480] sm:$0xff] %v479
        %vm482 = vcmask 56368
        %s483 = scalar_lea.vmem %s112, 6 [#allocation1]
        %v484 = vld [vmem:[%s483] ss:$0 sm:$0xff]
        %s485 = scalar_lea.vmem %s104, 6 [#allocation0]
        %v486 = vld [vmem:[%s485] ss:$0 sm:$0xff]
        %v487 = vmul.f32 %v484, %v484
        %488 = vadd.xlane.f32.xlu0 %v487
        %v489 = vpop.xlane.xlu0 %488
        %v490 = vsub.f32 %v486, %v489
        %v491 = vrsqrt.pop %v490
        %v492 = vld [vmem:[%s104] sm:$0xff]
        %v493 = vld [vmem:[%s112] sm:$0xff]
        %v494 = vmul.f32 %v493, %v484
        %495 = vadd.xlane.f32.xlu0 %v494
        %v496 = vpop.xlane.xlu0 %495
        %v497 = vsub.f32 %v492, %v496
        %v498 = vmul.f32 %v497, %v491
        %vm499 = vcmask 1047558
        %vm500 = vmand %vm482, %vm499
        %v501 = vsel %vm500, %v498, 0.0
        %v502 = vadd.f32 %v493, %v501
        %503 = vst [vmem:[%s112] sm:$0xff] %v502
        %s504 = scalar_lea.vmem %s104, 8 [#allocation0]
        %v505 = vld [vmem:[%s504] sm:$0xff]
        %s506 = scalar_lea.vmem %s112, 8 [#allocation1]
        %v507 = vld [vmem:[%s506] sm:$0xff]
        %v508 = vmul.f32 %v507, %v484
        %509 = vadd.xlane.f32.xlu0 %v508
        %v510 = vpop.xlane.xlu0 %509
        %v511 = vsub.f32 %v505, %v510
        %v512 = vmul.f32 %v511, %v491
        %v513 = vsel %vm482, %v512, 0.0
        %v514 = vadd.f32 %v507, %v513
        %s515 = scalar_lea.vmem %s112, 8 [#allocation1]
        %516 = vst [vmem:[%s515] sm:$0xff] %v514
        %s517 = scalar_lea.vmem %s104, 16 [#allocation0]
        %v518 = vld [vmem:[%s517] sm:$0xff]
        %s519 = scalar_lea.vmem %s112, 16 [#allocation1]
        %v520 = vld [vmem:[%s519] sm:$0xff]
        %v521 = vmul.f32 %v520, %v484
        %522 = vadd.xlane.f32.xlu0 %v521
        %v523 = vpop.xlane.xlu0 %522
        %v524 = vsub.f32 %v518, %v523
        %v525 = vmul.f32 %v524, %v491
        %v526 = vsel %vm482, %v525, 0.0
        %v527 = vadd.f32 %v520, %v526
        %s528 = scalar_lea.vmem %s112, 16 [#allocation1]
        %529 = vst [vmem:[%s528] sm:$0xff] %v527
        %s530 = scalar_lea.vmem %s104, 24 [#allocation0]
        %v531 = vld [vmem:[%s530] sm:$0xff]
        %s532 = scalar_lea.vmem %s112, 24 [#allocation1]
        %v533 = vld [vmem:[%s532] sm:$0xff]
        %v534 = vmul.f32 %v533, %v484
        %535 = vadd.xlane.f32.xlu0 %v534
        %v536 = vpop.xlane.xlu0 %535
        %v537 = vsub.f32 %v531, %v536
        %v538 = vmul.f32 %v537, %v491
        %v539 = vsel %vm482, %v538, 0.0
        %v540 = vadd.f32 %v533, %v539
        %s541 = scalar_lea.vmem %s112, 24 [#allocation1]
        %542 = vst [vmem:[%s541] sm:$0xff] %v540
        %vm543 = vcmask 64568
        %s544 = scalar_lea.vmem %s112, 7 [#allocation1]
        %v545 = vld [vmem:[%s544] ss:$0 sm:$0xff]
        %s546 = scalar_lea.vmem %s104, 7 [#allocation0]
        %v547 = vld [vmem:[%s546] ss:$0 sm:$0xff]
        %v548 = vmul.f32 %v545, %v545
        %549 = vadd.xlane.f32.xlu0 %v548
        %v550 = vpop.xlane.xlu0 %549
        %v551 = vsub.f32 %v547, %v550
        %v552 = vrsqrt.pop %v551
        %v553 = vld [vmem:[%s104] sm:$0xff]
        %v554 = vld [vmem:[%s112] sm:$0xff]
        %v555 = vmul.f32 %v554, %v545
        %556 = vadd.xlane.f32.xlu0 %v555
        %v557 = vpop.xlane.xlu0 %556
        %v558 = vsub.f32 %v553, %v557
        %v559 = vmul.f32 %v558, %v552
        %vm560 = vcmask 1047559
        %vm561 = vmand %vm543, %vm560
        %v562 = vsel %vm561, %v559, 0.0
        %v563 = vadd.f32 %v554, %v562
        %564 = vst [vmem:[%s112] sm:$0xff] %v563
        %s565 = scalar_lea.vmem %s104, 8 [#allocation0]
        %v566 = vld [vmem:[%s565] sm:$0xff]
        %s567 = scalar_lea.vmem %s112, 8 [#allocation1]
        %v568 = vld [vmem:[%s567] sm:$0xff]
        %v569 = vmul.f32 %v568, %v545
        %570 = vadd.xlane.f32.xlu0 %v569
        %v571 = vpop.xlane.xlu0 %570
        %v572 = vsub.f32 %v566, %v571
        %v573 = vmul.f32 %v572, %v552
        %v574 = vsel %vm543, %v573, 0.0
        %v575 = vadd.f32 %v568, %v574
        %s576 = scalar_lea.vmem %s112, 8 [#allocation1]
        %577 = vst [vmem:[%s576] sm:$0xff] %v575
        %s578 = scalar_lea.vmem %s104, 16 [#allocation0]
        %v579 = vld [vmem:[%s578] sm:$0xff]
        %s580 = scalar_lea.vmem %s112, 16 [#allocation1]
        %v581 = vld [vmem:[%s580] sm:$0xff]
        %v582 = vmul.f32 %v581, %v545
        %583 = vadd.xlane.f32.xlu0 %v582
        %v584 = vpop.xlane.xlu0 %583
        %v585 = vsub.f32 %v579, %v584
        %v586 = vmul.f32 %v585, %v552
        %v587 = vsel %vm543, %v586, 0.0
        %v588 = vadd.f32 %v581, %v587
        %s589 = scalar_lea.vmem %s112, 16 [#allocation1]
        %590 = vst [vmem:[%s589] sm:$0xff] %v588
        %s591 = scalar_lea.vmem %s104, 24 [#allocation0]
        %v592 = vld [vmem:[%s591] sm:$0xff]
        %s593 = scalar_lea.vmem %s112, 24 [#allocation1]
        %v594 = vld [vmem:[%s593] sm:$0xff]
        %v595 = vmul.f32 %v594, %v545
        %596 = vadd.xlane.f32.xlu0 %v595
        %v597 = vpop.xlane.xlu0 %596
        %v598 = vsub.f32 %v592, %v597
        %v599 = vmul.f32 %v598, %v552
        %v600 = vsel %vm543, %v599, 0.0
        %v601 = vadd.f32 %v594, %v600
        %s602 = scalar_lea.vmem %s112, 24 [#allocation1]
        %603 = vst [vmem:[%s602] sm:$0xff] %v601
        %vm604 = vcmask 72768
        %s605 = scalar_lea.vmem %s112, 8 [#allocation1]
        %v606 = vld [vmem:[%s605] ss:$0 sm:$0xff]
        %s607 = scalar_lea.vmem %s104, 8 [#allocation0]
        %v608 = vld [vmem:[%s607] ss:$0 sm:$0xff]
        %v609 = vmul.f32 %v606, %v606
        %610 = vadd.xlane.f32.xlu0 %v609
        %v611 = vpop.xlane.xlu0 %610
        %v612 = vsub.f32 %v608, %v611
        %v613 = vrsqrt.pop %v612
        %s614 = scalar_lea.vmem %s104, 8 [#allocation0]
        %v615 = vld [vmem:[%s614] sm:$0xff]
        %s616 = scalar_lea.vmem %s112, 8 [#allocation1]
        %v617 = vld [vmem:[%s616] sm:$0xff]
        %v618 = vmul.f32 %v617, %v606
        %619 = vadd.xlane.f32.xlu0 %v618
        %v620 = vpop.xlane.xlu0 %619
        %v621 = vsub.f32 %v615, %v620
        %v622 = vmul.f32 %v621, %v613
        %v623 = vsel %vm604, %v622, 0.0
        %v624 = vadd.f32 %v617, %v623
        %s625 = scalar_lea.vmem %s112, 8 [#allocation1]
        %626 = vst [vmem:[%s625] sm:$0xff] %v624
        %s627 = scalar_lea.vmem %s104, 16 [#allocation0]
        %v628 = vld [vmem:[%s627] sm:$0xff]
        %s629 = scalar_lea.vmem %s112, 16 [#allocation1]
        %v630 = vld [vmem:[%s629] sm:$0xff]
        %v631 = vmul.f32 %v630, %v606
        %632 = vadd.xlane.f32.xlu0 %v631
        %v633 = vpop.xlane.xlu0 %632
        %v634 = vsub.f32 %v628, %v633
        %v635 = vmul.f32 %v634, %v613
        %v636 = vsel %vm604, %v635, 0.0
        %v637 = vadd.f32 %v630, %v636
        %s638 = scalar_lea.vmem %s112, 16 [#allocation1]
        %639 = vst [vmem:[%s638] sm:$0xff] %v637
        %s640 = scalar_lea.vmem %s104, 24 [#allocation0]
        %v641 = vld [vmem:[%s640] sm:$0xff]
        %s642 = scalar_lea.vmem %s112, 24 [#allocation1]
        %v643 = vld [vmem:[%s642] sm:$0xff]
        %v644 = vmul.f32 %v643, %v606
        %645 = vadd.xlane.f32.xlu0 %v644
        %v646 = vpop.xlane.xlu0 %645
        %v647 = vsub.f32 %v641, %v646
        %v648 = vmul.f32 %v647, %v613
        %v649 = vsel %vm604, %v648, 0.0
        %v650 = vadd.f32 %v643, %v649
        %s651 = scalar_lea.vmem %s112, 24 [#allocation1]
        %652 = vst [vmem:[%s651] sm:$0xff] %v650
        %vm653 = vcmask 80968
        %s654 = scalar_lea.vmem %s112, 9 [#allocation1]
        %v655 = vld [vmem:[%s654] ss:$0 sm:$0xff]
        %s656 = scalar_lea.vmem %s104, 9 [#allocation0]
        %v657 = vld [vmem:[%s656] ss:$0 sm:$0xff]
        %v658 = vmul.f32 %v655, %v655
        %659 = vadd.xlane.f32.xlu0 %v658
        %v660 = vpop.xlane.xlu0 %659
        %v661 = vsub.f32 %v657, %v660
        %v662 = vrsqrt.pop %v661
        %s663 = scalar_lea.vmem %s104, 8 [#allocation0]
        %v664 = vld [vmem:[%s663] sm:$0xff]
        %s665 = scalar_lea.vmem %s112, 8 [#allocation1]
        %v666 = vld [vmem:[%s665] sm:$0xff]
        %v667 = vmul.f32 %v666, %v655
        %668 = vadd.xlane.f32.xlu0 %v667
        %v669 = vpop.xlane.xlu0 %668
        %v670 = vsub.f32 %v664, %v669
        %v671 = vmul.f32 %v670, %v662
        %vm672 = vcmask 1047553
        %vm673 = vmand %vm653, %vm672
        %v674 = vsel %vm673, %v671, 0.0
        %v675 = vadd.f32 %v666, %v674
        %s676 = scalar_lea.vmem %s112, 8 [#allocation1]
        %677 = vst [vmem:[%s676] sm:$0xff] %v675
        %s678 = scalar_lea.vmem %s104, 16 [#allocation0]
        %v679 = vld [vmem:[%s678] sm:$0xff]
        %s680 = scalar_lea.vmem %s112, 16 [#allocation1]
        %v681 = vld [vmem:[%s680] sm:$0xff]
        %v682 = vmul.f32 %v681, %v655
        %683 = vadd.xlane.f32.xlu0 %v682
        %v684 = vpop.xlane.xlu0 %683
        %v685 = vsub.f32 %v679, %v684
        %v686 = vmul.f32 %v685, %v662
        %v687 = vsel %vm653, %v686, 0.0
        %v688 = vadd.f32 %v681, %v687
        %s689 = scalar_lea.vmem %s112, 16 [#allocation1]
        %690 = vst [vmem:[%s689] sm:$0xff] %v688
        %s691 = scalar_lea.vmem %s104, 24 [#allocation0]
        %v692 = vld [vmem:[%s691] sm:$0xff]
        %s693 = scalar_lea.vmem %s112, 24 [#allocation1]
        %v694 = vld [vmem:[%s693] sm:$0xff]
        %v695 = vmul.f32 %v694, %v655
        %696 = vadd.xlane.f32.xlu0 %v695
        %v697 = vpop.xlane.xlu0 %696
        %v698 = vsub.f32 %v692, %v697
        %v699 = vmul.f32 %v698, %v662
        %v700 = vsel %vm653, %v699, 0.0
        %v701 = vadd.f32 %v694, %v700
        %s702 = scalar_lea.vmem %s112, 24 [#allocation1]
        %703 = vst [vmem:[%s702] sm:$0xff] %v701
        %vm704 = vcmask 89168
        %s705 = scalar_lea.vmem %s112, 10 [#allocation1]
        %v706 = vld [vmem:[%s705] ss:$0 sm:$0xff]
        %s707 = scalar_lea.vmem %s104, 10 [#allocation0]
        %v708 = vld [vmem:[%s707] ss:$0 sm:$0xff]
        %v709 = vmul.f32 %v706, %v706
        %710 = vadd.xlane.f32.xlu0 %v709
        %v711 = vpop.xlane.xlu0 %710
        %v712 = vsub.f32 %v708, %v711
        %v713 = vrsqrt.pop %v712
        %s714 = scalar_lea.vmem %s104, 8 [#allocation0]
        %v715 = vld [vmem:[%s714] sm:$0xff]
        %s716 = scalar_lea.vmem %s112, 8 [#allocation1]
        %v717 = vld [vmem:[%s716] sm:$0xff]
        %v718 = vmul.f32 %v717, %v706
        %719 = vadd.xlane.f32.xlu0 %v718
        %v720 = vpop.xlane.xlu0 %719
        %v721 = vsub.f32 %v715, %v720
        %v722 = vmul.f32 %v721, %v713
        %vm723 = vcmask 1047554
        %vm724 = vmand %vm704, %vm723
        %v725 = vsel %vm724, %v722, 0.0
        %v726 = vadd.f32 %v717, %v725
        %s727 = scalar_lea.vmem %s112, 8 [#allocation1]
        %728 = vst [vmem:[%s727] sm:$0xff] %v726
        %s729 = scalar_lea.vmem %s104, 16 [#allocation0]
        %v730 = vld [vmem:[%s729] sm:$0xff]
        %s731 = scalar_lea.vmem %s112, 16 [#allocation1]
        %v732 = vld [vmem:[%s731] sm:$0xff]
        %v733 = vmul.f32 %v732, %v706
        %734 = vadd.xlane.f32.xlu0 %v733
        %v735 = vpop.xlane.xlu0 %734
        %v736 = vsub.f32 %v730, %v735
        %v737 = vmul.f32 %v736, %v713
        %v738 = vsel %vm704, %v737, 0.0
        %v739 = vadd.f32 %v732, %v738
        %s740 = scalar_lea.vmem %s112, 16 [#allocation1]
        %741 = vst [vmem:[%s740] sm:$0xff] %v739
        %s742 = scalar_lea.vmem %s104, 24 [#allocation0]
        %v743 = vld [vmem:[%s742] sm:$0xff]
        %s744 = scalar_lea.vmem %s112, 24 [#allocation1]
        %v745 = vld [vmem:[%s744] sm:$0xff]
        %v746 = vmul.f32 %v745, %v706
        %747 = vadd.xlane.f32.xlu0 %v746
        %v748 = vpop.xlane.xlu0 %747
        %v749 = vsub.f32 %v743, %v748
        %v750 = vmul.f32 %v749, %v713
        %v751 = vsel %vm704, %v750, 0.0
        %v752 = vadd.f32 %v745, %v751
        %s753 = scalar_lea.vmem %s112, 24 [#allocation1]
        %754 = vst [vmem:[%s753] sm:$0xff] %v752
        %vm755 = vcmask 97368
        %s756 = scalar_lea.vmem %s112, 11 [#allocation1]
        %v757 = vld [vmem:[%s756] ss:$0 sm:$0xff]
        %s758 = scalar_lea.vmem %s104, 11 [#allocation0]
        %v759 = vld [vmem:[%s758] ss:$0 sm:$0xff]
        %v760 = vmul.f32 %v757, %v757
        %761 = vadd.xlane.f32.xlu0 %v760
        %v762 = vpop.xlane.xlu0 %761
        %v763 = vsub.f32 %v759, %v762
        %v764 = vrsqrt.pop %v763
        %s765 = scalar_lea.vmem %s104, 8 [#allocation0]
        %v766 = vld [vmem:[%s765] sm:$0xff]
        %s767 = scalar_lea.vmem %s112, 8 [#allocation1]
        %v768 = vld [vmem:[%s767] sm:$0xff]
        %v769 = vmul.f32 %v768, %v757
        %770 = vadd.xlane.f32.xlu0 %v769
        %v771 = vpop.xlane.xlu0 %770
        %v772 = vsub.f32 %v766, %v771
        %v773 = vmul.f32 %v772, %v764
        %vm774 = vcmask 1047555
        %vm775 = vmand %vm755, %vm774
        %v776 = vsel %vm775, %v773, 0.0
        %v777 = vadd.f32 %v768, %v776
        %s778 = scalar_lea.vmem %s112, 8 [#allocation1]
        %779 = vst [vmem:[%s778] sm:$0xff] %v777
        %s780 = scalar_lea.vmem %s104, 16 [#allocation0]
        %v781 = vld [vmem:[%s780] sm:$0xff]
        %s782 = scalar_lea.vmem %s112, 16 [#allocation1]
        %v783 = vld [vmem:[%s782] sm:$0xff]
        %v784 = vmul.f32 %v783, %v757
        %785 = vadd.xlane.f32.xlu0 %v784
        %v786 = vpop.xlane.xlu0 %785
        %v787 = vsub.f32 %v781, %v786
        %v788 = vmul.f32 %v787, %v764
        %v789 = vsel %vm755, %v788, 0.0
        %v790 = vadd.f32 %v783, %v789
        %s791 = scalar_lea.vmem %s112, 16 [#allocation1]
        %792 = vst [vmem:[%s791] sm:$0xff] %v790
        %s793 = scalar_lea.vmem %s104, 24 [#allocation0]
        %v794 = vld [vmem:[%s793] sm:$0xff]
        %s795 = scalar_lea.vmem %s112, 24 [#allocation1]
        %v796 = vld [vmem:[%s795] sm:$0xff]
        %v797 = vmul.f32 %v796, %v757
        %798 = vadd.xlane.f32.xlu0 %v797
        %v799 = vpop.xlane.xlu0 %798
        %v800 = vsub.f32 %v794, %v799
        %v801 = vmul.f32 %v800, %v764
        %v802 = vsel %vm755, %v801, 0.0
        %v803 = vadd.f32 %v796, %v802
        %s804 = scalar_lea.vmem %s112, 24 [#allocation1]
        %805 = vst [vmem:[%s804] sm:$0xff] %v803
        %vm806 = vcmask 105568
        %s807 = scalar_lea.vmem %s112, 12 [#allocation1]
        %v808 = vld [vmem:[%s807] ss:$0 sm:$0xff]
        %s809 = scalar_lea.vmem %s104, 12 [#allocation0]
        %v810 = vld [vmem:[%s809] ss:$0 sm:$0xff]
        %v811 = vmul.f32 %v808, %v808
        %812 = vadd.xlane.f32.xlu0 %v811
        %v813 = vpop.xlane.xlu0 %812
        %v814 = vsub.f32 %v810, %v813
        %v815 = vrsqrt.pop %v814
        %s816 = scalar_lea.vmem %s104, 8 [#allocation0]
        %v817 = vld [vmem:[%s816] sm:$0xff]
        %s818 = scalar_lea.vmem %s112, 8 [#allocation1]
        %v819 = vld [vmem:[%s818] sm:$0xff]
        %v820 = vmul.f32 %v819, %v808
        %821 = vadd.xlane.f32.xlu0 %v820
        %v822 = vpop.xlane.xlu0 %821
        %v823 = vsub.f32 %v817, %v822
        %v824 = vmul.f32 %v823, %v815
        %vm825 = vcmask 1047556
        %vm826 = vmand %vm806, %vm825
        %v827 = vsel %vm826, %v824, 0.0
        %v828 = vadd.f32 %v819, %v827
        %s829 = scalar_lea.vmem %s112, 8 [#allocation1]
        %830 = vst [vmem:[%s829] sm:$0xff] %v828
        %s831 = scalar_lea.vmem %s104, 16 [#allocation0]
        %v832 = vld [vmem:[%s831] sm:$0xff]
        %s833 = scalar_lea.vmem %s112, 16 [#allocation1]
        %v834 = vld [vmem:[%s833] sm:$0xff]
        %v835 = vmul.f32 %v834, %v808
        %836 = vadd.xlane.f32.xlu0 %v835
        %v837 = vpop.xlane.xlu0 %836
        %v838 = vsub.f32 %v832, %v837
        %v839 = vmul.f32 %v838, %v815
        %v840 = vsel %vm806, %v839, 0.0
        %v841 = vadd.f32 %v834, %v840
        %s842 = scalar_lea.vmem %s112, 16 [#allocation1]
        %843 = vst [vmem:[%s842] sm:$0xff] %v841
        %s844 = scalar_lea.vmem %s104, 24 [#allocation0]
        %v845 = vld [vmem:[%s844] sm:$0xff]
        %s846 = scalar_lea.vmem %s112, 24 [#allocation1]
        %v847 = vld [vmem:[%s846] sm:$0xff]
        %v848 = vmul.f32 %v847, %v808
        %849 = vadd.xlane.f32.xlu0 %v848
        %v850 = vpop.xlane.xlu0 %849
        %v851 = vsub.f32 %v845, %v850
        %v852 = vmul.f32 %v851, %v815
        %v853 = vsel %vm806, %v852, 0.0
        %v854 = vadd.f32 %v847, %v853
        %s855 = scalar_lea.vmem %s112, 24 [#allocation1]
        %856 = vst [vmem:[%s855] sm:$0xff] %v854
        %vm857 = vcmask 113768
        %s858 = scalar_lea.vmem %s112, 13 [#allocation1]
        %v859 = vld [vmem:[%s858] ss:$0 sm:$0xff]
        %s860 = scalar_lea.vmem %s104, 13 [#allocation0]
        %v861 = vld [vmem:[%s860] ss:$0 sm:$0xff]
        %v862 = vmul.f32 %v859, %v859
        %863 = vadd.xlane.f32.xlu0 %v862
        %v864 = vpop.xlane.xlu0 %863
        %v865 = vsub.f32 %v861, %v864
        %v866 = vrsqrt.pop %v865
        %s867 = scalar_lea.vmem %s104, 8 [#allocation0]
        %v868 = vld [vmem:[%s867] sm:$0xff]
        %s869 = scalar_lea.vmem %s112, 8 [#allocation1]
        %v870 = vld [vmem:[%s869] sm:$0xff]
        %v871 = vmul.f32 %v870, %v859
        %872 = vadd.xlane.f32.xlu0 %v871
        %v873 = vpop.xlane.xlu0 %872
        %v874 = vsub.f32 %v868, %v873
        %v875 = vmul.f32 %v874, %v866
        %vm876 = vcmask 1047557
        %vm877 = vmand %vm857, %vm876
        %v878 = vsel %vm877, %v875, 0.0
        %v879 = vadd.f32 %v870, %v878
        %s880 = scalar_lea.vmem %s112, 8 [#allocation1]
        %881 = vst [vmem:[%s880] sm:$0xff] %v879
        %s882 = scalar_lea.vmem %s104, 16 [#allocation0]
        %v883 = vld [vmem:[%s882] sm:$0xff]
        %s884 = scalar_lea.vmem %s112, 16 [#allocation1]
        %v885 = vld [vmem:[%s884] sm:$0xff]
        %v886 = vmul.f32 %v885, %v859
        %887 = vadd.xlane.f32.xlu0 %v886
        %v888 = vpop.xlane.xlu0 %887
        %v889 = vsub.f32 %v883, %v888
        %v890 = vmul.f32 %v889, %v866
        %v891 = vsel %vm857, %v890, 0.0
        %v892 = vadd.f32 %v885, %v891
        %s893 = scalar_lea.vmem %s112, 16 [#allocation1]
        %894 = vst [vmem:[%s893] sm:$0xff] %v892
        %s895 = scalar_lea.vmem %s104, 24 [#allocation0]
        %v896 = vld [vmem:[%s895] sm:$0xff]
        %s897 = scalar_lea.vmem %s112, 24 [#allocation1]
        %v898 = vld [vmem:[%s897] sm:$0xff]
        %v899 = vmul.f32 %v898, %v859
        %900 = vadd.xlane.f32.xlu0 %v899
        %v901 = vpop.xlane.xlu0 %900
        %v902 = vsub.f32 %v896, %v901
        %v903 = vmul.f32 %v902, %v866
        %v904 = vsel %vm857, %v903, 0.0
        %v905 = vadd.f32 %v898, %v904
        %s906 = scalar_lea.vmem %s112, 24 [#allocation1]
        %907 = vst [vmem:[%s906] sm:$0xff] %v905
        %vm908 = vcmask 121968
        %s909 = scalar_lea.vmem %s112, 14 [#allocation1]
        %v910 = vld [vmem:[%s909] ss:$0 sm:$0xff]
        %s911 = scalar_lea.vmem %s104, 14 [#allocation0]
        %v912 = vld [vmem:[%s911] ss:$0 sm:$0xff]
        %v913 = vmul.f32 %v910, %v910
        %914 = vadd.xlane.f32.xlu0 %v913
        %v915 = vpop.xlane.xlu0 %914
        %v916 = vsub.f32 %v912, %v915
        %v917 = vrsqrt.pop %v916
        %s918 = scalar_lea.vmem %s104, 8 [#allocation0]
        %v919 = vld [vmem:[%s918] sm:$0xff]
        %s920 = scalar_lea.vmem %s112, 8 [#allocation1]
        %v921 = vld [vmem:[%s920] sm:$0xff]
        %v922 = vmul.f32 %v921, %v910
        %923 = vadd.xlane.f32.xlu0 %v922
        %v924 = vpop.xlane.xlu0 %923
        %v925 = vsub.f32 %v919, %v924
        %v926 = vmul.f32 %v925, %v917
        %vm927 = vcmask 1047558
        %vm928 = vmand %vm908, %vm927
        %v929 = vsel %vm928, %v926, 0.0
        %v930 = vadd.f32 %v921, %v929
        %s931 = scalar_lea.vmem %s112, 8 [#allocation1]
        %932 = vst [vmem:[%s931] sm:$0xff] %v930
        %s933 = scalar_lea.vmem %s104, 16 [#allocation0]
        %v934 = vld [vmem:[%s933] sm:$0xff]
        %s935 = scalar_lea.vmem %s112, 16 [#allocation1]
        %v936 = vld [vmem:[%s935] sm:$0xff]
        %v937 = vmul.f32 %v936, %v910
        %938 = vadd.xlane.f32.xlu0 %v937
        %v939 = vpop.xlane.xlu0 %938
        %v940 = vsub.f32 %v934, %v939
        %v941 = vmul.f32 %v940, %v917
        %v942 = vsel %vm908, %v941, 0.0
        %v943 = vadd.f32 %v936, %v942
        %s944 = scalar_lea.vmem %s112, 16 [#allocation1]
        %945 = vst [vmem:[%s944] sm:$0xff] %v943
        %s946 = scalar_lea.vmem %s104, 24 [#allocation0]
        %v947 = vld [vmem:[%s946] sm:$0xff]
        %s948 = scalar_lea.vmem %s112, 24 [#allocation1]
        %v949 = vld [vmem:[%s948] sm:$0xff]
        %v950 = vmul.f32 %v949, %v910
        %951 = vadd.xlane.f32.xlu0 %v950
        %v952 = vpop.xlane.xlu0 %951
        %v953 = vsub.f32 %v947, %v952
        %v954 = vmul.f32 %v953, %v917
        %v955 = vsel %vm908, %v954, 0.0
        %v956 = vadd.f32 %v949, %v955
        %s957 = scalar_lea.vmem %s112, 24 [#allocation1]
        %958 = vst [vmem:[%s957] sm:$0xff] %v956
        %vm959 = vcmask 130168
        %s960 = scalar_lea.vmem %s112, 15 [#allocation1]
        %v961 = vld [vmem:[%s960] ss:$0 sm:$0xff]
        %s962 = scalar_lea.vmem %s104, 15 [#allocation0]
        %v963 = vld [vmem:[%s962] ss:$0 sm:$0xff]
        %v964 = vmul.f32 %v961, %v961
        %965 = vadd.xlane.f32.xlu0 %v964
        %v966 = vpop.xlane.xlu0 %965
        %v967 = vsub.f32 %v963, %v966
        %v968 = vrsqrt.pop %v967
        %s969 = scalar_lea.vmem %s104, 8 [#allocation0]
        %v970 = vld [vmem:[%s969] sm:$0xff]
        %s971 = scalar_lea.vmem %s112, 8 [#allocation1]
        %v972 = vld [vmem:[%s971] sm:$0xff]
        %v973 = vmul.f32 %v972, %v961
        %974 = vadd.xlane.f32.xlu0 %v973
        %v975 = vpop.xlane.xlu0 %974
        %v976 = vsub.f32 %v970, %v975
        %v977 = vmul.f32 %v976, %v968
        %vm978 = vcmask 1047559
        %vm979 = vmand %vm959, %vm978
        %v980 = vsel %vm979, %v977, 0.0
        %v981 = vadd.f32 %v972, %v980
        %s982 = scalar_lea.vmem %s112, 8 [#allocation1]
        %983 = vst [vmem:[%s982] sm:$0xff] %v981
        %s984 = scalar_lea.vmem %s104, 16 [#allocation0]
        %v985 = vld [vmem:[%s984] sm:$0xff]
        %s986 = scalar_lea.vmem %s112, 16 [#allocation1]
        %v987 = vld [vmem:[%s986] sm:$0xff]
        %v988 = vmul.f32 %v987, %v961
        %989 = vadd.xlane.f32.xlu0 %v988
        %v990 = vpop.xlane.xlu0 %989
        %v991 = vsub.f32 %v985, %v990
        %v992 = vmul.f32 %v991, %v968
        %v993 = vsel %vm959, %v992, 0.0
        %v994 = vadd.f32 %v987, %v993
        %s995 = scalar_lea.vmem %s112, 16 [#allocation1]
        %996 = vst [vmem:[%s995] sm:$0xff] %v994
        %s997 = scalar_lea.vmem %s104, 24 [#allocation0]
        %v998 = vld [vmem:[%s997] sm:$0xff]
        %s999 = scalar_lea.vmem %s112, 24 [#allocation1]
        %v1000 = vld [vmem:[%s999] sm:$0xff]
        %v1001 = vmul.f32 %v1000, %v961
        %1002 = vadd.xlane.f32.xlu0 %v1001
        %v1003 = vpop.xlane.xlu0 %1002
        %v1004 = vsub.f32 %v998, %v1003
        %v1005 = vmul.f32 %v1004, %v968
        %v1006 = vsel %vm959, %v1005, 0.0
        %v1007 = vadd.f32 %v1000, %v1006
        %s1008 = scalar_lea.vmem %s112, 24 [#allocation1]
        %1009 = vst [vmem:[%s1008] sm:$0xff] %v1007
        %vm1010 = vcmask 138368
        %s1011 = scalar_lea.vmem %s112, 16 [#allocation1]
        %v1012 = vld [vmem:[%s1011] ss:$0 sm:$0xff]
        %s1013 = scalar_lea.vmem %s104, 16 [#allocation0]
        %v1014 = vld [vmem:[%s1013] ss:$0 sm:$0xff]
        %v1015 = vmul.f32 %v1012, %v1012
        %1016 = vadd.xlane.f32.xlu0 %v1015
        %v1017 = vpop.xlane.xlu0 %1016
        %v1018 = vsub.f32 %v1014, %v1017
        %v1019 = vrsqrt.pop %v1018
        %s1020 = scalar_lea.vmem %s104, 16 [#allocation0]
        %v1021 = vld [vmem:[%s1020] sm:$0xff]
        %s1022 = scalar_lea.vmem %s112, 16 [#allocation1]
        %v1023 = vld [vmem:[%s1022] sm:$0xff]
        %v1024 = vmul.f32 %v1023, %v1012
        %1025 = vadd.xlane.f32.xlu0 %v1024
        %v1026 = vpop.xlane.xlu0 %1025
        %v1027 = vsub.f32 %v1021, %v1026
        %v1028 = vmul.f32 %v1027, %v1019
        %v1029 = vsel %vm1010, %v1028, 0.0
        %v1030 = vadd.f32 %v1023, %v1029
        %s1031 = scalar_lea.vmem %s112, 16 [#allocation1]
        %1032 = vst [vmem:[%s1031] sm:$0xff] %v1030
        %s1033 = scalar_lea.vmem %s104, 24 [#allocation0]
        %v1034 = vld [vmem:[%s1033] sm:$0xff]
        %s1035 = scalar_lea.vmem %s112, 24 [#allocation1]
        %v1036 = vld [vmem:[%s1035] sm:$0xff]
        %v1037 = vmul.f32 %v1036, %v1012
        %1038 = vadd.xlane.f32.xlu0 %v1037
        %v1039 = vpop.xlane.xlu0 %1038
        %v1040 = vsub.f32 %v1034, %v1039
        %v1041 = vmul.f32 %v1040, %v1019
        %v1042 = vsel %vm1010, %v1041, 0.0
        %v1043 = vadd.f32 %v1036, %v1042
        %s1044 = scalar_lea.vmem %s112, 24 [#allocation1]
        %1045 = vst [vmem:[%s1044] sm:$0xff] %v1043
        %vm1046 = vcmask 146568
        %s1047 = scalar_lea.vmem %s112, 17 [#allocation1]
        %v1048 = vld [vmem:[%s1047] ss:$0 sm:$0xff]
        %s1049 = scalar_lea.vmem %s104, 17 [#allocation0]
        %v1050 = vld [vmem:[%s1049] ss:$0 sm:$0xff]
        %v1051 = vmul.f32 %v1048, %v1048
        %1052 = vadd.xlane.f32.xlu0 %v1051
        %v1053 = vpop.xlane.xlu0 %1052
        %v1054 = vsub.f32 %v1050, %v1053
        %v1055 = vrsqrt.pop %v1054
        %s1056 = scalar_lea.vmem %s104, 16 [#allocation0]
        %v1057 = vld [vmem:[%s1056] sm:$0xff]
        %s1058 = scalar_lea.vmem %s112, 16 [#allocation1]
        %v1059 = vld [vmem:[%s1058] sm:$0xff]
        %v1060 = vmul.f32 %v1059, %v1048
        %1061 = vadd.xlane.f32.xlu0 %v1060
        %v1062 = vpop.xlane.xlu0 %1061
        %v1063 = vsub.f32 %v1057, %v1062
        %v1064 = vmul.f32 %v1063, %v1055
        %vm1065 = vcmask 1047553
        %vm1066 = vmand %vm1046, %vm1065
        %v1067 = vsel %vm1066, %v1064, 0.0
        %v1068 = vadd.f32 %v1059, %v1067
        %s1069 = scalar_lea.vmem %s112, 16 [#allocation1]
        %1070 = vst [vmem:[%s1069] sm:$0xff] %v1068
        %s1071 = scalar_lea.vmem %s104, 24 [#allocation0]
        %v1072 = vld [vmem:[%s1071] sm:$0xff]
        %s1073 = scalar_lea.vmem %s112, 24 [#allocation1]
        %v1074 = vld [vmem:[%s1073] sm:$0xff]
        %v1075 = vmul.f32 %v1074, %v1048
        %1076 = vadd.xlane.f32.xlu0 %v1075
        %v1077 = vpop.xlane.xlu0 %1076
        %v1078 = vsub.f32 %v1072, %v1077
        %v1079 = vmul.f32 %v1078, %v1055
        %v1080 = vsel %vm1046, %v1079, 0.0
        %v1081 = vadd.f32 %v1074, %v1080
        %s1082 = scalar_lea.vmem %s112, 24 [#allocation1]
        %1083 = vst [vmem:[%s1082] sm:$0xff] %v1081
        %vm1084 = vcmask 154768
        %s1085 = scalar_lea.vmem %s112, 18 [#allocation1]
        %v1086 = vld [vmem:[%s1085] ss:$0 sm:$0xff]
        %s1087 = scalar_lea.vmem %s104, 18 [#allocation0]
        %v1088 = vld [vmem:[%s1087] ss:$0 sm:$0xff]
        %v1089 = vmul.f32 %v1086, %v1086
        %1090 = vadd.xlane.f32.xlu0 %v1089
        %v1091 = vpop.xlane.xlu0 %1090
        %v1092 = vsub.f32 %v1088, %v1091
        %v1093 = vrsqrt.pop %v1092
        %s1094 = scalar_lea.vmem %s104, 16 [#allocation0]
        %v1095 = vld [vmem:[%s1094] sm:$0xff]
        %s1096 = scalar_lea.vmem %s112, 16 [#allocation1]
        %v1097 = vld [vmem:[%s1096] sm:$0xff]
        %v1098 = vmul.f32 %v1097, %v1086
        %1099 = vadd.xlane.f32.xlu0 %v1098
        %v1100 = vpop.xlane.xlu0 %1099
        %v1101 = vsub.f32 %v1095, %v1100
        %v1102 = vmul.f32 %v1101, %v1093
        %vm1103 = vcmask 1047554
        %vm1104 = vmand %vm1084, %vm1103
        %v1105 = vsel %vm1104, %v1102, 0.0
        %v1106 = vadd.f32 %v1097, %v1105
        %s1107 = scalar_lea.vmem %s112, 16 [#allocation1]
        %1108 = vst [vmem:[%s1107] sm:$0xff] %v1106
        %s1109 = scalar_lea.vmem %s104, 24 [#allocation0]
        %v1110 = vld [vmem:[%s1109] sm:$0xff]
        %s1111 = scalar_lea.vmem %s112, 24 [#allocation1]
        %v1112 = vld [vmem:[%s1111] sm:$0xff]
        %v1113 = vmul.f32 %v1112, %v1086
        %1114 = vadd.xlane.f32.xlu0 %v1113
        %v1115 = vpop.xlane.xlu0 %1114
        %v1116 = vsub.f32 %v1110, %v1115
        %v1117 = vmul.f32 %v1116, %v1093
        %v1118 = vsel %vm1084, %v1117, 0.0
        %v1119 = vadd.f32 %v1112, %v1118
        %s1120 = scalar_lea.vmem %s112, 24 [#allocation1]
        %1121 = vst [vmem:[%s1120] sm:$0xff] %v1119
        %vm1122 = vcmask 162968
        %s1123 = scalar_lea.vmem %s112, 19 [#allocation1]
        %v1124 = vld [vmem:[%s1123] ss:$0 sm:$0xff]
        %s1125 = scalar_lea.vmem %s104, 19 [#allocation0]
        %v1126 = vld [vmem:[%s1125] ss:$0 sm:$0xff]
        %v1127 = vmul.f32 %v1124, %v1124
        %1128 = vadd.xlane.f32.xlu0 %v1127
        %v1129 = vpop.xlane.xlu0 %1128
        %v1130 = vsub.f32 %v1126, %v1129
        %v1131 = vrsqrt.pop %v1130
        %s1132 = scalar_lea.vmem %s104, 16 [#allocation0]
        %v1133 = vld [vmem:[%s1132] sm:$0xff]
        %s1134 = scalar_lea.vmem %s112, 16 [#allocation1]
        %v1135 = vld [vmem:[%s1134] sm:$0xff]
        %v1136 = vmul.f32 %v1135, %v1124
        %1137 = vadd.xlane.f32.xlu0 %v1136
        %v1138 = vpop.xlane.xlu0 %1137
        %v1139 = vsub.f32 %v1133, %v1138
        %v1140 = vmul.f32 %v1139, %v1131
        %vm1141 = vcmask 1047555
        %vm1142 = vmand %vm1122, %vm1141
        %v1143 = vsel %vm1142, %v1140, 0.0
        %v1144 = vadd.f32 %v1135, %v1143
        %s1145 = scalar_lea.vmem %s112, 16 [#allocation1]
        %1146 = vst [vmem:[%s1145] sm:$0xff] %v1144
        %s1147 = scalar_lea.vmem %s104, 24 [#allocation0]
        %v1148 = vld [vmem:[%s1147] sm:$0xff]
        %s1149 = scalar_lea.vmem %s112, 24 [#allocation1]
        %v1150 = vld [vmem:[%s1149] sm:$0xff]
        %v1151 = vmul.f32 %v1150, %v1124
        %1152 = vadd.xlane.f32.xlu0 %v1151
        %v1153 = vpop.xlane.xlu0 %1152
        %v1154 = vsub.f32 %v1148, %v1153
        %v1155 = vmul.f32 %v1154, %v1131
        %v1156 = vsel %vm1122, %v1155, 0.0
        %v1157 = vadd.f32 %v1150, %v1156
        %s1158 = scalar_lea.vmem %s112, 24 [#allocation1]
        %1159 = vst [vmem:[%s1158] sm:$0xff] %v1157
        %vm1160 = vcmask 171168
        %s1161 = scalar_lea.vmem %s112, 20 [#allocation1]
        %v1162 = vld [vmem:[%s1161] ss:$0 sm:$0xff]
        %s1163 = scalar_lea.vmem %s104, 20 [#allocation0]
        %v1164 = vld [vmem:[%s1163] ss:$0 sm:$0xff]
        %v1165 = vmul.f32 %v1162, %v1162
        %1166 = vadd.xlane.f32.xlu0 %v1165
        %v1167 = vpop.xlane.xlu0 %1166
        %v1168 = vsub.f32 %v1164, %v1167
        %v1169 = vrsqrt.pop %v1168
        %s1170 = scalar_lea.vmem %s104, 16 [#allocation0]
        %v1171 = vld [vmem:[%s1170] sm:$0xff]
        %s1172 = scalar_lea.vmem %s112, 16 [#allocation1]
        %v1173 = vld [vmem:[%s1172] sm:$0xff]
        %v1174 = vmul.f32 %v1173, %v1162
        %1175 = vadd.xlane.f32.xlu0 %v1174
        %v1176 = vpop.xlane.xlu0 %1175
        %v1177 = vsub.f32 %v1171, %v1176
        %v1178 = vmul.f32 %v1177, %v1169
        %vm1179 = vcmask 1047556
        %vm1180 = vmand %vm1160, %vm1179
        %v1181 = vsel %vm1180, %v1178, 0.0
        %v1182 = vadd.f32 %v1173, %v1181
        %s1183 = scalar_lea.vmem %s112, 16 [#allocation1]
        %1184 = vst [vmem:[%s1183] sm:$0xff] %v1182
        %s1185 = scalar_lea.vmem %s104, 24 [#allocation0]
        %v1186 = vld [vmem:[%s1185] sm:$0xff]
        %s1187 = scalar_lea.vmem %s112, 24 [#allocation1]
        %v1188 = vld [vmem:[%s1187] sm:$0xff]
        %v1189 = vmul.f32 %v1188, %v1162
        %1190 = vadd.xlane.f32.xlu0 %v1189
        %v1191 = vpop.xlane.xlu0 %1190
        %v1192 = vsub.f32 %v1186, %v1191
        %v1193 = vmul.f32 %v1192, %v1169
        %v1194 = vsel %vm1160, %v1193, 0.0
        %v1195 = vadd.f32 %v1188, %v1194
        %s1196 = scalar_lea.vmem %s112, 24 [#allocation1]
        %1197 = vst [vmem:[%s1196] sm:$0xff] %v1195
        %vm1198 = vcmask 179368
        %s1199 = scalar_lea.vmem %s112, 21 [#allocation1]
        %v1200 = vld [vmem:[%s1199] ss:$0 sm:$0xff]
        %s1201 = scalar_lea.vmem %s104, 21 [#allocation0]
        %v1202 = vld [vmem:[%s1201] ss:$0 sm:$0xff]
        %v1203 = vmul.f32 %v1200, %v1200
        %1204 = vadd.xlane.f32.xlu0 %v1203
        %v1205 = vpop.xlane.xlu0 %1204
        %v1206 = vsub.f32 %v1202, %v1205
        %v1207 = vrsqrt.pop %v1206
        %s1208 = scalar_lea.vmem %s104, 16 [#allocation0]
        %v1209 = vld [vmem:[%s1208] sm:$0xff]
        %s1210 = scalar_lea.vmem %s112, 16 [#allocation1]
        %v1211 = vld [vmem:[%s1210] sm:$0xff]
        %v1212 = vmul.f32 %v1211, %v1200
        %1213 = vadd.xlane.f32.xlu0 %v1212
        %v1214 = vpop.xlane.xlu0 %1213
        %v1215 = vsub.f32 %v1209, %v1214
        %v1216 = vmul.f32 %v1215, %v1207
        %vm1217 = vcmask 1047557
        %vm1218 = vmand %vm1198, %vm1217
        %v1219 = vsel %vm1218, %v1216, 0.0
        %v1220 = vadd.f32 %v1211, %v1219
        %s1221 = scalar_lea.vmem %s112, 16 [#allocation1]
        %1222 = vst [vmem:[%s1221] sm:$0xff] %v1220
        %s1223 = scalar_lea.vmem %s104, 24 [#allocation0]
        %v1224 = vld [vmem:[%s1223] sm:$0xff]
        %s1225 = scalar_lea.vmem %s112, 24 [#allocation1]
        %v1226 = vld [vmem:[%s1225] sm:$0xff]
        %v1227 = vmul.f32 %v1226, %v1200
        %1228 = vadd.xlane.f32.xlu0 %v1227
        %v1229 = vpop.xlane.xlu0 %1228
        %v1230 = vsub.f32 %v1224, %v1229
        %v1231 = vmul.f32 %v1230, %v1207
        %v1232 = vsel %vm1198, %v1231, 0.0
        %v1233 = vadd.f32 %v1226, %v1232
        %s1234 = scalar_lea.vmem %s112, 24 [#allocation1]
        %1235 = vst [vmem:[%s1234] sm:$0xff] %v1233
        %vm1236 = vcmask 187568
        %s1237 = scalar_lea.vmem %s112, 22 [#allocation1]
        %v1238 = vld [vmem:[%s1237] ss:$0 sm:$0xff]
        %s1239 = scalar_lea.vmem %s104, 22 [#allocation0]
        %v1240 = vld [vmem:[%s1239] ss:$0 sm:$0xff]
        %v1241 = vmul.f32 %v1238, %v1238
        %1242 = vadd.xlane.f32.xlu0 %v1241
        %v1243 = vpop.xlane.xlu0 %1242
        %v1244 = vsub.f32 %v1240, %v1243
        %v1245 = vrsqrt.pop %v1244
        %s1246 = scalar_lea.vmem %s104, 16 [#allocation0]
        %v1247 = vld [vmem:[%s1246] sm:$0xff]
        %s1248 = scalar_lea.vmem %s112, 16 [#allocation1]
        %v1249 = vld [vmem:[%s1248] sm:$0xff]
        %v1250 = vmul.f32 %v1249, %v1238
        %1251 = vadd.xlane.f32.xlu0 %v1250
        %v1252 = vpop.xlane.xlu0 %1251
        %v1253 = vsub.f32 %v1247, %v1252
        %v1254 = vmul.f32 %v1253, %v1245
        %vm1255 = vcmask 1047558
        %vm1256 = vmand %vm1236, %vm1255
        %v1257 = vsel %vm1256, %v1254, 0.0
        %v1258 = vadd.f32 %v1249, %v1257
        %s1259 = scalar_lea.vmem %s112, 16 [#allocation1]
        %1260 = vst [vmem:[%s1259] sm:$0xff] %v1258
        %s1261 = scalar_lea.vmem %s104, 24 [#allocation0]
        %v1262 = vld [vmem:[%s1261] sm:$0xff]
        %s1263 = scalar_lea.vmem %s112, 24 [#allocation1]
        %v1264 = vld [vmem:[%s1263] sm:$0xff]
        %v1265 = vmul.f32 %v1264, %v1238
        %1266 = vadd.xlane.f32.xlu0 %v1265
        %v1267 = vpop.xlane.xlu0 %1266
        %v1268 = vsub.f32 %v1262, %v1267
        %v1269 = vmul.f32 %v1268, %v1245
        %v1270 = vsel %vm1236, %v1269, 0.0
        %v1271 = vadd.f32 %v1264, %v1270
        %s1272 = scalar_lea.vmem %s112, 24 [#allocation1]
        %1273 = vst [vmem:[%s1272] sm:$0xff] %v1271
        %vm1274 = vcmask 195768
        %s1275 = scalar_lea.vmem %s112, 23 [#allocation1]
        %v1276 = vld [vmem:[%s1275] ss:$0 sm:$0xff]
        %s1277 = scalar_lea.vmem %s104, 23 [#allocation0]
        %v1278 = vld [vmem:[%s1277] ss:$0 sm:$0xff]
        %v1279 = vmul.f32 %v1276, %v1276
        %1280 = vadd.xlane.f32.xlu0 %v1279
        %v1281 = vpop.xlane.xlu0 %1280
        %v1282 = vsub.f32 %v1278, %v1281
        %v1283 = vrsqrt.pop %v1282
        %s1284 = scalar_lea.vmem %s104, 16 [#allocation0]
        %v1285 = vld [vmem:[%s1284] sm:$0xff]
        %s1286 = scalar_lea.vmem %s112, 16 [#allocation1]
        %v1287 = vld [vmem:[%s1286] sm:$0xff]
        %v1288 = vmul.f32 %v1287, %v1276
        %1289 = vadd.xlane.f32.xlu0 %v1288
        %v1290 = vpop.xlane.xlu0 %1289
        %v1291 = vsub.f32 %v1285, %v1290
        %v1292 = vmul.f32 %v1291, %v1283
        %vm1293 = vcmask 1047559
        %vm1294 = vmand %vm1274, %vm1293
        %v1295 = vsel %vm1294, %v1292, 0.0
        %v1296 = vadd.f32 %v1287, %v1295
        %s1297 = scalar_lea.vmem %s112, 16 [#allocation1]
        %1298 = vst [vmem:[%s1297] sm:$0xff] %v1296
        %s1299 = scalar_lea.vmem %s104, 24 [#allocation0]
        %v1300 = vld [vmem:[%s1299] sm:$0xff]
        %s1301 = scalar_lea.vmem %s112, 24 [#allocation1]
        %v1302 = vld [vmem:[%s1301] sm:$0xff]
        %v1303 = vmul.f32 %v1302, %v1276
        %1304 = vadd.xlane.f32.xlu0 %v1303
        %v1305 = vpop.xlane.xlu0 %1304
        %v1306 = vsub.f32 %v1300, %v1305
        %v1307 = vmul.f32 %v1306, %v1283
        %v1308 = vsel %vm1274, %v1307, 0.0
        %v1309 = vadd.f32 %v1302, %v1308
        %s1310 = scalar_lea.vmem %s112, 24 [#allocation1]
        %1311 = vst [vmem:[%s1310] sm:$0xff] %v1309
        %vm1312 = vcmask 203968
        %s1313 = scalar_lea.vmem %s112, 24 [#allocation1]
        %v1314 = vld [vmem:[%s1313] ss:$0 sm:$0xff]
        %s1315 = scalar_lea.vmem %s104, 24 [#allocation0]
        %v1316 = vld [vmem:[%s1315] ss:$0 sm:$0xff]
        %v1317 = vmul.f32 %v1314, %v1314
        %1318 = vadd.xlane.f32.xlu0 %v1317
        %v1319 = vpop.xlane.xlu0 %1318
        %v1320 = vsub.f32 %v1316, %v1319
        %v1321 = vrsqrt.pop %v1320
        %s1322 = scalar_lea.vmem %s104, 24 [#allocation0]
        %v1323 = vld [vmem:[%s1322] sm:$0xff]
        %s1324 = scalar_lea.vmem %s112, 24 [#allocation1]
        %v1325 = vld [vmem:[%s1324] sm:$0xff]
        %v1326 = vmul.f32 %v1325, %v1314
        %1327 = vadd.xlane.f32.xlu0 %v1326
        %v1328 = vpop.xlane.xlu0 %1327
        %v1329 = vsub.f32 %v1323, %v1328
        %v1330 = vmul.f32 %v1329, %v1321
        %v1331 = vsel %vm1312, %v1330, 0.0
        %v1332 = vadd.f32 %v1325, %v1331
        %s1333 = scalar_lea.vmem %s112, 24 [#allocation1]
        %1334 = vst [vmem:[%s1333] sm:$0xff] %v1332
        %vm1335 = vcmask 212168
        %s1336 = scalar_lea.vmem %s112, 25 [#allocation1]
        %v1337 = vld [vmem:[%s1336] ss:$0 sm:$0xff]
        %s1338 = scalar_lea.vmem %s104, 25 [#allocation0]
        %v1339 = vld [vmem:[%s1338] ss:$0 sm:$0xff]
        %v1340 = vmul.f32 %v1337, %v1337
        %1341 = vadd.xlane.f32.xlu0 %v1340
        %v1342 = vpop.xlane.xlu0 %1341
        %v1343 = vsub.f32 %v1339, %v1342
        %v1344 = vrsqrt.pop %v1343
        %s1345 = scalar_lea.vmem %s104, 24 [#allocation0]
        %v1346 = vld [vmem:[%s1345] sm:$0xff]
        %s1347 = scalar_lea.vmem %s112, 24 [#allocation1]
        %v1348 = vld [vmem:[%s1347] sm:$0xff]
        %v1349 = vmul.f32 %v1348, %v1337
        %1350 = vadd.xlane.f32.xlu0 %v1349
        %v1351 = vpop.xlane.xlu0 %1350
        %v1352 = vsub.f32 %v1346, %v1351
        %v1353 = vmul.f32 %v1352, %v1344
        %vm1354 = vcmask 1047553
        %vm1355 = vmand %vm1335, %vm1354
        %v1356 = vsel %vm1355, %v1353, 0.0
        %v1357 = vadd.f32 %v1348, %v1356
        %s1358 = scalar_lea.vmem %s112, 24 [#allocation1]
        %1359 = vst [vmem:[%s1358] sm:$0xff] %v1357
        %vm1360 = vcmask 220368
        %s1361 = scalar_lea.vmem %s112, 26 [#allocation1]
        %v1362 = vld [vmem:[%s1361] ss:$0 sm:$0xff]
        %s1363 = scalar_lea.vmem %s104, 26 [#allocation0]
        %v1364 = vld [vmem:[%s1363] ss:$0 sm:$0xff]
        %v1365 = vmul.f32 %v1362, %v1362
        %1366 = vadd.xlane.f32.xlu0 %v1365
        %v1367 = vpop.xlane.xlu0 %1366
        %v1368 = vsub.f32 %v1364, %v1367
        %v1369 = vrsqrt.pop %v1368
        %s1370 = scalar_lea.vmem %s104, 24 [#allocation0]
        %v1371 = vld [vmem:[%s1370] sm:$0xff]
        %s1372 = scalar_lea.vmem %s112, 24 [#allocation1]
        %v1373 = vld [vmem:[%s1372] sm:$0xff]
        %v1374 = vmul.f32 %v1373, %v1362
        %1375 = vadd.xlane.f32.xlu0 %v1374
        %v1376 = vpop.xlane.xlu0 %1375
        %v1377 = vsub.f32 %v1371, %v1376
        %v1378 = vmul.f32 %v1377, %v1369
        %vm1379 = vcmask 1047554
        %vm1380 = vmand %vm1360, %vm1379
        %v1381 = vsel %vm1380, %v1378, 0.0
        %v1382 = vadd.f32 %v1373, %v1381
        %s1383 = scalar_lea.vmem %s112, 24 [#allocation1]
        %1384 = vst [vmem:[%s1383] sm:$0xff] %v1382
        %vm1385 = vcmask 228568
        %s1386 = scalar_lea.vmem %s112, 27 [#allocation1]
        %v1387 = vld [vmem:[%s1386] ss:$0 sm:$0xff]
        %s1388 = scalar_lea.vmem %s104, 27 [#allocation0]
        %v1389 = vld [vmem:[%s1388] ss:$0 sm:$0xff]
        %v1390 = vmul.f32 %v1387, %v1387
        %1391 = vadd.xlane.f32.xlu0 %v1390
        %v1392 = vpop.xlane.xlu0 %1391
        %v1393 = vsub.f32 %v1389, %v1392
        %v1394 = vrsqrt.pop %v1393
        %s1395 = scalar_lea.vmem %s104, 24 [#allocation0]
        %v1396 = vld [vmem:[%s1395] sm:$0xff]
        %s1397 = scalar_lea.vmem %s112, 24 [#allocation1]
        %v1398 = vld [vmem:[%s1397] sm:$0xff]
        %v1399 = vmul.f32 %v1398, %v1387
        %1400 = vadd.xlane.f32.xlu0 %v1399
        %v1401 = vpop.xlane.xlu0 %1400
        %v1402 = vsub.f32 %v1396, %v1401
        %v1403 = vmul.f32 %v1402, %v1394
        %vm1404 = vcmask 1047555
        %vm1405 = vmand %vm1385, %vm1404
        %v1406 = vsel %vm1405, %v1403, 0.0
        %v1407 = vadd.f32 %v1398, %v1406
        %s1408 = scalar_lea.vmem %s112, 24 [#allocation1]
        %1409 = vst [vmem:[%s1408] sm:$0xff] %v1407
        %vm1410 = vcmask 236768
        %s1411 = scalar_lea.vmem %s112, 28 [#allocation1]
        %v1412 = vld [vmem:[%s1411] ss:$0 sm:$0xff]
        %s1413 = scalar_lea.vmem %s104, 28 [#allocation0]
        %v1414 = vld [vmem:[%s1413] ss:$0 sm:$0xff]
        %v1415 = vmul.f32 %v1412, %v1412
        %1416 = vadd.xlane.f32.xlu0 %v1415
        %v1417 = vpop.xlane.xlu0 %1416
        %v1418 = vsub.f32 %v1414, %v1417
        %v1419 = vrsqrt.pop %v1418
        %s1420 = scalar_lea.vmem %s104, 24 [#allocation0]
        %v1421 = vld [vmem:[%s1420] sm:$0xff]
        %s1422 = scalar_lea.vmem %s112, 24 [#allocation1]
        %v1423 = vld [vmem:[%s1422] sm:$0xff]
        %v1424 = vmul.f32 %v1423, %v1412
        %1425 = vadd.xlane.f32.xlu0 %v1424
        %v1426 = vpop.xlane.xlu0 %1425
        %v1427 = vsub.f32 %v1421, %v1426
        %v1428 = vmul.f32 %v1427, %v1419
        %vm1429 = vcmask 1047556
        %vm1430 = vmand %vm1410, %vm1429
        %v1431 = vsel %vm1430, %v1428, 0.0
        %v1432 = vadd.f32 %v1423, %v1431
        %s1433 = scalar_lea.vmem %s112, 24 [#allocation1]
        %1434 = vst [vmem:[%s1433] sm:$0xff] %v1432
        %vm1435 = vcmask 244968
        %s1436 = scalar_lea.vmem %s112, 29 [#allocation1]
        %v1437 = vld [vmem:[%s1436] ss:$0 sm:$0xff]
        %s1438 = scalar_lea.vmem %s104, 29 [#allocation0]
        %v1439 = vld [vmem:[%s1438] ss:$0 sm:$0xff]
        %v1440 = vmul.f32 %v1437, %v1437
        %1441 = vadd.xlane.f32.xlu0 %v1440
        %v1442 = vpop.xlane.xlu0 %1441
        %v1443 = vsub.f32 %v1439, %v1442
        %v1444 = vrsqrt.pop %v1443
        %s1445 = scalar_lea.vmem %s104, 24 [#allocation0]
        %v1446 = vld [vmem:[%s1445] sm:$0xff]
        %s1447 = scalar_lea.vmem %s112, 24 [#allocation1]
        %v1448 = vld [vmem:[%s1447] sm:$0xff]
        %v1449 = vmul.f32 %v1448, %v1437
        %1450 = vadd.xlane.f32.xlu0 %v1449
        %v1451 = vpop.xlane.xlu0 %1450
        %v1452 = vsub.f32 %v1446, %v1451
        %v1453 = vmul.f32 %v1452, %v1444
        %vm1454 = vcmask 1047557
        %vm1455 = vmand %vm1435, %vm1454
        %v1456 = vsel %vm1455, %v1453, 0.0
        %v1457 = vadd.f32 %v1448, %v1456
        %s1458 = scalar_lea.vmem %s112, 24 [#allocation1]
        %1459 = vst [vmem:[%s1458] sm:$0xff] %v1457
        %vm1460 = vcmask 253168
        %s1461 = scalar_lea.vmem %s112, 30 [#allocation1]
        %v1462 = vld [vmem:[%s1461] ss:$0 sm:$0xff]
        %s1463 = scalar_lea.vmem %s104, 30 [#allocation0]
        %v1464 = vld [vmem:[%s1463] ss:$0 sm:$0xff]
        %v1465 = vmul.f32 %v1462, %v1462
        %1466 = vadd.xlane.f32.xlu0 %v1465
        %v1467 = vpop.xlane.xlu0 %1466
        %v1468 = vsub.f32 %v1464, %v1467
        %v1469 = vrsqrt.pop %v1468
        %s1470 = scalar_lea.vmem %s104, 24 [#allocation0]
        %v1471 = vld [vmem:[%s1470] sm:$0xff]
        %s1472 = scalar_lea.vmem %s112, 24 [#allocation1]
        %v1473 = vld [vmem:[%s1472] sm:$0xff]
        %v1474 = vmul.f32 %v1473, %v1462
        %1475 = vadd.xlane.f32.xlu0 %v1474
        %v1476 = vpop.xlane.xlu0 %1475
        %v1477 = vsub.f32 %v1471, %v1476
        %v1478 = vmul.f32 %v1477, %v1469
        %vm1479 = vcmask 1047558
        %vm1480 = vmand %vm1460, %vm1479
        %v1481 = vsel %vm1480, %v1478, 0.0
        %v1482 = vadd.f32 %v1473, %v1481
        %s1483 = scalar_lea.vmem %s112, 24 [#allocation1]
        %1484 = vst [vmem:[%s1483] sm:$0xff] %v1482
        %vm1485 = vcmask 261368
        %s1486 = scalar_lea.vmem %s112, 31 [#allocation1]
        %v1487 = vld [vmem:[%s1486] ss:$0 sm:$0xff]
        %s1488 = scalar_lea.vmem %s104, 31 [#allocation0]
        %v1489 = vld [vmem:[%s1488] ss:$0 sm:$0xff]
        %v1490 = vmul.f32 %v1487, %v1487
        %1491 = vadd.xlane.f32.xlu0 %v1490
        %v1492 = vpop.xlane.xlu0 %1491
        %v1493 = vsub.f32 %v1489, %v1492
        %v1494 = vrsqrt.pop %v1493
        %s1495 = scalar_lea.vmem %s104, 24 [#allocation0]
        %v1496 = vld [vmem:[%s1495] sm:$0xff]
        %s1497 = scalar_lea.vmem %s112, 24 [#allocation1]
        %v1498 = vld [vmem:[%s1497] sm:$0xff]
        %v1499 = vmul.f32 %v1498, %v1487
        %1500 = vadd.xlane.f32.xlu0 %v1499
        %v1501 = vpop.xlane.xlu0 %1500
        %v1502 = vsub.f32 %v1496, %v1501
        %v1503 = vmul.f32 %v1502, %v1494
        %vm1504 = vcmask 1047559
        %vm1505 = vmand %vm1485, %vm1504
        %v1506 = vsel %vm1505, %v1503, 0.0
        %v1507 = vadd.f32 %v1498, %v1506
        %s1508 = scalar_lea.vmem %s112, 24 [#allocation1]
        %1509 = vst [vmem:[%s1508] sm:$0xff] %v1507
        %s1510 = sand.u32 %s8, 1
        %s1511 = sand.u32 %s8, 1
        %s1512 = smul.addr %s1511, 32
        %s1513 = scalar_lea.vmem [#allocation1], %s1512
        %s1514 = sadd.s32 %s15, %s14
        %s1515 = smul.addr %s13, 4
        %s1516 = sadd.s32 %s1514, %s1515
        %s1517 = smul.addr %s1516, 8
        %s1518 = scalar_lea.vmem %s1, %s1517
        // Predicated region
        $region55: #{custom-call.8} parent=53 // pred_check
          _
        $region56: #{custom-call.8} parent=53 // pred_check_branch
          %1520 = sbr.rel (0) target = $region58
        $region57: #{custom-call.8} parent=53 // pred_region
          // Predicated region
          $region59: #{custom-call.8} parent=57 // pred_check
            _
          $region60: #{custom-call.8} parent=57 // pred_check_branch
            %1522 = sbr.rel (0) target = $region62
          $region61: #{custom-call.8} parent=57 // pred_region
            // Predicated region
            $region74: #{custom-call.8} parent=61 // pred_check
              _
            $region75: #{custom-call.8} parent=61 // pred_check_branch
              %1543 = sbr.rel (0) target = $region77
            $region76: #{custom-call.8} parent=61 // pred_region
              loop: start=0, step=1, limit=1
              $region78: #{custom-call.8} parent=76 // loop_pre_header
                _
              $region79: #{custom-call.8} parent=76 // loop_header
                %s1545 = sphi 0, %s1549
                %p1546 = scmp.ge.s32.totalorder %s1545, 1
                %s1550 = sphi %s1513, %s1513
                %s1551 = sphi %s1518, %s1518
              $region80: #{custom-call.8} parent=76 // loop_header_branch
                %1548 = sbr.rel (%p1546) target = $region84
              $region81: #{custom-call.8} parent=76 // loop_body
                %v1552 = vld [vmem:[%s1550] sm:$0xff]
                %1553 = vst [vmem:[%s1551] sm:$0xff] %v1552
                %v1554 = vld [vmem:[%s1550 + $0x8] sm:$0xff]
                %1555 = vst [vmem:[%s1551 + $0x8] sm:$0xff] %v1554
                %v1556 = vld [vmem:[%s1550 + $0x10] sm:$0xff]
                %1557 = vst [vmem:[%s1551 + $0x10] sm:$0xff] %v1556
                %v1558 = vld [vmem:[%s1550 + $0x18] sm:$0xff]
                %1559 = vst [vmem:[%s1551 + $0x18] sm:$0xff] %v1558
              $region82: #{custom-call.8} parent=76 // loop_footer
                %s1549 = sadd.s32 1, %s1545
              $region83: #{custom-call.8} parent=76 // loop_footer_branch
                %1544 = sbr.rel target = $region79
              $region84: #{custom-call.8} parent=76 // loop_exit
                _
            $region77: #{custom-call.8} parent=61 // pred_fallthru
              _
            // Predicated region
            $region85: #{custom-call.8} parent=61 // pred_check
              _
            $region86: #{custom-call.8} parent=61 // pred_check_branch
              %1561 = sbr.rel target = $region88
            $region87: #{custom-call.8} parent=61 // pred_region
              _
            $region88: #{custom-call.8} parent=61 // pred_fallthru
              _
          $region62: #{custom-call.8} parent=57 // pred_fallthru
            _
          // Predicated region
          $region63: #{custom-call.8} parent=57 // pred_check
            _
          $region64: #{custom-call.8} parent=57 // pred_check_branch
            %1524 = sbr.rel target = $region66
          $region65: #{custom-call.8} parent=57 // pred_region
            loop: start=0, step=1, limit=1
            $region67: #{custom-call.8} parent=65 // loop_pre_header
              _
            $region68: #{custom-call.8} parent=65 // loop_header
              %s1527 = sphi 0, %s1531
              %p1528 = scmp.ge.s32.totalorder %s1527, 1
              %s1532 = sphi %s1513, %s1513
              %s1533 = sphi %s1518, %s1518
            $region69: #{custom-call.8} parent=65 // loop_header_branch
              %1530 = sbr.rel (%p1528) target = $region73
            $region70: #{custom-call.8} parent=65 // loop_body
              %v1534 = vld [vmem:[%s1532] sm:$0xff]
              %1535 = vst [vmem:[%s1533] sm:$0xff] %v1534
              %v1536 = vld [vmem:[%s1532 + $0x8] sm:$0xff]
              %1537 = vst [vmem:[%s1533 + $0x8] sm:$0xff] %v1536
              %v1538 = vld [vmem:[%s1532 + $0x10] sm:$0xff]
              %1539 = vst [vmem:[%s1533 + $0x10] sm:$0xff] %v1538
              %v1540 = vld [vmem:[%s1532 + $0x18] sm:$0xff]
              %1541 = vst [vmem:[%s1533 + $0x18] sm:$0xff] %v1540
            $region71: #{custom-call.8} parent=65 // loop_footer
              %s1531 = sadd.s32 1, %s1527
            $region72: #{custom-call.8} parent=65 // loop_footer_branch
              %1526 = sbr.rel target = $region68
            $region73: #{custom-call.8} parent=65 // loop_exit
              _
          $region66: #{custom-call.8} parent=57 // pred_fallthru
            _
        $region58: #{custom-call.8} parent=53 // pred_fallthru
          _
        %1562 = vnop
      $region54: #{custom-call.8} parent=5 // pred_fallthru
        _
      %p1563 = scmp.le.s32.totalorder 2, %s3
      // Predicated region
      $region89: #{custom-call.8} parent=5 // pred_check
        %p1564 = pneg %p1563
      $region90: #{custom-call.8} parent=5 // pred_check_branch
        %1566 = sbr.rel (%p1564) target = $region92
      $region91: #{custom-call.8} parent=5 // pred_region
        %s1567 = ssub.s32 %s3, 2
        %s1568 = sand.u32 %s9, 1
        %s1569 = sand.u32 %s9, 1
        %s1570 = smul.addr %s1569, 32
        %s1571 = scalar_lea.vmem [#allocation1], %s1570
      $region92: #{custom-call.8} parent=5 // pred_fallthru
        _
    $region6: #{custom-call.8} parent=1 // loop_footer
      %s7 = sadd.s32 1, %s3
    $region7: #{custom-call.8} parent=1 // loop_footer_branch
      %2 = sbr.rel target = $region3
    $region8: #{custom-call.8} parent=1 // loop_exit
      _

// kernel: custom-call.13
$region0: #{custom-call.13}
  %s0 = inlined_call_operand.vmem [shape: f32[2,1,32,32], index: 0, kind: input, shape index: {}]
  %s1 = inlined_call_operand.vmem [shape: f32[2,1,32,32], index: 1, kind: output, shape index: {}]
  $region1: #{custom-call.13} parent=0
    #allocation0 [shape = 'u8[32768]{0}', space=vmem, size = 0x8000, scoped, tag = 'operand span for operand 0']
    #allocation1 [shape = 'u8[32768]{0}', space=vmem, size = 0x8000, scoped, tag = 'operand span for operand 1']
    loop: start=0, step=1, limit=4
    $region2: #{custom-call.13} parent=1 // loop_pre_header
      _
    $region3: #{custom-call.13} parent=1 // loop_header
      %s3 = sphi 0, %s7
      %p4 = scmp.ge.s32.totalorder %s3, 4
      %s10 = sphi 0, %s36
      %s11 = sphi 0, %s32
      %s12 = sphi 0, %s28
      %s13 = sphi 0, %s24
      %s14 = sphi 0, %s10
      %s15 = sphi 0, %s11
      %s16 = sphi 0, %s12
      %s17 = sphi 0, %s13
      %s18 = sphi 0, %s14
      %s19 = sphi 0, %s15
      %s20 = sphi 0, %s16
      %s21 = sphi 0, %s17
    $region4: #{custom-call.13} parent=1 // loop_header_branch
      %6 = sbr.rel (%p4) target = $region8
    $region5: #{custom-call.13} parent=1 // loop_body
      %s8 = ssub.s32 %s3, 1
      %s9 = ssub.s32 %s3, 2
      %s22 = sadd.s32 1, %s13
      %p23 = scmp.ge.s32.totalorder %s22, 1
      %s24 = scalar_select %p23, 0, %s22
      %s25 = sadd.s32 1, %s12
      %s26 = scalar_select %p23, %s25, %s12
      %p27 = scmp.ge.s32.totalorder %s26, 1
      %s28 = scalar_select %p27, 0, %s26
      %s29 = sadd.s32 1, %s11
      %s30 = scalar_select %p27, %s29, %s11
      %p31 = scmp.ge.s32.totalorder %s30, 1
      %s32 = scalar_select %p31, 0, %s30
      %s33 = sadd.s32 1, %s10
      %s34 = scalar_select %p31, %s33, %s10
      %p35 = scmp.ge.s32.totalorder %s34, 2
      %s36 = scalar_select %p35, 0, %s34
      %p37 = scmp.le.s32.totalorder 1, %s3
      %p38 = scmp.lt.s32.totalorder %s3, 3
      %p39 = pnand %p37, %p38
      %p40 = pneg %p39
      // Predicated region
      $region9: #{custom-call.13} parent=5 // pred_check
        _
      $region10: #{custom-call.13} parent=5 // pred_check_branch
        %42 = sbr.rel (%p39) target = $region12
      $region11: #{custom-call.13} parent=5 // pred_region
        %s43 = ssub.s32 %s3, 1
      $region12: #{custom-call.13} parent=5 // pred_fallthru
        _
      %p44 = scmp.lt.s32.totalorder %s3, 2
      // Predicated region
      $region13: #{custom-call.13} parent=5 // pred_check
        %p45 = pneg %p44
      $region14: #{custom-call.13} parent=5 // pred_check_branch
        %47 = sbr.rel (%p45) target = $region16
      $region15: #{custom-call.13} parent=5 // pred_region
        %s48 = sand.u32 %s3, 1
        %s49 = sand.u32 %s3, 1
        %s50 = smul.addr %s49, 32
        %s51 = scalar_lea.vmem [#allocation0], %s50
        %s52 = sadd.s32 %s13, %s12
        %s53 = smul.addr %s11, 4
        %s54 = sadd.s32 %s52, %s53
        %s55 = smul.addr %s10, 4
        %s56 = sadd.s32 %s54, %s55
        %s57 = smul.addr %s56, 8
        %s58 = scalar_lea.vmem %s0, %s57
        // Predicated region
        $region17: #{custom-call.13} parent=15 // pred_check
          _
        $region18: #{custom-call.13} parent=15 // pred_check_branch
          %60 = sbr.rel (0) target = $region20
        $region19: #{custom-call.13} parent=15 // pred_region
          // Predicated region
          $region21: #{custom-call.13} parent=19 // pred_check
            _
          $region22: #{custom-call.13} parent=19 // pred_check_branch
            %62 = sbr.rel (0) target = $region24
          $region23: #{custom-call.13} parent=19 // pred_region
            // Predicated region
            $region36: #{custom-call.13} parent=23 // pred_check
              _
            $region37: #{custom-call.13} parent=23 // pred_check_branch
              %83 = sbr.rel (0) target = $region39
            $region38: #{custom-call.13} parent=23 // pred_region
              loop: start=0, step=1, limit=1
              $region40: #{custom-call.13} parent=38 // loop_pre_header
                _
              $region41: #{custom-call.13} parent=38 // loop_header
                %s85 = sphi 0, %s89
                %p86 = scmp.ge.s32.totalorder %s85, 1
                %s90 = sphi %s58, %s58
                %s91 = sphi %s51, %s51
              $region42: #{custom-call.13} parent=38 // loop_header_branch
                %88 = sbr.rel (%p86) target = $region46
              $region43: #{custom-call.13} parent=38 // loop_body
                %v92 = vld [vmem:[%s90] sm:$0xff]
                %93 = vst [vmem:[%s91] sm:$0xff] %v92
                %v94 = vld [vmem:[%s90 + $0x8] sm:$0xff]
                %95 = vst [vmem:[%s91 + $0x8] sm:$0xff] %v94
                %v96 = vld [vmem:[%s90 + $0x10] sm:$0xff]
                %97 = vst [vmem:[%s91 + $0x10] sm:$0xff] %v96
                %v98 = vld [vmem:[%s90 + $0x18] sm:$0xff]
                %99 = vst [vmem:[%s91 + $0x18] sm:$0xff] %v98
              $region44: #{custom-call.13} parent=38 // loop_footer
                %s89 = sadd.s32 1, %s85
              $region45: #{custom-call.13} parent=38 // loop_footer_branch
                %84 = sbr.rel target = $region41
              $region46: #{custom-call.13} parent=38 // loop_exit
                _
            $region39: #{custom-call.13} parent=23 // pred_fallthru
              _
            // Predicated region
            $region47: #{custom-call.13} parent=23 // pred_check
              _
            $region48: #{custom-call.13} parent=23 // pred_check_branch
              %101 = sbr.rel target = $region50
            $region49: #{custom-call.13} parent=23 // pred_region
              _
            $region50: #{custom-call.13} parent=23 // pred_fallthru
              _
          $region24: #{custom-call.13} parent=19 // pred_fallthru
            _
          // Predicated region
          $region25: #{custom-call.13} parent=19 // pred_check
            _
          $region26: #{custom-call.13} parent=19 // pred_check_branch
            %64 = sbr.rel target = $region28
          $region27: #{custom-call.13} parent=19 // pred_region
            loop: start=0, step=1, limit=1
            $region29: #{custom-call.13} parent=27 // loop_pre_header
              _
            $region30: #{custom-call.13} parent=27 // loop_header
              %s67 = sphi 0, %s71
              %p68 = scmp.ge.s32.totalorder %s67, 1
              %s72 = sphi %s58, %s58
              %s73 = sphi %s51, %s51
            $region31: #{custom-call.13} parent=27 // loop_header_branch
              %70 = sbr.rel (%p68) target = $region35
            $region32: #{custom-call.13} parent=27 // loop_body
              %v74 = vld [vmem:[%s72] sm:$0xff]
              %75 = vst [vmem:[%s73] sm:$0xff] %v74
              %v76 = vld [vmem:[%s72 + $0x8] sm:$0xff]
              %77 = vst [vmem:[%s73 + $0x8] sm:$0xff] %v76
              %v78 = vld [vmem:[%s72 + $0x10] sm:$0xff]
              %79 = vst [vmem:[%s73 + $0x10] sm:$0xff] %v78
              %v80 = vld [vmem:[%s72 + $0x18] sm:$0xff]
              %81 = vst [vmem:[%s73 + $0x18] sm:$0xff] %v80
            $region33: #{custom-call.13} parent=27 // loop_footer
              %s71 = sadd.s32 1, %s67
            $region34: #{custom-call.13} parent=27 // loop_footer_branch
              %66 = sbr.rel target = $region30
            $region35: #{custom-call.13} parent=27 // loop_exit
              _
          $region28: #{custom-call.13} parent=19 // pred_fallthru
            _
        $region20: #{custom-call.13} parent=15 // pred_fallthru
          _
        %102 = vnop
      $region16: #{custom-call.13} parent=5 // pred_fallthru
        _
      %p103 = scmp.le.s32.totalorder 1, %s3
      %p104 = scmp.lt.s32.totalorder %s3, 3
      %p105 = pnand %p103, %p104
      %p106 = pneg %p105
      // Predicated region
      $region51: #{custom-call.13} parent=5 // pred_check
        _
      $region52: #{custom-call.13} parent=5 // pred_check_branch
        %108 = sbr.rel (%p105) target = $region54
      $region53: #{custom-call.13} parent=5 // pred_region
        #allocation2 [shape = 'f32[32,32]{1,0}', space=vmem, size = 0x4000, scoped, tag = 'rescaled input a']
        %s109 = ssub.s32 %s3, 1
        %s110 = sand.u32 %s8, 1
        %s111 = sand.u32 %s8, 1
        %s112 = smul.addr %s111, 32
        %s113 = scalar_lea.vmem [#allocation0], %s112
        %s114 = sand.u32 %s8, 1
        %s115 = sand.u32 %s8, 1
        %s116 = smul.addr %s115, 32
        %s117 = scalar_lea.vmem [#allocation0], %s116
        %s118 = sand.u32 %s8, 1
        %s119 = sand.u32 %s8, 1
        %s120 = smul.addr %s119, 32
        %s121 = scalar_lea.vmem [#allocation1], %s120
        %v122 = vlaneseq
        %v123 = vand.u32 %v122, 127
        %vm124 = vcmp.lt.s32.totalorder %v123, 32
        %v125 = vlaneseq
        %v126 = vshrl.u32 %v125, 7
        %vm128 = vcmp.eq.s32.totalorder %v126, %v123
        %v129 = vld [vmem:[%s113] sm:$0xff]
        %v130 = vsel %vm128, %v129, 0.0
        %131 = vadd.xlane.f32.xlu0 %v130
        %v132 = vpop.xlane.xlu0 %131
        %vm133 = vcmp.ge.s32.totalorder %v126, %v123
        %vm134 = vmand %vm133, %vm124
        %v135 = vsel %vm134, %v129, 0.0
        %v136 = vrcp.pop %v132
        %v137 = vmul.f32 %v135, %v136
        %138 = vst [vmem:[#allocation2] sm:$0xff] %v137
        %s139 = scalar_lea.vmem %s113, 8 [#allocation0]
        %s140 = scalar_lea.vmem [#allocation2], 8
        %v141 = vlaneseq
        %v142 = vshrl.u32 %v141, 7
        %v143 = vadd.s32 %v142, 8
        %vm144 = vcmp.eq.s32.totalorder %v143, %v123
        %v145 = vld [vmem:[%s139] sm:$0xff]
        %v146 = vsel %vm144, %v145, 0.0
        %147 = vadd.xlane.f32.xlu0 %v146
        %v148 = vpop.xlane.xlu0 %147
        %vm149 = vcmp.ge.s32.totalorder %v143, %v123
        %vm150 = vmand %vm149, %vm124
        %v151 = vsel %vm150, %v145, 0.0
        %v152 = vrcp.pop %v148
        %v153 = vmul.f32 %v151, %v152
        %154 = vst [vmem:[%s140] sm:$0xff] %v153
        %s155 = scalar_lea.vmem %s113, 16 [#allocation0]
        %s156 = scalar_lea.vmem [#allocation2], 16
        %v157 = vlaneseq
        %v158 = vshrl.u32 %v157, 7
        %v159 = vadd.s32 %v158, 16
        %vm160 = vcmp.eq.s32.totalorder %v159, %v123
        %v161 = vld [vmem:[%s155] sm:$0xff]
        %v162 = vsel %vm160, %v161, 0.0
        %163 = vadd.xlane.f32.xlu0 %v162
        %v164 = vpop.xlane.xlu0 %163
        %vm165 = vcmp.ge.s32.totalorder %v159, %v123
        %vm166 = vmand %vm165, %vm124
        %v167 = vsel %vm166, %v161, 0.0
        %v168 = vrcp.pop %v164
        %v169 = vmul.f32 %v167, %v168
        %170 = vst [vmem:[%s156] sm:$0xff] %v169
        %s171 = scalar_lea.vmem %s113, 24 [#allocation0]
        %s172 = scalar_lea.vmem [#allocation2], 24
        %v173 = vlaneseq
        %v174 = vshrl.u32 %v173, 7
        %v175 = vadd.s32 %v174, 24
        %vm176 = vcmp.eq.s32.totalorder %v175, %v123
        %v177 = vld [vmem:[%s171] sm:$0xff]
        %v178 = vsel %vm176, %v177, 0.0
        %179 = vadd.xlane.f32.xlu0 %v178
        %v180 = vpop.xlane.xlu0 %179
        %vm181 = vcmp.ge.s32.totalorder %v175, %v123
        %vm182 = vmand %vm181, %vm124
        %v183 = vsel %vm182, %v177, 0.0
        %v184 = vrcp.pop %v180
        %v185 = vmul.f32 %v183, %v184
        %186 = vst [vmem:[%s172] sm:$0xff] %v185
        %v187 = vlaneseq
        %v188 = vand.u32 %v187, 127
        %v189 = vlaneseq
        %v190 = vshrl.u32 %v189, 7
        %vm192 = vcmp.eq.s32.totalorder %v188, %v190
        %v193 = vlaneseq
        %v194 = vand.u32 %v193, 127
        %vm195 = vcmp.eq.s32.totalorder %v194, 0
        %v196 = vsel %vm195, 1.0, -1.0
        %v197 = vsel %vm192, %v196, 0.0
        %v198 = vlaneseq
        %v199 = vand.u32 %v198, 127
        %v200 = vlaneseq
        %v201 = vshrl.u32 %v200, 7
        %v202 = vadd.s32 %v201, 8
        %vm203 = vcmp.eq.s32.totalorder %v199, %v202
        %v204 = vsel %vm203, -1.0, 0.0
        %v205 = vlaneseq
        %v206 = vand.u32 %v205, 127
        %v207 = vlaneseq
        %v208 = vshrl.u32 %v207, 7
        %v209 = vadd.s32 %v208, 16
        %vm210 = vcmp.eq.s32.totalorder %v206, %v209
        %v211 = vsel %vm210, -1.0, 0.0
        %v212 = vlaneseq
        %v213 = vand.u32 %v212, 127
        %v214 = vlaneseq
        %v215 = vshrl.u32 %v214, 7
        %v216 = vadd.s32 %v215, 24
        %vm217 = vcmp.eq.s32.totalorder %v213, %v216
        %v218 = vsel %vm217, -1.0, 0.0
        %s219 = scalar_lea.vmem [#allocation2], 1
        %v220 = vld [vmem:[%s219] ss:$0 sm:$0xff]
        %v221 = vxor.u32 %v220, 2147483648
        %v222 = vlaneseq
        %v223 = vand.u32 %v222, 127
        %vm224 = vcmp.eq.s32.totalorder %v223, 1
        %v225 = vmul.f32 %v221, %v197
        %226 = vadd.xlane.f32.xlu0 %v225
        %v227 = vpop.xlane.xlu0 %226
        %v228 = vsel %vm224, %v227, %v197
        %s229 = scalar_lea.vmem [#allocation2], 2
        %v230 = vld [vmem:[%s229] ss:$0 sm:$0xff]
        %v231 = vxor.u32 %v230, 2147483648
        %v232 = vlaneseq
        %v233 = vand.u32 %v232, 127
        %vm234 = vcmp.eq.s32.totalorder %v233, 2
        %v235 = vmul.f32 %v231, %v228
        %236 = vadd.xlane.f32.xlu0 %v235
        %v237 = vpop.xlane.xlu0 %236
        %v238 = vsel %vm234, %v237, %v228
        %s239 = scalar_lea.vmem [#allocation2], 3
        %v240 = vld [vmem:[%s239] ss:$0 sm:$0xff]
        %v241 = vxor.u32 %v240, 2147483648
        %v242 = vlaneseq
        %v243 = vand.u32 %v242, 127
        %vm244 = vcmp.eq.s32.totalorder %v243, 3
        %v245 = vmul.f32 %v241, %v238
        %246 = vadd.xlane.f32.xlu0 %v245
        %v247 = vpop.xlane.xlu0 %246
        %v248 = vsel %vm244, %v247, %v238
        %s249 = scalar_lea.vmem [#allocation2], 4
        %v250 = vld [vmem:[%s249] ss:$0 sm:$0xff]
        %v251 = vxor.u32 %v250, 2147483648
        %v252 = vlaneseq
        %v253 = vand.u32 %v252, 127
        %vm254 = vcmp.eq.s32.totalorder %v253, 4
        %v255 = vmul.f32 %v251, %v248
        %256 = vadd.xlane.f32.xlu0 %v255
        %v257 = vpop.xlane.xlu0 %256
        %v258 = vsel %vm254, %v257, %v248
        %s259 = scalar_lea.vmem [#allocation2], 5
        %v260 = vld [vmem:[%s259] ss:$0 sm:$0xff]
        %v261 = vxor.u32 %v260, 2147483648
        %v262 = vlaneseq
        %v263 = vand.u32 %v262, 127
        %vm264 = vcmp.eq.s32.totalorder %v263, 5
        %v265 = vmul.f32 %v261, %v258
        %266 = vadd.xlane.f32.xlu0 %v265
        %v267 = vpop.xlane.xlu0 %266
        %v268 = vsel %vm264, %v267, %v258
        %s269 = scalar_lea.vmem [#allocation2], 6
        %v270 = vld [vmem:[%s269] ss:$0 sm:$0xff]
        %v271 = vxor.u32 %v270, 2147483648
        %v272 = vlaneseq
        %v273 = vand.u32 %v272, 127
        %vm274 = vcmp.eq.s32.totalorder %v273, 6
        %v275 = vmul.f32 %v271, %v268
        %276 = vadd.xlane.f32.xlu0 %v275
        %v277 = vpop.xlane.xlu0 %276
        %v278 = vsel %vm274, %v277, %v268
        %s279 = scalar_lea.vmem [#allocation2], 7
        %v280 = vld [vmem:[%s279] ss:$0 sm:$0xff]
        %v281 = vxor.u32 %v280, 2147483648
        %v282 = vlaneseq
        %v283 = vand.u32 %v282, 127
        %vm284 = vcmp.eq.s32.totalorder %v283, 7
        %v285 = vmul.f32 %v281, %v278
        %286 = vadd.xlane.f32.xlu0 %v285
        %v287 = vpop.xlane.xlu0 %286
        %v288 = vsel %vm284, %v287, %v278
        %s289 = scalar_lea.vmem [#allocation2], 8
        %v290 = vld [vmem:[%s289] ss:$0 sm:$0xff]
        %v291 = vxor.u32 %v290, 2147483648
        %v292 = vlaneseq
        %v293 = vand.u32 %v292, 127
        %vm294 = vcmp.eq.s32.totalorder %v293, 8
        %v295 = vmul.f32 %v291, %v288
        %296 = vadd.xlane.f32.xlu0 %v295
        %v297 = vpop.xlane.xlu0 %296
        %v298 = vsel %vm294, %v297, %v288
        %v299 = vmul.f32 %v291, %v204
        %300 = vadd.xlane.f32.xlu0 %v299
        %v301 = vpop.xlane.xlu0 %300
        %v302 = vsel %vm294, %v301, %v204
        %s303 = scalar_lea.vmem [#allocation2], 9
        %v304 = vld [vmem:[%s303] ss:$0 sm:$0xff]
        %v305 = vxor.u32 %v304, 2147483648
        %v306 = vlaneseq
        %v307 = vand.u32 %v306, 127
        %vm308 = vcmp.eq.s32.totalorder %v307, 9
        %v309 = vmul.f32 %v305, %v298
        %310 = vadd.xlane.f32.xlu0 %v309
        %v311 = vpop.xlane.xlu0 %310
        %v312 = vsel %vm308, %v311, %v298
        %v313 = vmul.f32 %v305, %v302
        %314 = vadd.xlane.f32.xlu0 %v313
        %v315 = vpop.xlane.xlu0 %314
        %v316 = vsel %vm308, %v315, %v302
        %s317 = scalar_lea.vmem [#allocation2], 10
        %v318 = vld [vmem:[%s317] ss:$0 sm:$0xff]
        %v319 = vxor.u32 %v318, 2147483648
        %v320 = vlaneseq
        %v321 = vand.u32 %v320, 127
        %vm322 = vcmp.eq.s32.totalorder %v321, 10
        %v323 = vmul.f32 %v319, %v312
        %324 = vadd.xlane.f32.xlu0 %v323
        %v325 = vpop.xlane.xlu0 %324
        %v326 = vsel %vm322, %v325, %v312
        %v327 = vmul.f32 %v319, %v316
        %328 = vadd.xlane.f32.xlu0 %v327
        %v329 = vpop.xlane.xlu0 %328
        %v330 = vsel %vm322, %v329, %v316
        %s331 = scalar_lea.vmem [#allocation2], 11
        %v332 = vld [vmem:[%s331] ss:$0 sm:$0xff]
        %v333 = vxor.u32 %v332, 2147483648
        %v334 = vlaneseq
        %v335 = vand.u32 %v334, 127
        %vm336 = vcmp.eq.s32.totalorder %v335, 11
        %v337 = vmul.f32 %v333, %v326
        %338 = vadd.xlane.f32.xlu0 %v337
        %v339 = vpop.xlane.xlu0 %338
        %v340 = vsel %vm336, %v339, %v326
        %v341 = vmul.f32 %v333, %v330
        %342 = vadd.xlane.f32.xlu0 %v341
        %v343 = vpop.xlane.xlu0 %342
        %v344 = vsel %vm336, %v343, %v330
        %s345 = scalar_lea.vmem [#allocation2], 12
        %v346 = vld [vmem:[%s345] ss:$0 sm:$0xff]
        %v347 = vxor.u32 %v346, 2147483648
        %v348 = vlaneseq
        %v349 = vand.u32 %v348, 127
        %vm350 = vcmp.eq.s32.totalorder %v349, 12
        %v351 = vmul.f32 %v347, %v340
        %352 = vadd.xlane.f32.xlu0 %v351
        %v353 = vpop.xlane.xlu0 %352
        %v354 = vsel %vm350, %v353, %v340
        %v355 = vmul.f32 %v347, %v344
        %356 = vadd.xlane.f32.xlu0 %v355
        %v357 = vpop.xlane.xlu0 %356
        %v358 = vsel %vm350, %v357, %v344
        %s359 = scalar_lea.vmem [#allocation2], 13
        %v360 = vld [vmem:[%s359] ss:$0 sm:$0xff]
        %v361 = vxor.u32 %v360, 2147483648
        %v362 = vlaneseq
        %v363 = vand.u32 %v362, 127
        %vm364 = vcmp.eq.s32.totalorder %v363, 13
        %v365 = vmul.f32 %v361, %v354
        %366 = vadd.xlane.f32.xlu0 %v365
        %v367 = vpop.xlane.xlu0 %366
        %v368 = vsel %vm364, %v367, %v354
        %v369 = vmul.f32 %v361, %v358
        %370 = vadd.xlane.f32.xlu0 %v369
        %v371 = vpop.xlane.xlu0 %370
        %v372 = vsel %vm364, %v371, %v358
        %s373 = scalar_lea.vmem [#allocation2], 14
        %v374 = vld [vmem:[%s373] ss:$0 sm:$0xff]
        %v375 = vxor.u32 %v374, 2147483648
        %v376 = vlaneseq
        %v377 = vand.u32 %v376, 127
        %vm378 = vcmp.eq.s32.totalorder %v377, 14
        %v379 = vmul.f32 %v375, %v368
        %380 = vadd.xlane.f32.xlu0 %v379
        %v381 = vpop.xlane.xlu0 %380
        %v382 = vsel %vm378, %v381, %v368
        %v383 = vmul.f32 %v375, %v372
        %384 = vadd.xlane.f32.xlu0 %v383
        %v385 = vpop.xlane.xlu0 %384
        %v386 = vsel %vm378, %v385, %v372
        %s387 = scalar_lea.vmem [#allocation2], 15
        %v388 = vld [vmem:[%s387] ss:$0 sm:$0xff]
        %v389 = vxor.u32 %v388, 2147483648
        %v390 = vlaneseq
        %v391 = vand.u32 %v390, 127
        %vm392 = vcmp.eq.s32.totalorder %v391, 15
        %v393 = vmul.f32 %v389, %v382
        %394 = vadd.xlane.f32.xlu0 %v393
        %v395 = vpop.xlane.xlu0 %394
        %v396 = vsel %vm392, %v395, %v382
        %v397 = vmul.f32 %v389, %v386
        %398 = vadd.xlane.f32.xlu0 %v397
        %v399 = vpop.xlane.xlu0 %398
        %v400 = vsel %vm392, %v399, %v386
        %s401 = scalar_lea.vmem [#allocation2], 16
        %v402 = vld [vmem:[%s401] ss:$0 sm:$0xff]
        %v403 = vxor.u32 %v402, 2147483648
        %v404 = vlaneseq
        %v405 = vand.u32 %v404, 127
        %vm406 = vcmp.eq.s32.totalorder %v405, 16
        %v407 = vmul.f32 %v403, %v396
        %408 = vadd.xlane.f32.xlu0 %v407
        %v409 = vpop.xlane.xlu0 %408
        %v410 = vsel %vm406, %v409, %v396
        %v411 = vmul.f32 %v403, %v400
        %412 = vadd.xlane.f32.xlu0 %v411
        %v413 = vpop.xlane.xlu0 %412
        %v414 = vsel %vm406, %v413, %v400
        %v415 = vmul.f32 %v403, %v211
        %416 = vadd.xlane.f32.xlu0 %v415
        %v417 = vpop.xlane.xlu0 %416
        %v418 = vsel %vm406, %v417, %v211
        %s419 = scalar_lea.vmem [#allocation2], 17
        %v420 = vld [vmem:[%s419] ss:$0 sm:$0xff]
        %v421 = vxor.u32 %v420, 2147483648
        %v422 = vlaneseq
        %v423 = vand.u32 %v422, 127
        %vm424 = vcmp.eq.s32.totalorder %v423, 17
        %v425 = vmul.f32 %v421, %v410
        %426 = vadd.xlane.f32.xlu0 %v425
        %v427 = vpop.xlane.xlu0 %426
        %v428 = vsel %vm424, %v427, %v410
        %v429 = vmul.f32 %v421, %v414
        %430 = vadd.xlane.f32.xlu0 %v429
        %v431 = vpop.xlane.xlu0 %430
        %v432 = vsel %vm424, %v431, %v414
        %v433 = vmul.f32 %v421, %v418
        %434 = vadd.xlane.f32.xlu0 %v433
        %v435 = vpop.xlane.xlu0 %434
        %v436 = vsel %vm424, %v435, %v418
        %s437 = scalar_lea.vmem [#allocation2], 18
        %v438 = vld [vmem:[%s437] ss:$0 sm:$0xff]
        %v439 = vxor.u32 %v438, 2147483648
        %v440 = vlaneseq
        %v441 = vand.u32 %v440, 127
        %vm442 = vcmp.eq.s32.totalorder %v441, 18
        %v443 = vmul.f32 %v439, %v428
        %444 = vadd.xlane.f32.xlu0 %v443
        %v445 = vpop.xlane.xlu0 %444
        %v446 = vsel %vm442, %v445, %v428
        %v447 = vmul.f32 %v439, %v432
        %448 = vadd.xlane.f32.xlu0 %v447
        %v449 = vpop.xlane.xlu0 %448
        %v450 = vsel %vm442, %v449, %v432
        %v451 = vmul.f32 %v439, %v436
        %452 = vadd.xlane.f32.xlu0 %v451
        %v453 = vpop.xlane.xlu0 %452
        %v454 = vsel %vm442, %v453, %v436
        %s455 = scalar_lea.vmem [#allocation2], 19
        %v456 = vld [vmem:[%s455] ss:$0 sm:$0xff]
        %v457 = vxor.u32 %v456, 2147483648
        %v458 = vlaneseq
        %v459 = vand.u32 %v458, 127
        %vm460 = vcmp.eq.s32.totalorder %v459, 19
        %v461 = vmul.f32 %v457, %v446
        %462 = vadd.xlane.f32.xlu0 %v461
        %v463 = vpop.xlane.xlu0 %462
        %v464 = vsel %vm460, %v463, %v446
        %v465 = vmul.f32 %v457, %v450
        %466 = vadd.xlane.f32.xlu0 %v465
        %v467 = vpop.xlane.xlu0 %466
        %v468 = vsel %vm460, %v467, %v450
        %v469 = vmul.f32 %v457, %v454
        %470 = vadd.xlane.f32.xlu0 %v469
        %v471 = vpop.xlane.xlu0 %470
        %v472 = vsel %vm460, %v471, %v454
        %s473 = scalar_lea.vmem [#allocation2], 20
        %v474 = vld [vmem:[%s473] ss:$0 sm:$0xff]
        %v475 = vxor.u32 %v474, 2147483648
        %v476 = vlaneseq
        %v477 = vand.u32 %v476, 127
        %vm478 = vcmp.eq.s32.totalorder %v477, 20
        %v479 = vmul.f32 %v475, %v464
        %480 = vadd.xlane.f32.xlu0 %v479
        %v481 = vpop.xlane.xlu0 %480
        %v482 = vsel %vm478, %v481, %v464
        %v483 = vmul.f32 %v475, %v468
        %484 = vadd.xlane.f32.xlu0 %v483
        %v485 = vpop.xlane.xlu0 %484
        %v486 = vsel %vm478, %v485, %v468
        %v487 = vmul.f32 %v475, %v472
        %488 = vadd.xlane.f32.xlu0 %v487
        %v489 = vpop.xlane.xlu0 %488
        %v490 = vsel %vm478, %v489, %v472
        %s491 = scalar_lea.vmem [#allocation2], 21
        %v492 = vld [vmem:[%s491] ss:$0 sm:$0xff]
        %v493 = vxor.u32 %v492, 2147483648
        %v494 = vlaneseq
        %v495 = vand.u32 %v494, 127
        %vm496 = vcmp.eq.s32.totalorder %v495, 21
        %v497 = vmul.f32 %v493, %v482
        %498 = vadd.xlane.f32.xlu0 %v497
        %v499 = vpop.xlane.xlu0 %498
        %v500 = vsel %vm496, %v499, %v482
        %v501 = vmul.f32 %v493, %v486
        %502 = vadd.xlane.f32.xlu0 %v501
        %v503 = vpop.xlane.xlu0 %502
        %v504 = vsel %vm496, %v503, %v486
        %v505 = vmul.f32 %v493, %v490
        %506 = vadd.xlane.f32.xlu0 %v505
        %v507 = vpop.xlane.xlu0 %506
        %v508 = vsel %vm496, %v507, %v490
        %s509 = scalar_lea.vmem [#allocation2], 22
        %v510 = vld [vmem:[%s509] ss:$0 sm:$0xff]
        %v511 = vxor.u32 %v510, 2147483648
        %v512 = vlaneseq
        %v513 = vand.u32 %v512, 127
        %vm514 = vcmp.eq.s32.totalorder %v513, 22
        %v515 = vmul.f32 %v511, %v500
        %516 = vadd.xlane.f32.xlu0 %v515
        %v517 = vpop.xlane.xlu0 %516
        %v518 = vsel %vm514, %v517, %v500
        %v519 = vmul.f32 %v511, %v504
        %520 = vadd.xlane.f32.xlu0 %v519
        %v521 = vpop.xlane.xlu0 %520
        %v522 = vsel %vm514, %v521, %v504
        %v523 = vmul.f32 %v511, %v508
        %524 = vadd.xlane.f32.xlu0 %v523
        %v525 = vpop.xlane.xlu0 %524
        %v526 = vsel %vm514, %v525, %v508
        %s527 = scalar_lea.vmem [#allocation2], 23
        %v528 = vld [vmem:[%s527] ss:$0 sm:$0xff]
        %v529 = vxor.u32 %v528, 2147483648
        %v530 = vlaneseq
        %v531 = vand.u32 %v530, 127
        %vm532 = vcmp.eq.s32.totalorder %v531, 23
        %v533 = vmul.f32 %v529, %v518
        %534 = vadd.xlane.f32.xlu0 %v533
        %v535 = vpop.xlane.xlu0 %534
        %v536 = vsel %vm532, %v535, %v518
        %v537 = vmul.f32 %v529, %v522
        %538 = vadd.xlane.f32.xlu0 %v537
        %v539 = vpop.xlane.xlu0 %538
        %v540 = vsel %vm532, %v539, %v522
        %v541 = vmul.f32 %v529, %v526
        %542 = vadd.xlane.f32.xlu0 %v541
        %v543 = vpop.xlane.xlu0 %542
        %v544 = vsel %vm532, %v543, %v526
        %s545 = scalar_lea.vmem [#allocation2], 24
        %v546 = vld [vmem:[%s545] ss:$0 sm:$0xff]
        %v547 = vxor.u32 %v546, 2147483648
        %v548 = vlaneseq
        %v549 = vand.u32 %v548, 127
        %vm550 = vcmp.eq.s32.totalorder %v549, 24
        %v551 = vmul.f32 %v547, %v536
        %552 = vadd.xlane.f32.xlu0 %v551
        %v553 = vpop.xlane.xlu0 %552
        %v554 = vsel %vm550, %v553, %v536
        %v555 = vmul.f32 %v547, %v540
        %556 = vadd.xlane.f32.xlu0 %v555
        %v557 = vpop.xlane.xlu0 %556
        %v558 = vsel %vm550, %v557, %v540
        %v559 = vmul.f32 %v547, %v544
        %560 = vadd.xlane.f32.xlu0 %v559
        %v561 = vpop.xlane.xlu0 %560
        %v562 = vsel %vm550, %v561, %v544
        %v563 = vmul.f32 %v547, %v218
        %564 = vadd.xlane.f32.xlu0 %v563
        %v565 = vpop.xlane.xlu0 %564
        %v566 = vsel %vm550, %v565, %v218
        %s567 = scalar_lea.vmem [#allocation2], 25
        %v568 = vld [vmem:[%s567] ss:$0 sm:$0xff]
        %v569 = vxor.u32 %v568, 2147483648
        %v570 = vlaneseq
        %v571 = vand.u32 %v570, 127
        %vm572 = vcmp.eq.s32.totalorder %v571, 25
        %v573 = vmul.f32 %v569, %v554
        %574 = vadd.xlane.f32.xlu0 %v573
        %v575 = vpop.xlane.xlu0 %574
        %v576 = vsel %vm572, %v575, %v554
        %v577 = vmul.f32 %v569, %v558
        %578 = vadd.xlane.f32.xlu0 %v577
        %v579 = vpop.xlane.xlu0 %578
        %v580 = vsel %vm572, %v579, %v558
        %v581 = vmul.f32 %v569, %v562
        %582 = vadd.xlane.f32.xlu0 %v581
        %v583 = vpop.xlane.xlu0 %582
        %v584 = vsel %vm572, %v583, %v562
        %v585 = vmul.f32 %v569, %v566
        %586 = vadd.xlane.f32.xlu0 %v585
        %v587 = vpop.xlane.xlu0 %586
        %v588 = vsel %vm572, %v587, %v566
        %s589 = scalar_lea.vmem [#allocation2], 26
        %v590 = vld [vmem:[%s589] ss:$0 sm:$0xff]
        %v591 = vxor.u32 %v590, 2147483648
        %v592 = vlaneseq
        %v593 = vand.u32 %v592, 127
        %vm594 = vcmp.eq.s32.totalorder %v593, 26
        %v595 = vmul.f32 %v591, %v576
        %596 = vadd.xlane.f32.xlu0 %v595
        %v597 = vpop.xlane.xlu0 %596
        %v598 = vsel %vm594, %v597, %v576
        %v599 = vmul.f32 %v591, %v580
        %600 = vadd.xlane.f32.xlu0 %v599
        %v601 = vpop.xlane.xlu0 %600
        %v602 = vsel %vm594, %v601, %v580
        %v603 = vmul.f32 %v591, %v584
        %604 = vadd.xlane.f32.xlu0 %v603
        %v605 = vpop.xlane.xlu0 %604
        %v606 = vsel %vm594, %v605, %v584
        %v607 = vmul.f32 %v591, %v588
        %608 = vadd.xlane.f32.xlu0 %v607
        %v609 = vpop.xlane.xlu0 %608
        %v610 = vsel %vm594, %v609, %v588
        %s611 = scalar_lea.vmem [#allocation2], 27
        %v612 = vld [vmem:[%s611] ss:$0 sm:$0xff]
        %v613 = vxor.u32 %v612, 2147483648
        %v614 = vlaneseq
        %v615 = vand.u32 %v614, 127
        %vm616 = vcmp.eq.s32.totalorder %v615, 27
        %v617 = vmul.f32 %v613, %v598
        %618 = vadd.xlane.f32.xlu0 %v617
        %v619 = vpop.xlane.xlu0 %618
        %v620 = vsel %vm616, %v619, %v598
        %v621 = vmul.f32 %v613, %v602
        %622 = vadd.xlane.f32.xlu0 %v621
        %v623 = vpop.xlane.xlu0 %622
        %v624 = vsel %vm616, %v623, %v602
        %v625 = vmul.f32 %v613, %v606
        %626 = vadd.xlane.f32.xlu0 %v625
        %v627 = vpop.xlane.xlu0 %626
        %v628 = vsel %vm616, %v627, %v606
        %v629 = vmul.f32 %v613, %v610
        %630 = vadd.xlane.f32.xlu0 %v629
        %v631 = vpop.xlane.xlu0 %630
        %v632 = vsel %vm616, %v631, %v610
        %s633 = scalar_lea.vmem [#allocation2], 28
        %v634 = vld [vmem:[%s633] ss:$0 sm:$0xff]
        %v635 = vxor.u32 %v634, 2147483648
        %v636 = vlaneseq
        %v637 = vand.u32 %v636, 127
        %vm638 = vcmp.eq.s32.totalorder %v637, 28
        %v639 = vmul.f32 %v635, %v620
        %640 = vadd.xlane.f32.xlu0 %v639
        %v641 = vpop.xlane.xlu0 %640
        %v642 = vsel %vm638, %v641, %v620
        %v643 = vmul.f32 %v635, %v624
        %644 = vadd.xlane.f32.xlu0 %v643
        %v645 = vpop.xlane.xlu0 %644
        %v646 = vsel %vm638, %v645, %v624
        %v647 = vmul.f32 %v635, %v628
        %648 = vadd.xlane.f32.xlu0 %v647
        %v649 = vpop.xlane.xlu0 %648
        %v650 = vsel %vm638, %v649, %v628
        %v651 = vmul.f32 %v635, %v632
        %652 = vadd.xlane.f32.xlu0 %v651
        %v653 = vpop.xlane.xlu0 %652
        %v654 = vsel %vm638, %v653, %v632
        %s655 = scalar_lea.vmem [#allocation2], 29
        %v656 = vld [vmem:[%s655] ss:$0 sm:$0xff]
        %v657 = vxor.u32 %v656, 2147483648
        %v658 = vlaneseq
        %v659 = vand.u32 %v658, 127
        %vm660 = vcmp.eq.s32.totalorder %v659, 29
        %v661 = vmul.f32 %v657, %v642
        %662 = vadd.xlane.f32.xlu0 %v661
        %v663 = vpop.xlane.xlu0 %662
        %v664 = vsel %vm660, %v663, %v642
        %v665 = vmul.f32 %v657, %v646
        %666 = vadd.xlane.f32.xlu0 %v665
        %v667 = vpop.xlane.xlu0 %666
        %v668 = vsel %vm660, %v667, %v646
        %v669 = vmul.f32 %v657, %v650
        %670 = vadd.xlane.f32.xlu0 %v669
        %v671 = vpop.xlane.xlu0 %670
        %v672 = vsel %vm660, %v671, %v650
        %v673 = vmul.f32 %v657, %v654
        %674 = vadd.xlane.f32.xlu0 %v673
        %v675 = vpop.xlane.xlu0 %674
        %v676 = vsel %vm660, %v675, %v654
        %s677 = scalar_lea.vmem [#allocation2], 30
        %v678 = vld [vmem:[%s677] ss:$0 sm:$0xff]
        %v679 = vxor.u32 %v678, 2147483648
        %v680 = vlaneseq
        %v681 = vand.u32 %v680, 127
        %vm682 = vcmp.eq.s32.totalorder %v681, 30
        %v683 = vmul.f32 %v679, %v664
        %684 = vadd.xlane.f32.xlu0 %v683
        %v685 = vpop.xlane.xlu0 %684
        %v686 = vsel %vm682, %v685, %v664
        %v687 = vmul.f32 %v679, %v668
        %688 = vadd.xlane.f32.xlu0 %v687
        %v689 = vpop.xlane.xlu0 %688
        %v690 = vsel %vm682, %v689, %v668
        %v691 = vmul.f32 %v679, %v672
        %692 = vadd.xlane.f32.xlu0 %v691
        %v693 = vpop.xlane.xlu0 %692
        %v694 = vsel %vm682, %v693, %v672
        %v695 = vmul.f32 %v679, %v676
        %696 = vadd.xlane.f32.xlu0 %v695
        %v697 = vpop.xlane.xlu0 %696
        %v698 = vsel %vm682, %v697, %v676
        %s699 = scalar_lea.vmem [#allocation2], 31
        %v700 = vld [vmem:[%s699] ss:$0 sm:$0xff]
        %v701 = vxor.u32 %v700, 2147483648
        %v702 = vlaneseq
        %v703 = vand.u32 %v702, 127
        %vm704 = vcmp.eq.s32.totalorder %v703, 31
        %v705 = vmul.f32 %v701, %v686
        %706 = vadd.xlane.f32.xlu0 %v705
        %v707 = vpop.xlane.xlu0 %706
        %v708 = vsel %vm704, %v707, %v686
        %v709 = vmul.f32 %v701, %v690
        %710 = vadd.xlane.f32.xlu0 %v709
        %v711 = vpop.xlane.xlu0 %710
        %v712 = vsel %vm704, %v711, %v690
        %v713 = vmul.f32 %v701, %v694
        %714 = vadd.xlane.f32.xlu0 %v713
        %v715 = vpop.xlane.xlu0 %714
        %v716 = vsel %vm704, %v715, %v694
        %v717 = vmul.f32 %v701, %v698
        %718 = vadd.xlane.f32.xlu0 %v717
        %v719 = vpop.xlane.xlu0 %718
        %v720 = vsel %vm704, %v719, %v698
        %v721 = vrcp.pop %v132
        %v722 = vmul.f32 %v708, %v721
        %vm723 = vweird.f32 %v132
        %v724 = vsel %vm723, %v708, %v722
        %725 = vst [vmem:[%s121] sm:$0xff] %v724
        %v726 = vrcp.pop %v148
        %v727 = vmul.f32 %v712, %v726
        %vm728 = vweird.f32 %v148
        %v729 = vsel %vm728, %v712, %v727
        %s730 = scalar_lea.vmem %s121, 8 [#allocation1]
        %731 = vst [vmem:[%s730] sm:$0xff] %v729
        %v732 = vrcp.pop %v164
        %v733 = vmul.f32 %v716, %v732
        %vm734 = vweird.f32 %v164
        %v735 = vsel %vm734, %v716, %v733
        %s736 = scalar_lea.vmem %s121, 16 [#allocation1]
        %737 = vst [vmem:[%s736] sm:$0xff] %v735
        %v738 = vrcp.pop %v180
        %v739 = vmul.f32 %v720, %v738
        %vm740 = vweird.f32 %v180
        %v741 = vsel %vm740, %v720, %v739
        %s742 = scalar_lea.vmem %s121, 24 [#allocation1]
        %743 = vst [vmem:[%s742] sm:$0xff] %v741
        %s744 = sand.u32 %s8, 1
        %s745 = sand.u32 %s8, 1
        %s746 = smul.addr %s745, 32
        %s747 = scalar_lea.vmem [#allocation1], %s746
        %s748 = sadd.s32 %s17, %s16
        %s749 = smul.addr %s15, 4
        %s750 = sadd.s32 %s748, %s749
        %s751 = smul.addr %s14, 4
        %s752 = sadd.s32 %s750, %s751
        %s753 = smul.addr %s752, 8
        %s754 = scalar_lea.vmem %s1, %s753
        // Predicated region
        $region55: #{custom-call.13} parent=53 // pred_check
          _
        $region56: #{custom-call.13} parent=53 // pred_check_branch
          %756 = sbr.rel (0) target = $region58
        $region57: #{custom-call.13} parent=53 // pred_region
          // Predicated region
          $region59: #{custom-call.13} parent=57 // pred_check
            _
          $region60: #{custom-call.13} parent=57 // pred_check_branch
            %758 = sbr.rel (0) target = $region62
          $region61: #{custom-call.13} parent=57 // pred_region
            // Predicated region
            $region74: #{custom-call.13} parent=61 // pred_check
              _
            $region75: #{custom-call.13} parent=61 // pred_check_branch
              %779 = sbr.rel (0) target = $region77
            $region76: #{custom-call.13} parent=61 // pred_region
              loop: start=0, step=1, limit=1
              $region78: #{custom-call.13} parent=76 // loop_pre_header
                _
              $region79: #{custom-call.13} parent=76 // loop_header
                %s781 = sphi 0, %s785
                %p782 = scmp.ge.s32.totalorder %s781, 1
                %s786 = sphi %s747, %s747
                %s787 = sphi %s754, %s754
              $region80: #{custom-call.13} parent=76 // loop_header_branch
                %784 = sbr.rel (%p782) target = $region84
              $region81: #{custom-call.13} parent=76 // loop_body
                %v788 = vld [vmem:[%s786] sm:$0xff]
                %789 = vst [vmem:[%s787] sm:$0xff] %v788
                %v790 = vld [vmem:[%s786 + $0x8] sm:$0xff]
                %791 = vst [vmem:[%s787 + $0x8] sm:$0xff] %v790
                %v792 = vld [vmem:[%s786 + $0x10] sm:$0xff]
                %793 = vst [vmem:[%s787 + $0x10] sm:$0xff] %v792
                %v794 = vld [vmem:[%s786 + $0x18] sm:$0xff]
                %795 = vst [vmem:[%s787 + $0x18] sm:$0xff] %v794
              $region82: #{custom-call.13} parent=76 // loop_footer
                %s785 = sadd.s32 1, %s781
              $region83: #{custom-call.13} parent=76 // loop_footer_branch
                %780 = sbr.rel target = $region79
              $region84: #{custom-call.13} parent=76 // loop_exit
                _
            $region77: #{custom-call.13} parent=61 // pred_fallthru
              _
            // Predicated region
            $region85: #{custom-call.13} parent=61 // pred_check
              _
            $region86: #{custom-call.13} parent=61 // pred_check_branch
              %797 = sbr.rel target = $region88
            $region87: #{custom-call.13} parent=61 // pred_region
              _
            $region88: #{custom-call.13} parent=61 // pred_fallthru
              _
          $region62: #{custom-call.13} parent=57 // pred_fallthru
            _
          // Predicated region
          $region63: #{custom-call.13} parent=57 // pred_check
            _
          $region64: #{custom-call.13} parent=57 // pred_check_branch
            %760 = sbr.rel target = $region66
          $region65: #{custom-call.13} parent=57 // pred_region
            loop: start=0, step=1, limit=1
            $region67: #{custom-call.13} parent=65 // loop_pre_header
              _
            $region68: #{custom-call.13} parent=65 // loop_header
              %s763 = sphi 0, %s767
              %p764 = scmp.ge.s32.totalorder %s763, 1
              %s768 = sphi %s747, %s747
              %s769 = sphi %s754, %s754
            $region69: #{custom-call.13} parent=65 // loop_header_branch
              %766 = sbr.rel (%p764) target = $region73
            $region70: #{custom-call.13} parent=65 // loop_body
              %v770 = vld [vmem:[%s768] sm:$0xff]
              %771 = vst [vmem:[%s769] sm:$0xff] %v770
              %v772 = vld [vmem:[%s768 + $0x8] sm:$0xff]
              %773 = vst [vmem:[%s769 + $0x8] sm:$0xff] %v772
              %v774 = vld [vmem:[%s768 + $0x10] sm:$0xff]
              %775 = vst [vmem:[%s769 + $0x10] sm:$0xff] %v774
              %v776 = vld [vmem:[%s768 + $0x18] sm:$0xff]
              %777 = vst [vmem:[%s769 + $0x18] sm:$0xff] %v776
            $region71: #{custom-call.13} parent=65 // loop_footer
              %s767 = sadd.s32 1, %s763
            $region72: #{custom-call.13} parent=65 // loop_footer_branch
              %762 = sbr.rel target = $region68
            $region73: #{custom-call.13} parent=65 // loop_exit
              _
          $region66: #{custom-call.13} parent=57 // pred_fallthru
            _
        $region58: #{custom-call.13} parent=53 // pred_fallthru
          _
        %798 = vnop
      $region54: #{custom-call.13} parent=5 // pred_fallthru
        _
      %p799 = scmp.le.s32.totalorder 2, %s3
      // Predicated region
      $region89: #{custom-call.13} parent=5 // pred_check
        %p800 = pneg %p799
      $region90: #{custom-call.13} parent=5 // pred_check_branch
        %802 = sbr.rel (%p800) target = $region92
      $region91: #{custom-call.13} parent=5 // pred_region
        %s803 = ssub.s32 %s3, 2
        %s804 = sand.u32 %s9, 1
        %s805 = sand.u32 %s9, 1
        %s806 = smul.addr %s805, 32
        %s807 = scalar_lea.vmem [#allocation1], %s806
      $region92: #{custom-call.13} parent=5 // pred_fallthru
        _
    $region6: #{custom-call.13} parent=1 // loop_footer
      %s7 = sadd.s32 1, %s3
    $region7: #{custom-call.13} parent=1 // loop_footer_branch
      %2 = sbr.rel target = $region3
    $region8: #{custom-call.13} parent=1 // loop_exit
      _

// kernel: custom-call.10
$region0: #{custom-call.10}
  %s0 = inlined_call_operand.vmem [shape: f32[2,1,32,32], index: 0, kind: input, shape index: {}]
  %s1 = inlined_call_operand.vmem [shape: f32[2,1,32,32], index: 1, kind: output, shape index: {}]
  $region1: #{custom-call.10} parent=0
    #allocation0 [shape = 'u8[32768]{0}', space=vmem, size = 0x8000, scoped, tag = 'operand span for operand 0']
    #allocation1 [shape = 'u8[32768]{0}', space=vmem, size = 0x8000, scoped, tag = 'operand span for operand 1']
    loop: start=0, step=1, limit=4
    $region2: #{custom-call.10} parent=1 // loop_pre_header
      _
    $region3: #{custom-call.10} parent=1 // loop_header
      %s3 = sphi 0, %s7
      %p4 = scmp.ge.s32.totalorder %s3, 4
      %s10 = sphi 0, %s36
      %s11 = sphi 0, %s32
      %s12 = sphi 0, %s28
      %s13 = sphi 0, %s24
      %s14 = sphi 0, %s10
      %s15 = sphi 0, %s11
      %s16 = sphi 0, %s12
      %s17 = sphi 0, %s13
      %s18 = sphi 0, %s14
      %s19 = sphi 0, %s15
      %s20 = sphi 0, %s16
      %s21 = sphi 0, %s17
    $region4: #{custom-call.10} parent=1 // loop_header_branch
      %6 = sbr.rel (%p4) target = $region8
    $region5: #{custom-call.10} parent=1 // loop_body
      %s8 = ssub.s32 %s3, 1
      %s9 = ssub.s32 %s3, 2
      %s22 = sadd.s32 1, %s13
      %p23 = scmp.ge.s32.totalorder %s22, 1
      %s24 = scalar_select %p23, 0, %s22
      %s25 = sadd.s32 1, %s12
      %s26 = scalar_select %p23, %s25, %s12
      %p27 = scmp.ge.s32.totalorder %s26, 1
      %s28 = scalar_select %p27, 0, %s26
      %s29 = sadd.s32 1, %s11
      %s30 = scalar_select %p27, %s29, %s11
      %p31 = scmp.ge.s32.totalorder %s30, 1
      %s32 = scalar_select %p31, 0, %s30
      %s33 = sadd.s32 1, %s10
      %s34 = scalar_select %p31, %s33, %s10
      %p35 = scmp.ge.s32.totalorder %s34, 2
      %s36 = scalar_select %p35, 0, %s34
      %p37 = scmp.le.s32.totalorder 1, %s3
      %p38 = scmp.lt.s32.totalorder %s3, 3
      %p39 = pnand %p37, %p38
      %p40 = pneg %p39
      // Predicated region
      $region9: #{custom-call.10} parent=5 // pred_check
        _
      $region10: #{custom-call.10} parent=5 // pred_check_branch
        %42 = sbr.rel (%p39) target = $region12
      $region11: #{custom-call.10} parent=5 // pred_region
        %s43 = ssub.s32 %s3, 1
      $region12: #{custom-call.10} parent=5 // pred_fallthru
        _
      %p44 = scmp.lt.s32.totalorder %s3, 2
      // Predicated region
      $region13: #{custom-call.10} parent=5 // pred_check
        %p45 = pneg %p44
      $region14: #{custom-call.10} parent=5 // pred_check_branch
        %47 = sbr.rel (%p45) target = $region16
      $region15: #{custom-call.10} parent=5 // pred_region
        %s48 = sand.u32 %s3, 1
        %s49 = sand.u32 %s3, 1
        %s50 = smul.addr %s49, 32
        %s51 = scalar_lea.vmem [#allocation0], %s50
        %s52 = sadd.s32 %s13, %s12
        %s53 = smul.addr %s11, 4
        %s54 = sadd.s32 %s52, %s53
        %s55 = smul.addr %s10, 4
        %s56 = sadd.s32 %s54, %s55
        %s57 = smul.addr %s56, 8
        %s58 = scalar_lea.vmem %s0, %s57
        // Predicated region
        $region17: #{custom-call.10} parent=15 // pred_check
          _
        $region18: #{custom-call.10} parent=15 // pred_check_branch
          %60 = sbr.rel (0) target = $region20
        $region19: #{custom-call.10} parent=15 // pred_region
          // Predicated region
          $region21: #{custom-call.10} parent=19 // pred_check
            _
          $region22: #{custom-call.10} parent=19 // pred_check_branch
            %62 = sbr.rel (0) target = $region24
          $region23: #{custom-call.10} parent=19 // pred_region
            // Predicated region
            $region36: #{custom-call.10} parent=23 // pred_check
              _
            $region37: #{custom-call.10} parent=23 // pred_check_branch
              %83 = sbr.rel (0) target = $region39
            $region38: #{custom-call.10} parent=23 // pred_region
              loop: start=0, step=1, limit=1
              $region40: #{custom-call.10} parent=38 // loop_pre_header
                _
              $region41: #{custom-call.10} parent=38 // loop_header
                %s85 = sphi 0, %s89
                %p86 = scmp.ge.s32.totalorder %s85, 1
                %s90 = sphi %s58, %s58
                %s91 = sphi %s51, %s51
              $region42: #{custom-call.10} parent=38 // loop_header_branch
                %88 = sbr.rel (%p86) target = $region46
              $region43: #{custom-call.10} parent=38 // loop_body
                %v92 = vld [vmem:[%s90] sm:$0xff]
                %93 = vst [vmem:[%s91] sm:$0xff] %v92
                %v94 = vld [vmem:[%s90 + $0x8] sm:$0xff]
                %95 = vst [vmem:[%s91 + $0x8] sm:$0xff] %v94
                %v96 = vld [vmem:[%s90 + $0x10] sm:$0xff]
                %97 = vst [vmem:[%s91 + $0x10] sm:$0xff] %v96
                %v98 = vld [vmem:[%s90 + $0x18] sm:$0xff]
                %99 = vst [vmem:[%s91 + $0x18] sm:$0xff] %v98
              $region44: #{custom-call.10} parent=38 // loop_footer
                %s89 = sadd.s32 1, %s85
              $region45: #{custom-call.10} parent=38 // loop_footer_branch
                %84 = sbr.rel target = $region41
              $region46: #{custom-call.10} parent=38 // loop_exit
                _
            $region39: #{custom-call.10} parent=23 // pred_fallthru
              _
            // Predicated region
            $region47: #{custom-call.10} parent=23 // pred_check
              _
            $region48: #{custom-call.10} parent=23 // pred_check_branch
              %101 = sbr.rel target = $region50
            $region49: #{custom-call.10} parent=23 // pred_region
              _
            $region50: #{custom-call.10} parent=23 // pred_fallthru
              _
          $region24: #{custom-call.10} parent=19 // pred_fallthru
            _
          // Predicated region
          $region25: #{custom-call.10} parent=19 // pred_check
            _
          $region26: #{custom-call.10} parent=19 // pred_check_branch
            %64 = sbr.rel target = $region28
          $region27: #{custom-call.10} parent=19 // pred_region
            loop: start=0, step=1, limit=1
            $region29: #{custom-call.10} parent=27 // loop_pre_header
              _
            $region30: #{custom-call.10} parent=27 // loop_header
              %s67 = sphi 0, %s71
              %p68 = scmp.ge.s32.totalorder %s67, 1
              %s72 = sphi %s58, %s58
              %s73 = sphi %s51, %s51
            $region31: #{custom-call.10} parent=27 // loop_header_branch
              %70 = sbr.rel (%p68) target = $region35
            $region32: #{custom-call.10} parent=27 // loop_body
              %v74 = vld [vmem:[%s72] sm:$0xff]
              %75 = vst [vmem:[%s73] sm:$0xff] %v74
              %v76 = vld [vmem:[%s72 + $0x8] sm:$0xff]
              %77 = vst [vmem:[%s73 + $0x8] sm:$0xff] %v76
              %v78 = vld [vmem:[%s72 + $0x10] sm:$0xff]
              %79 = vst [vmem:[%s73 + $0x10] sm:$0xff] %v78
              %v80 = vld [vmem:[%s72 + $0x18] sm:$0xff]
              %81 = vst [vmem:[%s73 + $0x18] sm:$0xff] %v80
            $region33: #{custom-call.10} parent=27 // loop_footer
              %s71 = sadd.s32 1, %s67
            $region34: #{custom-call.10} parent=27 // loop_footer_branch
              %66 = sbr.rel target = $region30
            $region35: #{custom-call.10} parent=27 // loop_exit
              _
          $region28: #{custom-call.10} parent=19 // pred_fallthru
            _
        $region20: #{custom-call.10} parent=15 // pred_fallthru
          _
        %102 = vnop
      $region16: #{custom-call.10} parent=5 // pred_fallthru
        _
      %p103 = scmp.le.s32.totalorder 1, %s3
      %p104 = scmp.lt.s32.totalorder %s3, 3
      %p105 = pnand %p103, %p104
      %p106 = pneg %p105
      // Predicated region
      $region51: #{custom-call.10} parent=5 // pred_check
        _
      $region52: #{custom-call.10} parent=5 // pred_check_branch
        %108 = sbr.rel (%p105) target = $region54
      $region53: #{custom-call.10} parent=5 // pred_region
        #allocation2 [shape = 'f32[32,32]{1,0}', space=vmem, size = 0x4000, scoped, tag = 'rescaled input a']
        %s109 = ssub.s32 %s3, 1
        %s110 = sand.u32 %s8, 1
        %s111 = sand.u32 %s8, 1
        %s112 = smul.addr %s111, 32
        %s113 = scalar_lea.vmem [#allocation0], %s112
        %s114 = sand.u32 %s8, 1
        %s115 = sand.u32 %s8, 1
        %s116 = smul.addr %s115, 32
        %s117 = scalar_lea.vmem [#allocation0], %s116
        %s118 = sand.u32 %s8, 1
        %s119 = sand.u32 %s8, 1
        %s120 = smul.addr %s119, 32
        %s121 = scalar_lea.vmem [#allocation1], %s120
        %v122 = vlaneseq
        %v123 = vand.u32 %v122, 127
        %vm124 = vcmp.lt.s32.totalorder %v123, 32
        %v125 = vlaneseq
        %v126 = vshrl.u32 %v125, 7
        %vm128 = vcmp.eq.s32.totalorder %v126, %v123
        %v129 = vld [vmem:[%s113] sm:$0xff]
        %v130 = vsel %vm128, %v129, 0.0
        %131 = vadd.xlane.f32.xlu0 %v130
        %v132 = vpop.xlane.xlu0 %131
        %vm133 = vcmp.le.s32.totalorder %v126, %v123
        %vm134 = vmand %vm133, %vm124
        %v135 = vsel %vm134, %v129, 0.0
        %v136 = vrcp.pop %v132
        %v137 = vmul.f32 %v135, %v136
        %138 = vst [vmem:[#allocation2] sm:$0xff] %v137
        %s139 = scalar_lea.vmem %s113, 8 [#allocation0]
        %s140 = scalar_lea.vmem [#allocation2], 8
        %v141 = vlaneseq
        %v142 = vshrl.u32 %v141, 7
        %v143 = vadd.s32 %v142, 8
        %vm144 = vcmp.eq.s32.totalorder %v143, %v123
        %v145 = vld [vmem:[%s139] sm:$0xff]
        %v146 = vsel %vm144, %v145, 0.0
        %147 = vadd.xlane.f32.xlu0 %v146
        %v148 = vpop.xlane.xlu0 %147
        %vm149 = vcmp.le.s32.totalorder %v143, %v123
        %vm150 = vmand %vm149, %vm124
        %v151 = vsel %vm150, %v145, 0.0
        %v152 = vrcp.pop %v148
        %v153 = vmul.f32 %v151, %v152
        %154 = vst [vmem:[%s140] sm:$0xff] %v153
        %s155 = scalar_lea.vmem %s113, 16 [#allocation0]
        %s156 = scalar_lea.vmem [#allocation2], 16
        %v157 = vlaneseq
        %v158 = vshrl.u32 %v157, 7
        %v159 = vadd.s32 %v158, 16
        %vm160 = vcmp.eq.s32.totalorder %v159, %v123
        %v161 = vld [vmem:[%s155] sm:$0xff]
        %v162 = vsel %vm160, %v161, 0.0
        %163 = vadd.xlane.f32.xlu0 %v162
        %v164 = vpop.xlane.xlu0 %163
        %vm165 = vcmp.le.s32.totalorder %v159, %v123
        %vm166 = vmand %vm165, %vm124
        %v167 = vsel %vm166, %v161, 0.0
        %v168 = vrcp.pop %v164
        %v169 = vmul.f32 %v167, %v168
        %170 = vst [vmem:[%s156] sm:$0xff] %v169
        %s171 = scalar_lea.vmem %s113, 24 [#allocation0]
        %s172 = scalar_lea.vmem [#allocation2], 24
        %v173 = vlaneseq
        %v174 = vshrl.u32 %v173, 7
        %v175 = vadd.s32 %v174, 24
        %vm176 = vcmp.eq.s32.totalorder %v175, %v123
        %v177 = vld [vmem:[%s171] sm:$0xff]
        %v178 = vsel %vm176, %v177, 0.0
        %179 = vadd.xlane.f32.xlu0 %v178
        %v180 = vpop.xlane.xlu0 %179
        %vm181 = vcmp.le.s32.totalorder %v175, %v123
        %vm182 = vmand %vm181, %vm124
        %v183 = vsel %vm182, %v177, 0.0
        %v184 = vrcp.pop %v180
        %v185 = vmul.f32 %v183, %v184
        %186 = vst [vmem:[%s172] sm:$0xff] %v185
        %v187 = vlaneseq
        %v188 = vand.u32 %v187, 127
        %v189 = vlaneseq
        %v190 = vshrl.u32 %v189, 7
        %vm192 = vcmp.eq.s32.totalorder %v188, %v190
        %v193 = vsel %vm192, -1.0, 0.0
        %v194 = vlaneseq
        %v195 = vand.u32 %v194, 127
        %v196 = vlaneseq
        %v197 = vshrl.u32 %v196, 7
        %v198 = vadd.s32 %v197, 8
        %vm199 = vcmp.eq.s32.totalorder %v195, %v198
        %v200 = vsel %vm199, -1.0, 0.0
        %v201 = vlaneseq
        %v202 = vand.u32 %v201, 127
        %v203 = vlaneseq
        %v204 = vshrl.u32 %v203, 7
        %v205 = vadd.s32 %v204, 16
        %vm206 = vcmp.eq.s32.totalorder %v202, %v205
        %v207 = vsel %vm206, -1.0, 0.0
        %v208 = vlaneseq
        %v209 = vand.u32 %v208, 127
        %v210 = vlaneseq
        %v211 = vshrl.u32 %v210, 7
        %v212 = vadd.s32 %v211, 24
        %vm213 = vcmp.eq.s32.totalorder %v209, %v212
        %v214 = vlaneseq
        %v215 = vand.u32 %v214, 127
        %vm216 = vcmp.eq.s32.totalorder %v215, 31
        %v217 = vsel %vm216, 1.0, -1.0
        %v218 = vsel %vm213, %v217, 0.0
        %s219 = scalar_lea.vmem [#allocation2], 30
        %v220 = vld [vmem:[%s219] ss:$0 sm:$0xff]
        %v221 = vxor.u32 %v220, 2147483648
        %v222 = vlaneseq
        %v223 = vand.u32 %v222, 127
        %vm224 = vcmp.eq.s32.totalorder %v223, 30
        %v225 = vmul.f32 %v221, %v218
        %226 = vadd.xlane.f32.xlu0 %v225
        %v227 = vpop.xlane.xlu0 %226
        %v228 = vsel %vm224, %v227, %v218
        %s229 = scalar_lea.vmem [#allocation2], 29
        %v230 = vld [vmem:[%s229] ss:$0 sm:$0xff]
        %v231 = vxor.u32 %v230, 2147483648
        %v232 = vlaneseq
        %v233 = vand.u32 %v232, 127
        %vm234 = vcmp.eq.s32.totalorder %v233, 29
        %v235 = vmul.f32 %v231, %v228
        %236 = vadd.xlane.f32.xlu0 %v235
        %v237 = vpop.xlane.xlu0 %236
        %v238 = vsel %vm234, %v237, %v228
        %s239 = scalar_lea.vmem [#allocation2], 28
        %v240 = vld [vmem:[%s239] ss:$0 sm:$0xff]
        %v241 = vxor.u32 %v240, 2147483648
        %v242 = vlaneseq
        %v243 = vand.u32 %v242, 127
        %vm244 = vcmp.eq.s32.totalorder %v243, 28
        %v245 = vmul.f32 %v241, %v238
        %246 = vadd.xlane.f32.xlu0 %v245
        %v247 = vpop.xlane.xlu0 %246
        %v248 = vsel %vm244, %v247, %v238
        %s249 = scalar_lea.vmem [#allocation2], 27
        %v250 = vld [vmem:[%s249] ss:$0 sm:$0xff]
        %v251 = vxor.u32 %v250, 2147483648
        %v252 = vlaneseq
        %v253 = vand.u32 %v252, 127
        %vm254 = vcmp.eq.s32.totalorder %v253, 27
        %v255 = vmul.f32 %v251, %v248
        %256 = vadd.xlane.f32.xlu0 %v255
        %v257 = vpop.xlane.xlu0 %256
        %v258 = vsel %vm254, %v257, %v248
        %s259 = scalar_lea.vmem [#allocation2], 26
        %v260 = vld [vmem:[%s259] ss:$0 sm:$0xff]
        %v261 = vxor.u32 %v260, 2147483648
        %v262 = vlaneseq
        %v263 = vand.u32 %v262, 127
        %vm264 = vcmp.eq.s32.totalorder %v263, 26
        %v265 = vmul.f32 %v261, %v258
        %266 = vadd.xlane.f32.xlu0 %v265
        %v267 = vpop.xlane.xlu0 %266
        %v268 = vsel %vm264, %v267, %v258
        %s269 = scalar_lea.vmem [#allocation2], 25
        %v270 = vld [vmem:[%s269] ss:$0 sm:$0xff]
        %v271 = vxor.u32 %v270, 2147483648
        %v272 = vlaneseq
        %v273 = vand.u32 %v272, 127
        %vm274 = vcmp.eq.s32.totalorder %v273, 25
        %v275 = vmul.f32 %v271, %v268
        %276 = vadd.xlane.f32.xlu0 %v275
        %v277 = vpop.xlane.xlu0 %276
        %v278 = vsel %vm274, %v277, %v268
        %s279 = scalar_lea.vmem [#allocation2], 24
        %v280 = vld [vmem:[%s279] ss:$0 sm:$0xff]
        %v281 = vxor.u32 %v280, 2147483648
        %v282 = vlaneseq
        %v283 = vand.u32 %v282, 127
        %vm284 = vcmp.eq.s32.totalorder %v283, 24
        %v285 = vmul.f32 %v281, %v278
        %286 = vadd.xlane.f32.xlu0 %v285
        %v287 = vpop.xlane.xlu0 %286
        %v288 = vsel %vm284, %v287, %v278
        %s289 = scalar_lea.vmem [#allocation2], 23
        %v290 = vld [vmem:[%s289] ss:$0 sm:$0xff]
        %v291 = vxor.u32 %v290, 2147483648
        %v292 = vlaneseq
        %v293 = vand.u32 %v292, 127
        %vm294 = vcmp.eq.s32.totalorder %v293, 23
        %v295 = vmul.f32 %v291, %v207
        %296 = vadd.xlane.f32.xlu0 %v295
        %v297 = vpop.xlane.xlu0 %296
        %v298 = vsel %vm294, %v297, %v207
        %v299 = vmul.f32 %v291, %v288
        %300 = vadd.xlane.f32.xlu0 %v299
        %v301 = vpop.xlane.xlu0 %300
        %v302 = vsel %vm294, %v301, %v288
        %s303 = scalar_lea.vmem [#allocation2], 22
        %v304 = vld [vmem:[%s303] ss:$0 sm:$0xff]
        %v305 = vxor.u32 %v304, 2147483648
        %v306 = vlaneseq
        %v307 = vand.u32 %v306, 127
        %vm308 = vcmp.eq.s32.totalorder %v307, 22
        %v309 = vmul.f32 %v305, %v298
        %310 = vadd.xlane.f32.xlu0 %v309
        %v311 = vpop.xlane.xlu0 %310
        %v312 = vsel %vm308, %v311, %v298
        %v313 = vmul.f32 %v305, %v302
        %314 = vadd.xlane.f32.xlu0 %v313
        %v315 = vpop.xlane.xlu0 %314
        %v316 = vsel %vm308, %v315, %v302
        %s317 = scalar_lea.vmem [#allocation2], 21
        %v318 = vld [vmem:[%s317] ss:$0 sm:$0xff]
        %v319 = vxor.u32 %v318, 2147483648
        %v320 = vlaneseq
        %v321 = vand.u32 %v320, 127
        %vm322 = vcmp.eq.s32.totalorder %v321, 21
        %v323 = vmul.f32 %v319, %v312
        %324 = vadd.xlane.f32.xlu0 %v323
        %v325 = vpop.xlane.xlu0 %324
        %v326 = vsel %vm322, %v325, %v312
        %v327 = vmul.f32 %v319, %v316
        %328 = vadd.xlane.f32.xlu0 %v327
        %v329 = vpop.xlane.xlu0 %328
        %v330 = vsel %vm322, %v329, %v316
        %s331 = scalar_lea.vmem [#allocation2], 20
        %v332 = vld [vmem:[%s331] ss:$0 sm:$0xff]
        %v333 = vxor.u32 %v332, 2147483648
        %v334 = vlaneseq
        %v335 = vand.u32 %v334, 127
        %vm336 = vcmp.eq.s32.totalorder %v335, 20
        %v337 = vmul.f32 %v333, %v326
        %338 = vadd.xlane.f32.xlu0 %v337
        %v339 = vpop.xlane.xlu0 %338
        %v340 = vsel %vm336, %v339, %v326
        %v341 = vmul.f32 %v333, %v330
        %342 = vadd.xlane.f32.xlu0 %v341
        %v343 = vpop.xlane.xlu0 %342
        %v344 = vsel %vm336, %v343, %v330
        %s345 = scalar_lea.vmem [#allocation2], 19
        %v346 = vld [vmem:[%s345] ss:$0 sm:$0xff]
        %v347 = vxor.u32 %v346, 2147483648
        %v348 = vlaneseq
        %v349 = vand.u32 %v348, 127
        %vm350 = vcmp.eq.s32.totalorder %v349, 19
        %v351 = vmul.f32 %v347, %v340
        %352 = vadd.xlane.f32.xlu0 %v351
        %v353 = vpop.xlane.xlu0 %352
        %v354 = vsel %vm350, %v353, %v340
        %v355 = vmul.f32 %v347, %v344
        %356 = vadd.xlane.f32.xlu0 %v355
        %v357 = vpop.xlane.xlu0 %356
        %v358 = vsel %vm350, %v357, %v344
        %s359 = scalar_lea.vmem [#allocation2], 18
        %v360 = vld [vmem:[%s359] ss:$0 sm:$0xff]
        %v361 = vxor.u32 %v360, 2147483648
        %v362 = vlaneseq
        %v363 = vand.u32 %v362, 127
        %vm364 = vcmp.eq.s32.totalorder %v363, 18
        %v365 = vmul.f32 %v361, %v354
        %366 = vadd.xlane.f32.xlu0 %v365
        %v367 = vpop.xlane.xlu0 %366
        %v368 = vsel %vm364, %v367, %v354
        %v369 = vmul.f32 %v361, %v358
        %370 = vadd.xlane.f32.xlu0 %v369
        %v371 = vpop.xlane.xlu0 %370
        %v372 = vsel %vm364, %v371, %v358
        %s373 = scalar_lea.vmem [#allocation2], 17
        %v374 = vld [vmem:[%s373] ss:$0 sm:$0xff]
        %v375 = vxor.u32 %v374, 2147483648
        %v376 = vlaneseq
        %v377 = vand.u32 %v376, 127
        %vm378 = vcmp.eq.s32.totalorder %v377, 17
        %v379 = vmul.f32 %v375, %v368
        %380 = vadd.xlane.f32.xlu0 %v379
        %v381 = vpop.xlane.xlu0 %380
        %v382 = vsel %vm378, %v381, %v368
        %v383 = vmul.f32 %v375, %v372
        %384 = vadd.xlane.f32.xlu0 %v383
        %v385 = vpop.xlane.xlu0 %384
        %v386 = vsel %vm378, %v385, %v372
        %s387 = scalar_lea.vmem [#allocation2], 16
        %v388 = vld [vmem:[%s387] ss:$0 sm:$0xff]
        %v389 = vxor.u32 %v388, 2147483648
        %v390 = vlaneseq
        %v391 = vand.u32 %v390, 127
        %vm392 = vcmp.eq.s32.totalorder %v391, 16
        %v393 = vmul.f32 %v389, %v382
        %394 = vadd.xlane.f32.xlu0 %v393
        %v395 = vpop.xlane.xlu0 %394
        %v396 = vsel %vm392, %v395, %v382
        %v397 = vmul.f32 %v389, %v386
        %398 = vadd.xlane.f32.xlu0 %v397
        %v399 = vpop.xlane.xlu0 %398
        %v400 = vsel %vm392, %v399, %v386
        %s401 = scalar_lea.vmem [#allocation2], 15
        %v402 = vld [vmem:[%s401] ss:$0 sm:$0xff]
        %v403 = vxor.u32 %v402, 2147483648
        %v404 = vlaneseq
        %v405 = vand.u32 %v404, 127
        %vm406 = vcmp.eq.s32.totalorder %v405, 15
        %v407 = vmul.f32 %v403, %v200
        %408 = vadd.xlane.f32.xlu0 %v407
        %v409 = vpop.xlane.xlu0 %408
        %v410 = vsel %vm406, %v409, %v200
        %v411 = vmul.f32 %v403, %v396
        %412 = vadd.xlane.f32.xlu0 %v411
        %v413 = vpop.xlane.xlu0 %412
        %v414 = vsel %vm406, %v413, %v396
        %v415 = vmul.f32 %v403, %v400
        %416 = vadd.xlane.f32.xlu0 %v415
        %v417 = vpop.xlane.xlu0 %416
        %v418 = vsel %vm406, %v417, %v400
        %s419 = scalar_lea.vmem [#allocation2], 14
        %v420 = vld [vmem:[%s419] ss:$0 sm:$0xff]
        %v421 = vxor.u32 %v420, 2147483648
        %v422 = vlaneseq
        %v423 = vand.u32 %v422, 127
        %vm424 = vcmp.eq.s32.totalorder %v423, 14
        %v425 = vmul.f32 %v421, %v410
        %426 = vadd.xlane.f32.xlu0 %v425
        %v427 = vpop.xlane.xlu0 %426
        %v428 = vsel %vm424, %v427, %v410
        %v429 = vmul.f32 %v421, %v414
        %430 = vadd.xlane.f32.xlu0 %v429
        %v431 = vpop.xlane.xlu0 %430
        %v432 = vsel %vm424, %v431, %v414
        %v433 = vmul.f32 %v421, %v418
        %434 = vadd.xlane.f32.xlu0 %v433
        %v435 = vpop.xlane.xlu0 %434
        %v436 = vsel %vm424, %v435, %v418
        %s437 = scalar_lea.vmem [#allocation2], 13
        %v438 = vld [vmem:[%s437] ss:$0 sm:$0xff]
        %v439 = vxor.u32 %v438, 2147483648
        %v440 = vlaneseq
        %v441 = vand.u32 %v440, 127
        %vm442 = vcmp.eq.s32.totalorder %v441, 13
        %v443 = vmul.f32 %v439, %v428
        %444 = vadd.xlane.f32.xlu0 %v443
        %v445 = vpop.xlane.xlu0 %444
        %v446 = vsel %vm442, %v445, %v428
        %v447 = vmul.f32 %v439, %v432
        %448 = vadd.xlane.f32.xlu0 %v447
        %v449 = vpop.xlane.xlu0 %448
        %v450 = vsel %vm442, %v449, %v432
        %v451 = vmul.f32 %v439, %v436
        %452 = vadd.xlane.f32.xlu0 %v451
        %v453 = vpop.xlane.xlu0 %452
        %v454 = vsel %vm442, %v453, %v436
        %s455 = scalar_lea.vmem [#allocation2], 12
        %v456 = vld [vmem:[%s455] ss:$0 sm:$0xff]
        %v457 = vxor.u32 %v456, 2147483648
        %v458 = vlaneseq
        %v459 = vand.u32 %v458, 127
        %vm460 = vcmp.eq.s32.totalorder %v459, 12
        %v461 = vmul.f32 %v457, %v446
        %462 = vadd.xlane.f32.xlu0 %v461
        %v463 = vpop.xlane.xlu0 %462
        %v464 = vsel %vm460, %v463, %v446
        %v465 = vmul.f32 %v457, %v450
        %466 = vadd.xlane.f32.xlu0 %v465
        %v467 = vpop.xlane.xlu0 %466
        %v468 = vsel %vm460, %v467, %v450
        %v469 = vmul.f32 %v457, %v454
        %470 = vadd.xlane.f32.xlu0 %v469
        %v471 = vpop.xlane.xlu0 %470
        %v472 = vsel %vm460, %v471, %v454
        %s473 = scalar_lea.vmem [#allocation2], 11
        %v474 = vld [vmem:[%s473] ss:$0 sm:$0xff]
        %v475 = vxor.u32 %v474, 2147483648
        %v476 = vlaneseq
        %v477 = vand.u32 %v476, 127
        %vm478 = vcmp.eq.s32.totalorder %v477, 11
        %v479 = vmul.f32 %v475, %v464
        %480 = vadd.xlane.f32.xlu0 %v479
        %v481 = vpop.xlane.xlu0 %480
        %v482 = vsel %vm478, %v481, %v464
        %v483 = vmul.f32 %v475, %v468
        %484 = vadd.xlane.f32.xlu0 %v483
        %v485 = vpop.xlane.xlu0 %484
        %v486 = vsel %vm478, %v485, %v468
        %v487 = vmul.f32 %v475, %v472
        %488 = vadd.xlane.f32.xlu0 %v487
        %v489 = vpop.xlane.xlu0 %488
        %v490 = vsel %vm478, %v489, %v472
        %s491 = scalar_lea.vmem [#allocation2], 10
        %v492 = vld [vmem:[%s491] ss:$0 sm:$0xff]
        %v493 = vxor.u32 %v492, 2147483648
        %v494 = vlaneseq
        %v495 = vand.u32 %v494, 127
        %vm496 = vcmp.eq.s32.totalorder %v495, 10
        %v497 = vmul.f32 %v493, %v482
        %498 = vadd.xlane.f32.xlu0 %v497
        %v499 = vpop.xlane.xlu0 %498
        %v500 = vsel %vm496, %v499, %v482
        %v501 = vmul.f32 %v493, %v486
        %502 = vadd.xlane.f32.xlu0 %v501
        %v503 = vpop.xlane.xlu0 %502
        %v504 = vsel %vm496, %v503, %v486
        %v505 = vmul.f32 %v493, %v490
        %506 = vadd.xlane.f32.xlu0 %v505
        %v507 = vpop.xlane.xlu0 %506
        %v508 = vsel %vm496, %v507, %v490
        %s509 = scalar_lea.vmem [#allocation2], 9
        %v510 = vld [vmem:[%s509] ss:$0 sm:$0xff]
        %v511 = vxor.u32 %v510, 2147483648
        %v512 = vlaneseq
        %v513 = vand.u32 %v512, 127
        %vm514 = vcmp.eq.s32.totalorder %v513, 9
        %v515 = vmul.f32 %v511, %v500
        %516 = vadd.xlane.f32.xlu0 %v515
        %v517 = vpop.xlane.xlu0 %516
        %v518 = vsel %vm514, %v517, %v500
        %v519 = vmul.f32 %v511, %v504
        %520 = vadd.xlane.f32.xlu0 %v519
        %v521 = vpop.xlane.xlu0 %520
        %v522 = vsel %vm514, %v521, %v504
        %v523 = vmul.f32 %v511, %v508
        %524 = vadd.xlane.f32.xlu0 %v523
        %v525 = vpop.xlane.xlu0 %524
        %v526 = vsel %vm514, %v525, %v508
        %s527 = scalar_lea.vmem [#allocation2], 8
        %v528 = vld [vmem:[%s527] ss:$0 sm:$0xff]
        %v529 = vxor.u32 %v528, 2147483648
        %v530 = vlaneseq
        %v531 = vand.u32 %v530, 127
        %vm532 = vcmp.eq.s32.totalorder %v531, 8
        %v533 = vmul.f32 %v529, %v518
        %534 = vadd.xlane.f32.xlu0 %v533
        %v535 = vpop.xlane.xlu0 %534
        %v536 = vsel %vm532, %v535, %v518
        %v537 = vmul.f32 %v529, %v522
        %538 = vadd.xlane.f32.xlu0 %v537
        %v539 = vpop.xlane.xlu0 %538
        %v540 = vsel %vm532, %v539, %v522
        %v541 = vmul.f32 %v529, %v526
        %542 = vadd.xlane.f32.xlu0 %v541
        %v543 = vpop.xlane.xlu0 %542
        %v544 = vsel %vm532, %v543, %v526
        %s545 = scalar_lea.vmem [#allocation2], 7
        %v546 = vld [vmem:[%s545] ss:$0 sm:$0xff]
        %v547 = vxor.u32 %v546, 2147483648
        %v548 = vlaneseq
        %v549 = vand.u32 %v548, 127
        %vm550 = vcmp.eq.s32.totalorder %v549, 7
        %v551 = vmul.f32 %v547, %v193
        %552 = vadd.xlane.f32.xlu0 %v551
        %v553 = vpop.xlane.xlu0 %552
        %v554 = vsel %vm550, %v553, %v193
        %v555 = vmul.f32 %v547, %v536
        %556 = vadd.xlane.f32.xlu0 %v555
        %v557 = vpop.xlane.xlu0 %556
        %v558 = vsel %vm550, %v557, %v536
        %v559 = vmul.f32 %v547, %v540
        %560 = vadd.xlane.f32.xlu0 %v559
        %v561 = vpop.xlane.xlu0 %560
        %v562 = vsel %vm550, %v561, %v540
        %v563 = vmul.f32 %v547, %v544
        %564 = vadd.xlane.f32.xlu0 %v563
        %v565 = vpop.xlane.xlu0 %564
        %v566 = vsel %vm550, %v565, %v544
        %s567 = scalar_lea.vmem [#allocation2], 6
        %v568 = vld [vmem:[%s567] ss:$0 sm:$0xff]
        %v569 = vxor.u32 %v568, 2147483648
        %v570 = vlaneseq
        %v571 = vand.u32 %v570, 127
        %vm572 = vcmp.eq.s32.totalorder %v571, 6
        %v573 = vmul.f32 %v569, %v554
        %574 = vadd.xlane.f32.xlu0 %v573
        %v575 = vpop.xlane.xlu0 %574
        %v576 = vsel %vm572, %v575, %v554
        %v577 = vmul.f32 %v569, %v558
        %578 = vadd.xlane.f32.xlu0 %v577
        %v579 = vpop.xlane.xlu0 %578
        %v580 = vsel %vm572, %v579, %v558
        %v581 = vmul.f32 %v569, %v562
        %582 = vadd.xlane.f32.xlu0 %v581
        %v583 = vpop.xlane.xlu0 %582
        %v584 = vsel %vm572, %v583, %v562
        %v585 = vmul.f32 %v569, %v566
        %586 = vadd.xlane.f32.xlu0 %v585
        %v587 = vpop.xlane.xlu0 %586
        %v588 = vsel %vm572, %v587, %v566
        %s589 = scalar_lea.vmem [#allocation2], 5
        %v590 = vld [vmem:[%s589] ss:$0 sm:$0xff]
        %v591 = vxor.u32 %v590, 2147483648
        %v592 = vlaneseq
        %v593 = vand.u32 %v592, 127
        %vm594 = vcmp.eq.s32.totalorder %v593, 5
        %v595 = vmul.f32 %v591, %v576
        %596 = vadd.xlane.f32.xlu0 %v595
        %v597 = vpop.xlane.xlu0 %596
        %v598 = vsel %vm594, %v597, %v576
        %v599 = vmul.f32 %v591, %v580
        %600 = vadd.xlane.f32.xlu0 %v599
        %v601 = vpop.xlane.xlu0 %600
        %v602 = vsel %vm594, %v601, %v580
        %v603 = vmul.f32 %v591, %v584
        %604 = vadd.xlane.f32.xlu0 %v603
        %v605 = vpop.xlane.xlu0 %604
        %v606 = vsel %vm594, %v605, %v584
        %v607 = vmul.f32 %v591, %v588
        %608 = vadd.xlane.f32.xlu0 %v607
        %v609 = vpop.xlane.xlu0 %608
        %v610 = vsel %vm594, %v609, %v588
        %s611 = scalar_lea.vmem [#allocation2], 4
        %v612 = vld [vmem:[%s611] ss:$0 sm:$0xff]
        %v613 = vxor.u32 %v612, 2147483648
        %v614 = vlaneseq
        %v615 = vand.u32 %v614, 127
        %vm616 = vcmp.eq.s32.totalorder %v615, 4
        %v617 = vmul.f32 %v613, %v598
        %618 = vadd.xlane.f32.xlu0 %v617
        %v619 = vpop.xlane.xlu0 %618
        %v620 = vsel %vm616, %v619, %v598
        %v621 = vmul.f32 %v613, %v602
        %622 = vadd.xlane.f32.xlu0 %v621
        %v623 = vpop.xlane.xlu0 %622
        %v624 = vsel %vm616, %v623, %v602
        %v625 = vmul.f32 %v613, %v606
        %626 = vadd.xlane.f32.xlu0 %v625
        %v627 = vpop.xlane.xlu0 %626
        %v628 = vsel %vm616, %v627, %v606
        %v629 = vmul.f32 %v613, %v610
        %630 = vadd.xlane.f32.xlu0 %v629
        %v631 = vpop.xlane.xlu0 %630
        %v632 = vsel %vm616, %v631, %v610
        %s633 = scalar_lea.vmem [#allocation2], 3
        %v634 = vld [vmem:[%s633] ss:$0 sm:$0xff]
        %v635 = vxor.u32 %v634, 2147483648
        %v636 = vlaneseq
        %v637 = vand.u32 %v636, 127
        %vm638 = vcmp.eq.s32.totalorder %v637, 3
        %v639 = vmul.f32 %v635, %v620
        %640 = vadd.xlane.f32.xlu0 %v639
        %v641 = vpop.xlane.xlu0 %640
        %v642 = vsel %vm638, %v641, %v620
        %v643 = vmul.f32 %v635, %v624
        %644 = vadd.xlane.f32.xlu0 %v643
        %v645 = vpop.xlane.xlu0 %644
        %v646 = vsel %vm638, %v645, %v624
        %v647 = vmul.f32 %v635, %v628
        %648 = vadd.xlane.f32.xlu0 %v647
        %v649 = vpop.xlane.xlu0 %648
        %v650 = vsel %vm638, %v649, %v628
        %v651 = vmul.f32 %v635, %v632
        %652 = vadd.xlane.f32.xlu0 %v651
        %v653 = vpop.xlane.xlu0 %652
        %v654 = vsel %vm638, %v653, %v632
        %s655 = scalar_lea.vmem [#allocation2], 2
        %v656 = vld [vmem:[%s655] ss:$0 sm:$0xff]
        %v657 = vxor.u32 %v656, 2147483648
        %v658 = vlaneseq
        %v659 = vand.u32 %v658, 127
        %vm660 = vcmp.eq.s32.totalorder %v659, 2
        %v661 = vmul.f32 %v657, %v642
        %662 = vadd.xlane.f32.xlu0 %v661
        %v663 = vpop.xlane.xlu0 %662
        %v664 = vsel %vm660, %v663, %v642
        %v665 = vmul.f32 %v657, %v646
        %666 = vadd.xlane.f32.xlu0 %v665
        %v667 = vpop.xlane.xlu0 %666
        %v668 = vsel %vm660, %v667, %v646
        %v669 = vmul.f32 %v657, %v650
        %670 = vadd.xlane.f32.xlu0 %v669
        %v671 = vpop.xlane.xlu0 %670
        %v672 = vsel %vm660, %v671, %v650
        %v673 = vmul.f32 %v657, %v654
        %674 = vadd.xlane.f32.xlu0 %v673
        %v675 = vpop.xlane.xlu0 %674
        %v676 = vsel %vm660, %v675, %v654
        %s677 = scalar_lea.vmem [#allocation2], 1
        %v678 = vld [vmem:[%s677] ss:$0 sm:$0xff]
        %v679 = vxor.u32 %v678, 2147483648
        %v680 = vlaneseq
        %v681 = vand.u32 %v680, 127
        %vm682 = vcmp.eq.s32.totalorder %v681, 1
        %v683 = vmul.f32 %v679, %v664
        %684 = vadd.xlane.f32.xlu0 %v683
        %v685 = vpop.xlane.xlu0 %684
        %v686 = vsel %vm682, %v685, %v664
        %v687 = vmul.f32 %v679, %v668
        %688 = vadd.xlane.f32.xlu0 %v687
        %v689 = vpop.xlane.xlu0 %688
        %v690 = vsel %vm682, %v689, %v668
        %v691 = vmul.f32 %v679, %v672
        %692 = vadd.xlane.f32.xlu0 %v691
        %v693 = vpop.xlane.xlu0 %692
        %v694 = vsel %vm682, %v693, %v672
        %v695 = vmul.f32 %v679, %v676
        %696 = vadd.xlane.f32.xlu0 %v695
        %v697 = vpop.xlane.xlu0 %696
        %v698 = vsel %vm682, %v697, %v676
        %v699 = vld [vmem:[#allocation2] ss:$0 sm:$0xff]
        %v700 = vxor.u32 %v699, 2147483648
        %v701 = vlaneseq
        %v702 = vand.u32 %v701, 127
        %vm703 = vcmp.eq.s32.totalorder %v702, 0
        %v704 = vmul.f32 %v700, %v686
        %705 = vadd.xlane.f32.xlu0 %v704
        %v706 = vpop.xlane.xlu0 %705
        %v707 = vsel %vm703, %v706, %v686
        %v708 = vmul.f32 %v700, %v690
        %709 = vadd.xlane.f32.xlu0 %v708
        %v710 = vpop.xlane.xlu0 %709
        %v711 = vsel %vm703, %v710, %v690
        %v712 = vmul.f32 %v700, %v694
        %713 = vadd.xlane.f32.xlu0 %v712
        %v714 = vpop.xlane.xlu0 %713
        %v715 = vsel %vm703, %v714, %v694
        %v716 = vmul.f32 %v700, %v698
        %717 = vadd.xlane.f32.xlu0 %v716
        %v718 = vpop.xlane.xlu0 %717
        %v719 = vsel %vm703, %v718, %v698
        %v720 = vrcp.pop %v132
        %v721 = vmul.f32 %v707, %v720
        %vm722 = vweird.f32 %v132
        %v723 = vsel %vm722, %v707, %v721
        %724 = vst [vmem:[%s121] sm:$0xff] %v723
        %v725 = vrcp.pop %v148
        %v726 = vmul.f32 %v711, %v725
        %vm727 = vweird.f32 %v148
        %v728 = vsel %vm727, %v711, %v726
        %s729 = scalar_lea.vmem %s121, 8 [#allocation1]
        %730 = vst [vmem:[%s729] sm:$0xff] %v728
        %v731 = vrcp.pop %v164
        %v732 = vmul.f32 %v715, %v731
        %vm733 = vweird.f32 %v164
        %v734 = vsel %vm733, %v715, %v732
        %s735 = scalar_lea.vmem %s121, 16 [#allocation1]
        %736 = vst [vmem:[%s735] sm:$0xff] %v734
        %v737 = vrcp.pop %v180
        %v738 = vmul.f32 %v719, %v737
        %vm739 = vweird.f32 %v180
        %v740 = vsel %vm739, %v719, %v738
        %s741 = scalar_lea.vmem %s121, 24 [#allocation1]
        %742 = vst [vmem:[%s741] sm:$0xff] %v740
        %s743 = sand.u32 %s8, 1
        %s744 = sand.u32 %s8, 1
        %s745 = smul.addr %s744, 32
        %s746 = scalar_lea.vmem [#allocation1], %s745
        %s747 = sadd.s32 %s17, %s16
        %s748 = smul.addr %s15, 4
        %s749 = sadd.s32 %s747, %s748
        %s750 = smul.addr %s14, 4
        %s751 = sadd.s32 %s749, %s750
        %s752 = smul.addr %s751, 8
        %s753 = scalar_lea.vmem %s1, %s752
        // Predicated region
        $region55: #{custom-call.10} parent=53 // pred_check
          _
        $region56: #{custom-call.10} parent=53 // pred_check_branch
          %755 = sbr.rel (0) target = $region58
        $region57: #{custom-call.10} parent=53 // pred_region
          // Predicated region
          $region59: #{custom-call.10} parent=57 // pred_check
            _
          $region60: #{custom-call.10} parent=57 // pred_check_branch
            %757 = sbr.rel (0) target = $region62
          $region61: #{custom-call.10} parent=57 // pred_region
            // Predicated region
            $region74: #{custom-call.10} parent=61 // pred_check
              _
            $region75: #{custom-call.10} parent=61 // pred_check_branch
              %778 = sbr.rel (0) target = $region77
            $region76: #{custom-call.10} parent=61 // pred_region
              loop: start=0, step=1, limit=1
              $region78: #{custom-call.10} parent=76 // loop_pre_header
                _
              $region79: #{custom-call.10} parent=76 // loop_header
                %s780 = sphi 0, %s784
                %p781 = scmp.ge.s32.totalorder %s780, 1
                %s785 = sphi %s746, %s746
                %s786 = sphi %s753, %s753
              $region80: #{custom-call.10} parent=76 // loop_header_branch
                %783 = sbr.rel (%p781) target = $region84
              $region81: #{custom-call.10} parent=76 // loop_body
                %v787 = vld [vmem:[%s785] sm:$0xff]
                %788 = vst [vmem:[%s786] sm:$0xff] %v787
                %v789 = vld [vmem:[%s785 + $0x8] sm:$0xff]
                %790 = vst [vmem:[%s786 + $0x8] sm:$0xff] %v789
                %v791 = vld [vmem:[%s785 + $0x10] sm:$0xff]
                %792 = vst [vmem:[%s786 + $0x10] sm:$0xff] %v791
                %v793 = vld [vmem:[%s785 + $0x18] sm:$0xff]
                %794 = vst [vmem:[%s786 + $0x18] sm:$0xff] %v793
              $region82: #{custom-call.10} parent=76 // loop_footer
                %s784 = sadd.s32 1, %s780
              $region83: #{custom-call.10} parent=76 // loop_footer_branch
                %779 = sbr.rel target = $region79
              $region84: #{custom-call.10} parent=76 // loop_exit
                _
            $region77: #{custom-call.10} parent=61 // pred_fallthru
              _
            // Predicated region
            $region85: #{custom-call.10} parent=61 // pred_check
              _
            $region86: #{custom-call.10} parent=61 // pred_check_branch
              %796 = sbr.rel target = $region88
            $region87: #{custom-call.10} parent=61 // pred_region
              _
            $region88: #{custom-call.10} parent=61 // pred_fallthru
              _
          $region62: #{custom-call.10} parent=57 // pred_fallthru
            _
          // Predicated region
          $region63: #{custom-call.10} parent=57 // pred_check
            _
          $region64: #{custom-call.10} parent=57 // pred_check_branch
            %759 = sbr.rel target = $region66
          $region65: #{custom-call.10} parent=57 // pred_region
            loop: start=0, step=1, limit=1
            $region67: #{custom-call.10} parent=65 // loop_pre_header
              _
            $region68: #{custom-call.10} parent=65 // loop_header
              %s762 = sphi 0, %s766
              %p763 = scmp.ge.s32.totalorder %s762, 1
              %s767 = sphi %s746, %s746
              %s768 = sphi %s753, %s753
            $region69: #{custom-call.10} parent=65 // loop_header_branch
              %765 = sbr.rel (%p763) target = $region73
            $region70: #{custom-call.10} parent=65 // loop_body
              %v769 = vld [vmem:[%s767] sm:$0xff]
              %770 = vst [vmem:[%s768] sm:$0xff] %v769
              %v771 = vld [vmem:[%s767 + $0x8] sm:$0xff]
              %772 = vst [vmem:[%s768 + $0x8] sm:$0xff] %v771
              %v773 = vld [vmem:[%s767 + $0x10] sm:$0xff]
              %774 = vst [vmem:[%s768 + $0x10] sm:$0xff] %v773
              %v775 = vld [vmem:[%s767 + $0x18] sm:$0xff]
              %776 = vst [vmem:[%s768 + $0x18] sm:$0xff] %v775
            $region71: #{custom-call.10} parent=65 // loop_footer
              %s766 = sadd.s32 1, %s762
            $region72: #{custom-call.10} parent=65 // loop_footer_branch
              %761 = sbr.rel target = $region68
            $region73: #{custom-call.10} parent=65 // loop_exit
              _
          $region66: #{custom-call.10} parent=57 // pred_fallthru
            _
        $region58: #{custom-call.10} parent=53 // pred_fallthru
          _
        %797 = vnop
      $region54: #{custom-call.10} parent=5 // pred_fallthru
        _
      %p798 = scmp.le.s32.totalorder 2, %s3
      // Predicated region
      $region89: #{custom-call.10} parent=5 // pred_check
        %p799 = pneg %p798
      $region90: #{custom-call.10} parent=5 // pred_check_branch
        %801 = sbr.rel (%p799) target = $region92
      $region91: #{custom-call.10} parent=5 // pred_region
        %s802 = ssub.s32 %s3, 2
        %s803 = sand.u32 %s9, 1
        %s804 = sand.u32 %s9, 1
        %s805 = smul.addr %s804, 32
        %s806 = scalar_lea.vmem [#allocation1], %s805
      $region92: #{custom-call.10} parent=5 // pred_fallthru
        _
    $region6: #{custom-call.10} parent=1 // loop_footer
      %s7 = sadd.s32 1, %s3
    $region7: #{custom-call.10} parent=1 // loop_footer_branch
      %2 = sbr.rel target = $region3
    $region8: #{custom-call.10} parent=1 // loop_exit
      _

// kernel: custom-call.9
$region0: #{custom-call.9}
  %s0 = inlined_call_operand.vmem [shape: f32[2,16,16], index: 0, kind: input, shape index: {}]
  %s1 = inlined_call_operand.vmem [shape: f32[2,16,16], index: 1, kind: input, shape index: {}]
  %s2 = inlined_call_operand.vmem [shape: f32[2,16,16], index: 2, kind: input, shape index: {}]
  %s3 = inlined_call_operand.vmem [shape: f32[2,16,16], index: 3, kind: input, shape index: {}]
  %s4 = inlined_call_operand.vmem [shape: f32[2,16], index: 4, kind: output, shape index: {0}]
  %s5 = inlined_call_operand.vmem [shape: f32[2,16], index: 5, kind: output, shape index: {1}]
  %s6 = inlined_call_operand.vmem [shape: f32[2,16,16], index: 6, kind: output, shape index: {2}]
  %s7 = inlined_call_operand.vmem [shape: f32[2,16,16], index: 7, kind: output, shape index: {3}]
  %s8 = inlined_call_operand.vmem [shape: f32[2,16,16], index: 8, kind: output, shape index: {4}]
  %s9 = inlined_call_operand.vmem [shape: f32[2,16,16], index: 9, kind: output, shape index: {5}]
  %10 = xla_tuple %s4, %s5, %s6, %s7, %s8, %s9
  $region1: #{custom-call.9} parent=0
    #allocation0 [shape = 'u8[16384]{0}', space=vmem, size = 0x4000, scoped, tag = 'operand span for operand 0']
    #allocation1 [shape = 'u8[16384]{0}', space=vmem, size = 0x4000, scoped, tag = 'operand span for operand 1']
    #allocation2 [shape = 'u8[16384]{0}', space=vmem, size = 0x4000, scoped, tag = 'operand span for operand 2']
    #allocation3 [shape = 'u8[16384]{0}', space=vmem, size = 0x4000, scoped, tag = 'operand span for operand 3']
    #allocation4 [shape = 'u8[4096]{0}', space=vmem, size = 0x1000, scoped, tag = 'operand span for operand 4']
    #allocation5 [shape = 'u8[2048]{0}', space=vmem, size = 0x800, scoped, tag = 'packed  for operand 4']
    #allocation6 [shape = 'u8[4096]{0}', space=vmem, size = 0x1000, scoped, tag = 'operand span for operand 5']
    #allocation7 [shape = 'u8[2048]{0}', space=vmem, size = 0x800, scoped, tag = 'packed  for operand 5']
    #allocation8 [shape = 'u8[16384]{0}', space=vmem, size = 0x4000, scoped, tag = 'operand span for operand 6']
    #allocation9 [shape = 'u8[16384]{0}', space=vmem, size = 0x4000, scoped, tag = 'operand span for operand 7']
    #allocation10 [shape = 'u8[16384]{0}', space=vmem, size = 0x4000, scoped, tag = 'operand span for operand 8']
    #allocation11 [shape = 'u8[16384]{0}', space=vmem, size = 0x4000, scoped, tag = 'operand span for operand 9']
    loop: start=0, step=1, limit=4
    $region2: #{custom-call.9} parent=1 // loop_pre_header
      _
    $region3: #{custom-call.9} parent=1 // loop_header
      %s12 = sphi 0, %s16
      %p13 = scmp.ge.s32.totalorder %s12, 4
      %s24 = sphi 0, %s26
      %s27 = sphi 0, %s24
      %s28 = sphi 0, %s27
      %s44 = sphi 0, %s28
      %s52 = sphi 0, %s54
      %s55 = sphi 0, %s52
      %s56 = sphi 0, %s55
      %s72 = sphi 0, %s56
    $region4: #{custom-call.9} parent=1 // loop_header_branch
      %15 = sbr.rel (%p13) target = $region8
    $region5: #{custom-call.9} parent=1 // loop_body
      %s17 = ssub.s32 %s12, 1
      %s18 = ssub.s32 %s12, 2
      %s19 = sadd.s32 %s12, 1
      %s20 = sshrl.u32 %s12, 3
      %s21 = sshrl.u32 %s19, 3
      %s22 = ssub.s32 %s20, %s21
      %p23 = scmp.eq.s32.totalorder %s22, 0
      %s25 = sadd.s32 %s24, 1
      %s26 = scalar_select %p23, %s24, %s25
      %p29 = pneg %p23
      %p30 = scmp.eq.s32.totalorder %s12, 1
      %p31 = por %p29, %p30
      %p32 = scmp.ne.s32.totalorder %s24, %s27
      %p33 = scmp.eq.s32.totalorder %s12, 0
      %p34 = por %p32, %p33
      %p35 = scmp.ne.s32.totalorder %s24, %s27
      %p36 = scmp.eq.s32.totalorder %s17, 1
      %p37 = por %p35, %p36
      %p38 = scmp.ne.s32.totalorder %s27, %s28
      %p39 = scmp.eq.s32.totalorder %s17, 0
      %p40 = por %p38, %p39
      %p41 = scmp.ne.s32.totalorder %s27, %s28
      %p42 = scmp.eq.s32.totalorder %s18, 1
      %p43 = por %p41, %p42
      %p45 = scmp.ne.s32.totalorder %s28, %s44
      %p46 = scmp.eq.s32.totalorder %s18, 0
      %p47 = por %p45, %p46
      %s48 = sshrl.u32 %s12, 3
      %s49 = sshrl.u32 %s19, 3
      %s50 = ssub.s32 %s48, %s49
      %p51 = scmp.eq.s32.totalorder %s50, 0
      %s53 = sadd.s32 %s52, 1
      %s54 = scalar_select %p51, %s52, %s53
      %p57 = pneg %p51
      %p58 = scmp.eq.s32.totalorder %s12, 1
      %p59 = por %p57, %p58
      %p60 = scmp.ne.s32.totalorder %s52, %s55
      %p61 = scmp.eq.s32.totalorder %s12, 0
      %p62 = por %p60, %p61
      %p63 = scmp.ne.s32.totalorder %s52, %s55
      %p64 = scmp.eq.s32.totalorder %s17, 1
      %p65 = por %p63, %p64
      %p66 = scmp.ne.s32.totalorder %s55, %s56
      %p67 = scmp.eq.s32.totalorder %s17, 0
      %p68 = por %p66, %p67
      %p69 = scmp.ne.s32.totalorder %s55, %s56
      %p70 = scmp.eq.s32.totalorder %s18, 1
      %p71 = por %p69, %p70
      %p73 = scmp.ne.s32.totalorder %s56, %s72
      %p74 = scmp.eq.s32.totalorder %s18, 0
      %p75 = por %p73, %p74
      %p76 = scmp.le.s32.totalorder 1, %s12
      %p77 = scmp.lt.s32.totalorder %s12, 3
      %p78 = pnand %p76, %p77
      %p79 = pneg %p78
      // Predicated region
      $region9: #{custom-call.9} parent=5 // pred_check
        _
      $region10: #{custom-call.9} parent=5 // pred_check_branch
        %81 = sbr.rel (%p78) target = $region12
      $region11: #{custom-call.9} parent=5 // pred_region
        %s82 = ssub.s32 %s12, 1
      $region12: #{custom-call.9} parent=5 // pred_fallthru
        _
      %p83 = scmp.lt.s32.totalorder %s12, 2
      // Predicated region
      $region13: #{custom-call.9} parent=5 // pred_check
        %p84 = pneg %p83
      $region14: #{custom-call.9} parent=5 // pred_check_branch
        %86 = sbr.rel (%p84) target = $region16
      $region15: #{custom-call.9} parent=5 // pred_region
        %s87 = sand.u32 %s12, 1
        %s88 = sand.u32 %s12, 1
        %s89 = smul.addr %s88, 16
        %s90 = scalar_lea.vmem [#allocation0], %s89
        %s91 = smul.addr %s12, 16
        %s92 = scalar_lea.vmem %s0, %s91
        // Predicated region
        $region17: #{custom-call.9} parent=15 // pred_check
          _
        $region18: #{custom-call.9} parent=15 // pred_check_branch
          %94 = sbr.rel (0) target = $region20
        $region19: #{custom-call.9} parent=15 // pred_region
          // Predicated region
          $region21: #{custom-call.9} parent=19 // pred_check
            _
          $region22: #{custom-call.9} parent=19 // pred_check_branch
            %96 = sbr.rel (0) target = $region24
          $region23: #{custom-call.9} parent=19 // pred_region
            loop: start=0, step=1, limit=1
            $region25: #{custom-call.9} parent=23 // loop_pre_header
              _
            $region26: #{custom-call.9} parent=23 // loop_header
              %s98 = sphi 0, %s102
              %p99 = scmp.ge.s32.totalorder %s98, 1
              %s103 = sphi %s92, %s92
              %s104 = sphi %s90, %s90
            $region27: #{custom-call.9} parent=23 // loop_header_branch
              %101 = sbr.rel (%p99) target = $region31
            $region28: #{custom-call.9} parent=23 // loop_body
              %v105 = vld [vmem:[%s103] sm:$0xff]
              %106 = vst [vmem:[%s104] sm:$0xff] %v105
              %v107 = vld [vmem:[%s103 + $0x8] sm:$0xff]
              %108 = vst [vmem:[%s104 + $0x8] sm:$0xff] %v107
            $region29: #{custom-call.9} parent=23 // loop_footer
              %s102 = sadd.s32 1, %s98
            $region30: #{custom-call.9} parent=23 // loop_footer_branch
              %97 = sbr.rel target = $region26
            $region31: #{custom-call.9} parent=23 // loop_exit
              _
          $region24: #{custom-call.9} parent=19 // pred_fallthru
            _
          // Predicated region
          $region32: #{custom-call.9} parent=19 // pred_check
            _
          $region33: #{custom-call.9} parent=19 // pred_check_branch
            %110 = sbr.rel target = $region35
          $region34: #{custom-call.9} parent=19 // pred_region
            _
          $region35: #{custom-call.9} parent=19 // pred_fallthru
            _
        $region20: #{custom-call.9} parent=15 // pred_fallthru
          _
        %111 = vnop
        %s112 = sand.u32 %s12, 1
        %s113 = sand.u32 %s12, 1
        %s114 = smul.addr %s113, 16
        %s115 = scalar_lea.vmem [#allocation1], %s114
        %s116 = smul.addr %s12, 16
        %s117 = scalar_lea.vmem %s1, %s116
        // Predicated region
        $region36: #{custom-call.9} parent=15 // pred_check
          _
        $region37: #{custom-call.9} parent=15 // pred_check_branch
          %119 = sbr.rel (0) target = $region39
        $region38: #{custom-call.9} parent=15 // pred_region
          // Predicated region
          $region40: #{custom-call.9} parent=38 // pred_check
            _
          $region41: #{custom-call.9} parent=38 // pred_check_branch
            %121 = sbr.rel (0) target = $region43
          $region42: #{custom-call.9} parent=38 // pred_region
            loop: start=0, step=1, limit=1
            $region44: #{custom-call.9} parent=42 // loop_pre_header
              _
            $region45: #{custom-call.9} parent=42 // loop_header
              %s123 = sphi 0, %s127
              %p124 = scmp.ge.s32.totalorder %s123, 1
              %s128 = sphi %s117, %s117
              %s129 = sphi %s115, %s115
            $region46: #{custom-call.9} parent=42 // loop_header_branch
              %126 = sbr.rel (%p124) target = $region50
            $region47: #{custom-call.9} parent=42 // loop_body
              %v130 = vld [vmem:[%s128] sm:$0xff]
              %131 = vst [vmem:[%s129] sm:$0xff] %v130
              %v132 = vld [vmem:[%s128 + $0x8] sm:$0xff]
              %133 = vst [vmem:[%s129 + $0x8] sm:$0xff] %v132
            $region48: #{custom-call.9} parent=42 // loop_footer
              %s127 = sadd.s32 1, %s123
            $region49: #{custom-call.9} parent=42 // loop_footer_branch
              %122 = sbr.rel target = $region45
            $region50: #{custom-call.9} parent=42 // loop_exit
              _
          $region43: #{custom-call.9} parent=38 // pred_fallthru
            _
          // Predicated region
          $region51: #{custom-call.9} parent=38 // pred_check
            _
          $region52: #{custom-call.9} parent=38 // pred_check_branch
            %135 = sbr.rel target = $region54
          $region53: #{custom-call.9} parent=38 // pred_region
            _
          $region54: #{custom-call.9} parent=38 // pred_fallthru
            _
        $region39: #{custom-call.9} parent=15 // pred_fallthru
          _
        %136 = vnop
        %s137 = sand.u32 %s12, 1
        %s138 = sand.u32 %s12, 1
        %s139 = smul.addr %s138, 16
        %s140 = scalar_lea.vmem [#allocation2], %s139
        %s141 = smul.addr %s12, 16
        %s142 = scalar_lea.vmem %s2, %s141
        // Predicated region
        $region55: #{custom-call.9} parent=15 // pred_check
          _
        $region56: #{custom-call.9} parent=15 // pred_check_branch
          %144 = sbr.rel (0) target = $region58
        $region57: #{custom-call.9} parent=15 // pred_region
          // Predicated region
          $region59: #{custom-call.9} parent=57 // pred_check
            _
          $region60: #{custom-call.9} parent=57 // pred_check_branch
            %146 = sbr.rel (0) target = $region62
          $region61: #{custom-call.9} parent=57 // pred_region
            loop: start=0, step=1, limit=1
            $region63: #{custom-call.9} parent=61 // loop_pre_header
              _
            $region64: #{custom-call.9} parent=61 // loop_header
              %s148 = sphi 0, %s152
              %p149 = scmp.ge.s32.totalorder %s148, 1
              %s153 = sphi %s142, %s142
              %s154 = sphi %s140, %s140
            $region65: #{custom-call.9} parent=61 // loop_header_branch
              %151 = sbr.rel (%p149) target = $region69
            $region66: #{custom-call.9} parent=61 // loop_body
              %v155 = vld [vmem:[%s153] sm:$0xff]
              %156 = vst [vmem:[%s154] sm:$0xff] %v155
              %v157 = vld [vmem:[%s153 + $0x8] sm:$0xff]
              %158 = vst [vmem:[%s154 + $0x8] sm:$0xff] %v157
            $region67: #{custom-call.9} parent=61 // loop_footer
              %s152 = sadd.s32 1, %s148
            $region68: #{custom-call.9} parent=61 // loop_footer_branch
              %147 = sbr.rel target = $region64
            $region69: #{custom-call.9} parent=61 // loop_exit
              _
          $region62: #{custom-call.9} parent=57 // pred_fallthru
            _
          // Predicated region
          $region70: #{custom-call.9} parent=57 // pred_check
            _
          $region71: #{custom-call.9} parent=57 // pred_check_branch
            %160 = sbr.rel target = $region73
          $region72: #{custom-call.9} parent=57 // pred_region
            _
          $region73: #{custom-call.9} parent=57 // pred_fallthru
            _
        $region58: #{custom-call.9} parent=15 // pred_fallthru
          _
        %161 = vnop
        %s162 = sand.u32 %s12, 1
        %s163 = sand.u32 %s12, 1
        %s164 = smul.addr %s163, 16
        %s165 = scalar_lea.vmem [#allocation3], %s164
        %s166 = smul.addr %s12, 16
        %s167 = scalar_lea.vmem %s3, %s166
        // Predicated region
        $region74: #{custom-call.9} parent=15 // pred_check
          _
        $region75: #{custom-call.9} parent=15 // pred_check_branch
          %169 = sbr.rel (0) target = $region77
        $region76: #{custom-call.9} parent=15 // pred_region
          // Predicated region
          $region78: #{custom-call.9} parent=76 // pred_check
            _
          $region79: #{custom-call.9} parent=76 // pred_check_branch
            %171 = sbr.rel (0) target = $region81
          $region80: #{custom-call.9} parent=76 // pred_region
            loop: start=0, step=1, limit=1
            $region82: #{custom-call.9} parent=80 // loop_pre_header
              _
            $region83: #{custom-call.9} parent=80 // loop_header
              %s173 = sphi 0, %s177
              %p174 = scmp.ge.s32.totalorder %s173, 1
              %s178 = sphi %s167, %s167
              %s179 = sphi %s165, %s165
            $region84: #{custom-call.9} parent=80 // loop_header_branch
              %176 = sbr.rel (%p174) target = $region88
            $region85: #{custom-call.9} parent=80 // loop_body
              %v180 = vld [vmem:[%s178] sm:$0xff]
              %181 = vst [vmem:[%s179] sm:$0xff] %v180
              %v182 = vld [vmem:[%s178 + $0x8] sm:$0xff]
              %183 = vst [vmem:[%s179 + $0x8] sm:$0xff] %v182
            $region86: #{custom-call.9} parent=80 // loop_footer
              %s177 = sadd.s32 1, %s173
            $region87: #{custom-call.9} parent=80 // loop_footer_branch
              %172 = sbr.rel target = $region83
            $region88: #{custom-call.9} parent=80 // loop_exit
              _
          $region81: #{custom-call.9} parent=76 // pred_fallthru
            _
          // Predicated region
          $region89: #{custom-call.9} parent=76 // pred_check
            _
          $region90: #{custom-call.9} parent=76 // pred_check_branch
            %185 = sbr.rel target = $region92
          $region91: #{custom-call.9} parent=76 // pred_region
            _
          $region92: #{custom-call.9} parent=76 // pred_fallthru
            _
        $region77: #{custom-call.9} parent=15 // pred_fallthru
          _
        %186 = vnop
      $region16: #{custom-call.9} parent=5 // pred_fallthru
        _
      %p187 = scmp.le.s32.totalorder 1, %s12
      %p188 = scmp.lt.s32.totalorder %s12, 3
      %p189 = pnand %p187, %p188
      %p190 = pneg %p189
      // Predicated region
      $region93: #{custom-call.9} parent=5 // pred_check
        _
      $region94: #{custom-call.9} parent=5 // pred_check_branch
        %192 = sbr.rel (%p189) target = $region96
      $region95: #{custom-call.9} parent=5 // pred_region
        #allocation12 [shape = 'f32[16,16]{1,0}', space=vmem, size = 0x2000, scoped, tag = 'a top-left matrix']
        #allocation13 [shape = 'f32[16,16]{1,0}', space=vmem, size = 0x2000, scoped, tag = 'a top-right matrix']
        #allocation14 [shape = 'f32[16,16]{1,0}', space=vmem, size = 0x2000, scoped, tag = 'a bottom-left matrix']
        #allocation15 [shape = 'f32[16,16]{1,0}', space=vmem, size = 0x2000, scoped, tag = 'a bottom-right matrix']
        %s193 = ssub.s32 %s12, 1
        %s194 = sand.u32 %s17, 1
        %s195 = sand.u32 %s17, 1
        %s196 = smul.addr %s195, 16
        %s197 = scalar_lea.vmem [#allocation0], %s196
        %s198 = sand.u32 %s17, 1
        %s199 = sand.u32 %s17, 1
        %s200 = smul.addr %s199, 16
        %s201 = scalar_lea.vmem [#allocation1], %s200
        %s202 = sand.u32 %s17, 1
        %s203 = sand.u32 %s17, 1
        %s204 = smul.addr %s203, 16
        %s205 = scalar_lea.vmem [#allocation2], %s204
        %s206 = sand.u32 %s17, 1
        %s207 = sand.u32 %s17, 1
        %s208 = smul.addr %s207, 16
        %s209 = scalar_lea.vmem [#allocation3], %s208
        %s210 = sand.u32 %s17, 1
        %s211 = sand.u32 %s17, 1
        %s212 = smul.addr %s211, 16
        %s213 = scalar_lea.vmem [#allocation0], %s212
        %s214 = sand.u32 %s17, 1
        %s215 = sand.u32 %s17, 1
        %s216 = smul.addr %s215, 16
        %s217 = scalar_lea.vmem [#allocation1], %s216
        %s218 = sand.u32 %s17, 1
        %s219 = sand.u32 %s17, 1
        %s220 = smul.addr %s219, 16
        %s221 = scalar_lea.vmem [#allocation2], %s220
        %s222 = sand.u32 %s17, 1
        %s223 = sand.u32 %s17, 1
        %s224 = smul.addr %s223, 16
        %s225 = scalar_lea.vmem [#allocation3], %s224
        %p226 = pneg %p40
        %p227 = pneg %p37
        %s228 = sand.u32 %s27, 1
        %s229 = sand.u32 %s27, 1
        %s230 = smul.addr %s229, 2
        %s231 = scalar_lea.vmem [#allocation5], %s230
        %p232 = pneg %p68
        %p233 = pneg %p65
        %s234 = sand.u32 %s55, 1
        %s235 = sand.u32 %s55, 1
        %s236 = smul.addr %s235, 2
        %s237 = scalar_lea.vmem [#allocation7], %s236
        %s238 = sand.u32 %s17, 1
        %s239 = sand.u32 %s17, 1
        %s240 = smul.addr %s239, 16
        %s241 = scalar_lea.vmem [#allocation8], %s240
        %s242 = sand.u32 %s17, 1
        %s243 = sand.u32 %s17, 1
        %s244 = smul.addr %s243, 16
        %s245 = scalar_lea.vmem [#allocation9], %s244
        %s246 = sand.u32 %s17, 1
        %s247 = sand.u32 %s17, 1
        %s248 = smul.addr %s247, 16
        %s249 = scalar_lea.vmem [#allocation10], %s248
        %s250 = sand.u32 %s17, 1
        %s251 = sand.u32 %s17, 1
        %s252 = smul.addr %s251, 16
        %s253 = scalar_lea.vmem [#allocation11], %s252
        %s254 = sshrl.u32 %s17, 3
        %s255 = sshrl.u32 %s17, 3
        %s256 = smov [#allocation12]
        %v257 = vld [vmem:[%s197] sm:$0xff]
        %258 = vst [vmem:[%s256] sm:$0xff] %v257
        %s259 = scalar_lea.vmem %s256, 8
        %s260 = scalar_lea.vmem %s197, 8 [#allocation0]
        %v261 = vld [vmem:[%s260] sm:$0xff]
        %262 = vst [vmem:[%s259] sm:$0xff] %v261
        %s263 = smov [#allocation13]
        %v264 = vld [vmem:[%s201] sm:$0xff]
        %265 = vst [vmem:[%s263] sm:$0xff] %v264
        %s266 = scalar_lea.vmem %s263, 8
        %s267 = scalar_lea.vmem %s201, 8 [#allocation1]
        %v268 = vld [vmem:[%s267] sm:$0xff]
        %269 = vst [vmem:[%s266] sm:$0xff] %v268
        %s270 = smov [#allocation14]
        %v271 = vld [vmem:[%s205] sm:$0xff]
        %272 = vst [vmem:[%s270] sm:$0xff] %v271
        %s273 = scalar_lea.vmem %s270, 8
        %s274 = scalar_lea.vmem %s205, 8 [#allocation2]
        %v275 = vld [vmem:[%s274] sm:$0xff]
        %276 = vst [vmem:[%s273] sm:$0xff] %v275
        %s277 = smov [#allocation15]
        %v278 = vld [vmem:[%s209] sm:$0xff]
        %279 = vst [vmem:[%s277] sm:$0xff] %v278
        %s280 = scalar_lea.vmem %s277, 8
        %s281 = scalar_lea.vmem %s209, 8 [#allocation3]
        %v282 = vld [vmem:[%s281] sm:$0xff]
        %283 = vst [vmem:[%s280] sm:$0xff] %v282
        %284 = vst [vmem:[%s241] sm:$0xff] 0.0
        %s285 = scalar_lea.vmem %s241, 8 [#allocation8]
        %286 = vst [vmem:[%s285] sm:$0xff] 0.0
        %287 = vst [vmem:[%s245] sm:$0xff] 0.0
        %s288 = scalar_lea.vmem %s245, 8 [#allocation9]
        %289 = vst [vmem:[%s288] sm:$0xff] 0.0
        %290 = vst [vmem:[%s249] sm:$0xff] 0.0
        %s291 = scalar_lea.vmem %s249, 8 [#allocation10]
        %292 = vst [vmem:[%s291] sm:$0xff] 0.0
        %293 = vst [vmem:[%s253] sm:$0xff] 0.0
        %s294 = scalar_lea.vmem %s253, 8 [#allocation11]
        %295 = vst [vmem:[%s294] sm:$0xff] 0.0
        %s296 = smov %s241
        %v297 = vlaneseq
        %v298 = vand.u32 %v297, 127
        %v299 = vmov %v298
        %v300 = vlaneseq
        %v301 = vshrl.u32 %v300, 7
        %v302 = vmov %v301
        %v303 = vld [vmem:[%s296] sm:$0xff]
        %vm306 = vcmp.eq.s32.totalorder %v302, %v299
        %v307 = vsel %vm306, 1.0, %v303
        %308 = vst [vmem:[%s296] sm:$0xff] %v307
        %s309 = scalar_lea.vmem %s296, 8
        %v310 = vld [vmem:[%s309] sm:$0xff]
        %v312 = vadd.s32 %v302, 8
        %vm313 = vcmp.eq.s32.totalorder %v312, %v299
        %v314 = vsel %vm313, 1.0, %v310
        %315 = vst [vmem:[%s309] sm:$0xff] %v314
        %s316 = smov %s253
        %v317 = vlaneseq
        %v318 = vand.u32 %v317, 127
        %v319 = vmov %v318
        %v320 = vlaneseq
        %v321 = vshrl.u32 %v320, 7
        %v322 = vmov %v321
        %v323 = vld [vmem:[%s316] sm:$0xff]
        %vm326 = vcmp.eq.s32.totalorder %v322, %v319
        %v327 = vsel %vm326, 1.0, %v323
        %328 = vst [vmem:[%s316] sm:$0xff] %v327
        %s329 = scalar_lea.vmem %s316, 8
        %v330 = vld [vmem:[%s329] sm:$0xff]
        %v332 = vadd.s32 %v322, 8
        %vm333 = vcmp.eq.s32.totalorder %v332, %v319
        %v334 = vsel %vm333, 1.0, %v330
        %335 = vst [vmem:[%s329] sm:$0xff] %v334
        // While loop
        $region97: #{custom-call.9} parent=95 // loop_pre_header
          _
        $region98: #{custom-call.9} parent=95 // loop_header
          %s337 = sphi 0, %s1235
          %v338 = vlaneseq
          %v339 = vand.u32 %v338, 127
          %v340 = vmov %v339
          %v341 = vlaneseq
          %v342 = vshrl.u32 %v341, 7
          %v343 = vmov %v342
          %s344 = smov [#allocation12]
          %v345 = vlaneseq
          %v346 = vand.u32 %v345, 127
          %vm347 = vcmp.ge.s32.totalorder %v346, 0
          %vm348 = vcmp.lt.s32.totalorder %v346, 16
          %vm349 = vmand %vm347, %vm348
          %v350 = vld [vmem:[%s344] sm:$0xff]
          %v351 = vsel %vm349, %v350, 0.0
          %v352 = vmul.f32 %v351, %v351
          %vm355 = vcmp.eq.s32.totalorder %v343, %v340
          %v356 = vsel %vm355, 0.0, %v352
          %s357 = scalar_lea.vmem %s344, 8
          %v358 = vld [vmem:[%s357] sm:$0xff]
          %v359 = vsel %vm349, %v358, 0.0
          %v360 = vmul.f32 %v359, %v359
          %v362 = vadd.s32 %v343, 8
          %vm363 = vcmp.eq.s32.totalorder %v362, %v340
          %v364 = vsel %vm363, 0.0, %v360
          %v365 = vadd.f32 %v356, %v364
          %v366 = vadd.f32 %v352, %v360
          %v367 = vlaneseq
          %v368 = vand.u32 %v367, 127
          %v369 = vmov %v368
          %v370 = vlaneseq
          %v371 = vshrl.u32 %v370, 7
          %v372 = vmov %v371
          %s373 = smov [#allocation13]
          %v374 = vlaneseq
          %v375 = vand.u32 %v374, 127
          %vm376 = vcmp.ge.s32.totalorder %v375, 0
          %vm377 = vcmp.lt.s32.totalorder %v375, 16
          %vm378 = vmand %vm376, %vm377
          %v379 = vld [vmem:[%s373] sm:$0xff]
          %v380 = vsel %vm378, %v379, 0.0
          %v381 = vmul.f32 %v380, %v380
          %v382 = vadd.f32 %v365, %v381
          %v383 = vadd.f32 %v366, %v381
          %s384 = scalar_lea.vmem %s373, 8
          %v385 = vld [vmem:[%s384] sm:$0xff]
          %v386 = vsel %vm378, %v385, 0.0
          %v387 = vmul.f32 %v386, %v386
          %v388 = vadd.f32 %v382, %v387
          %v389 = vadd.f32 %v383, %v387
          %v390 = vlaneseq
          %v391 = vand.u32 %v390, 127
          %v392 = vmov %v391
          %v393 = vlaneseq
          %v394 = vshrl.u32 %v393, 7
          %v395 = vmov %v394
          %s396 = smov [#allocation14]
          %v397 = vlaneseq
          %v398 = vand.u32 %v397, 127
          %vm399 = vcmp.ge.s32.totalorder %v398, 0
          %vm400 = vcmp.lt.s32.totalorder %v398, 16
          %vm401 = vmand %vm399, %vm400
          %v402 = vld [vmem:[%s396] sm:$0xff]
          %v403 = vsel %vm401, %v402, 0.0
          %v404 = vmul.f32 %v403, %v403
          %v405 = vadd.f32 %v388, %v404
          %v406 = vadd.f32 %v389, %v404
          %s407 = scalar_lea.vmem %s396, 8
          %v408 = vld [vmem:[%s407] sm:$0xff]
          %v409 = vsel %vm401, %v408, 0.0
          %v410 = vmul.f32 %v409, %v409
          %v411 = vadd.f32 %v405, %v410
          %v412 = vadd.f32 %v406, %v410
          %v413 = vlaneseq
          %v414 = vand.u32 %v413, 127
          %v415 = vmov %v414
          %v416 = vlaneseq
          %v417 = vshrl.u32 %v416, 7
          %v418 = vmov %v417
          %s419 = smov [#allocation15]
          %v420 = vlaneseq
          %v421 = vand.u32 %v420, 127
          %vm422 = vcmp.ge.s32.totalorder %v421, 0
          %vm423 = vcmp.lt.s32.totalorder %v421, 16
          %vm424 = vmand %vm422, %vm423
          %v425 = vld [vmem:[%s419] sm:$0xff]
          %v426 = vsel %vm424, %v425, 0.0
          %v427 = vmul.f32 %v426, %v426
          %vm430 = vcmp.eq.s32.totalorder %v418, %v415
          %v431 = vsel %vm430, 0.0, %v427
          %v432 = vadd.f32 %v411, %v431
          %v433 = vadd.f32 %v412, %v427
          %s434 = scalar_lea.vmem %s419, 8
          %v435 = vld [vmem:[%s434] sm:$0xff]
          %v436 = vsel %vm424, %v435, 0.0
          %v437 = vmul.f32 %v436, %v436
          %v439 = vadd.s32 %v418, 8
          %vm440 = vcmp.eq.s32.totalorder %v439, %v415
          %v441 = vsel %vm440, 0.0, %v437
          %v442 = vadd.f32 %v432, %v441
          %v443 = vadd.f32 %v433, %v437
          %444 = vadd.xlane.f32.xlu0 %v443
          %v445 = vpop.xlane.xlu0 %444
          %v446 = vrot.slane %v445, 4
          %v447 = vadd.f32 %v445, %v446
          %v448 = vrot.slane %v447, 2
          %v449 = vadd.f32 %v447, %v448
          %v450 = vrot.slane %v449, 1
          %v451 = vadd.f32 %v449, %v450
          %452 = vadd.xlane.f32.xlu0 %v442
          %v453 = vpop.xlane.xlu0 %452
          %v454 = vrot.slane %v453, 4
          %v455 = vadd.f32 %v453, %v454
          %v456 = vrot.slane %v455, 2
          %v457 = vadd.f32 %v455, %v456
          %v458 = vrot.slane %v457, 1
          %v459 = vadd.f32 %v457, %v458
          %s460 = vtos %v459
          %s461 = vtos %v451
          %s462 = smul.f32 1e-10, %s461
          %p463 = scmp.le.f32.partialorder %s460, %s462
          %p464 = scmp.ge.s32.totalorder %s337, 15
          %p465 = por %p463, %p464
        $region99: #{custom-call.9} parent=95 // loop_header_branch
          %1237 = sbr.rel (%p465) target = $region103
        $region100: #{custom-call.9} parent=95 // loop_body
          loop: start=0, step=1, limit=31
          $region104: #{custom-call.9} parent=100 // loop_pre_header
            _
          $region105: #{custom-call.9} parent=100 // loop_header
            %s467 = sphi 0, %s471
            %p468 = scmp.ge.s32.totalorder %s467, 31
          $region106: #{custom-call.9} parent=100 // loop_header_branch
            %470 = sbr.rel (%p468) target = $region110
          $region107: #{custom-call.9} parent=100 // loop_body
            #allocation16 [shape = 'f32[1024]{0}', space=vmem, size = 0x1000, scoped, tag = 'a_tl_diag vmem']
            #allocation17 [shape = 'f32[1024]{0}', space=vmem, size = 0x1000, scoped, tag = 'a_tr_diag vmem']
            #allocation18 [shape = 'f32[1024]{0}', space=vmem, size = 0x1000, scoped, tag = 'a_br_diag vmem']
            #allocation19 [shape = 'f32[1024]{0}', space=vmem, size = 0x1000, scoped, tag = 'rt1 vmem']
            #allocation20 [shape = 'f32[1024]{0}', space=vmem, size = 0x1000, scoped, tag = 'rt2 vmem']
            #allocation21 [shape = 'f32[1024]{0}', space=vmem, size = 0x1000, scoped, tag = 'c vmem']
            #allocation22 [shape = 'f32[1024]{0}', space=vmem, size = 0x1000, scoped, tag = 's vmem']
            #allocation23 [shape = 'f32[8192]{0}', space=vmem, size = 0x8000, scoped, tag = 'c broadcast']
            #allocation24 [shape = 'f32[8192]{0}', space=vmem, size = 0x8000, scoped, tag = 's broadcast']
            %s472 = smov [#allocation12]
            %s473 = smov [#allocation16]
            %v474 = vlaneseq
            %v475 = vand.u32 %v474, 127
            %v476 = vmov %v475
            %v477 = vlaneseq
            %v478 = vshrl.u32 %v477, 7
            %v479 = vmov %v478
            %v480 = vld [vmem:[%s472] sm:$0xff]
            %vm483 = vcmp.eq.s32.totalorder %v479, %v476
            %v484 = vsel %vm483, %v480, 0.0
            %s485 = scalar_lea.vmem %s472, 8
            %v486 = vld [vmem:[%s485] sm:$0xff]
            %v488 = vadd.s32 %v479, 8
            %vm489 = vcmp.eq.s32.totalorder %v488, %v476
            %v490 = vsel %vm489, %v486, %v484
            %v491 = vrot.slane %v490, 4
            %v492 = vadd.f32 %v490, %v491
            %v493 = vrot.slane %v492, 2
            %v494 = vadd.f32 %v492, %v493
            %v495 = vrot.slane %v494, 1
            %v496 = vadd.f32 %v494, %v495
            %497 = vst [vmem:[%s473] sm:$0x1] %v496
            %s498 = smov [#allocation13]
            %s499 = smov [#allocation17]
            %v500 = vlaneseq
            %v501 = vand.u32 %v500, 127
            %v502 = vmov %v501
            %v503 = vlaneseq
            %v504 = vshrl.u32 %v503, 7
            %v505 = vmov %v504
            %v506 = vld [vmem:[%s498] sm:$0xff]
            %vm509 = vcmp.eq.s32.totalorder %v505, %v502
            %v510 = vsel %vm509, %v506, 0.0
            %s511 = scalar_lea.vmem %s498, 8
            %v512 = vld [vmem:[%s511] sm:$0xff]
            %v514 = vadd.s32 %v505, 8
            %vm515 = vcmp.eq.s32.totalorder %v514, %v502
            %v516 = vsel %vm515, %v512, %v510
            %v517 = vrot.slane %v516, 4
            %v518 = vadd.f32 %v516, %v517
            %v519 = vrot.slane %v518, 2
            %v520 = vadd.f32 %v518, %v519
            %v521 = vrot.slane %v520, 1
            %v522 = vadd.f32 %v520, %v521
            %523 = vst [vmem:[%s499] sm:$0x1] %v522
            %s524 = smov [#allocation15]
            %s525 = smov [#allocation18]
            %v526 = vlaneseq
            %v527 = vand.u32 %v526, 127
            %v528 = vmov %v527
            %v529 = vlaneseq
            %v530 = vshrl.u32 %v529, 7
            %v531 = vmov %v530
            %v532 = vld [vmem:[%s524] sm:$0xff]
            %vm535 = vcmp.eq.s32.totalorder %v531, %v528
            %v536 = vsel %vm535, %v532, 0.0
            %s537 = scalar_lea.vmem %s524, 8
            %v538 = vld [vmem:[%s537] sm:$0xff]
            %v540 = vadd.s32 %v531, 8
            %vm541 = vcmp.eq.s32.totalorder %v540, %v528
            %v542 = vsel %vm541, %v538, %v536
            %v543 = vrot.slane %v542, 4
            %v544 = vadd.f32 %v542, %v543
            %v545 = vrot.slane %v544, 2
            %v546 = vadd.f32 %v544, %v545
            %v547 = vrot.slane %v546, 1
            %v548 = vadd.f32 %v546, %v547
            %549 = vst [vmem:[%s525] sm:$0x1] %v548
            %s550 = smov [#allocation21]
            %s551 = smov [#allocation22]
            %s552 = smov [#allocation16]
            %v553 = vld [vmem:[%s552] sm:$0xff]
            %s554 = smov [#allocation17]
            %v555 = vld [vmem:[%s554] sm:$0xff]
            %s556 = smov [#allocation18]
            %v557 = vld [vmem:[%s556] sm:$0xff]
            %v558 = vsub.f32 %v557, %v553
            %v559 = vmul.f32 2.0, %v555
            %v560 = vrcp.pop %v559
            %v561 = vmul.f32 %v558, %v560
            %vm562 = vcmp.ge.f32.partialorder %v561, 0.0
            %v563 = vmul.f32 %v561, %v561
            %v564 = vadd.f32 1.0, %v563
            %v565 = vrsqrt.pop %v564
            %v566 = vmul.f32 %v564, %v565
            %vm567 = vcmp.eq.f32.partialorder %v564, inf
            %v568 = vsel %vm567, %v564, %v566
            %vm569 = vcmp.eq.f32.partialorder %v564, 0.0
            %v570 = vand.u32 %v564, 2147483648
            %v571 = vsel %vm569, %v570, %v568
            %v572 = vxor.u32 %v571, 2147483648
            %v573 = vsel %vm562, %v571, %v572
            %v574 = vadd.f32 %v561, %v573
            %v575 = vrcp.pop %v574
            %v576 = vand.u32 2147483647, %v553
            %v577 = vand.u32 2147483647, %v555
            %v578 = vand.u32 2147483647, %v557
            %v579 = vmin.f32 %v576, %v578
            %v580 = vmul.f32 1.1920929e-08, %v579
            %vm581 = vcmp.le.f32.partialorder %v577, %v580
            %v582 = vsel %vm581, 0.0, %v575
            %v583 = vmul.f32 %v582, %v582
            %v584 = vadd.f32 1.0, %v583
            %v585 = vrsqrt.pop %v584
            %v586 = vmul.f32 %v582, %v585
            %v587 = vmul.f32 %v582, %v555
            %v588 = vsub.f32 %v553, %v587
            %v589 = vmul.f32 %v582, %v555
            %v590 = vadd.f32 %v557, %v589
            %s591 = smov [#allocation19]
            %592 = vst [vmem:[%s591] sm:$0xff] %v588
            %s593 = smov [#allocation20]
            %594 = vst [vmem:[%s593] sm:$0xff] %v590
            %s595 = smov %s550
            %596 = vst [vmem:[%s595] sm:$0xff] %v585
            %s597 = smov %s551
            %598 = vst [vmem:[%s597] sm:$0xff] %v586
            %s599 = smov [#allocation21]
            %v600 = vld [vmem:[%s599] ss:$0 sm:$0xff]
            %v601 = vlaneseq
            %v602 = vand.u32 %v601, 127
            %v603 = vmov %v602
            %v604 = vlaneseq
            %v605 = vshrl.u32 %v604, 7
            %v606 = vmov %v605
            %vm608 = vcmp.eq.s32.totalorder %v606, %v603
            %v609 = vsel %vm608, %v600, 0.0
            %610 = vadd.xlane.f32.xlu0 %v609
            %v611 = vpop.xlane.xlu0 %610
            %s612 = smov [#allocation23]
            %613 = vst [vmem:[%s612] sm:$0xff] %v611
            %s614 = smov [#allocation21]
            %v615 = vld [vmem:[%s614] ss:$0 sm:$0xff]
            %v616 = vlaneseq
            %v617 = vand.u32 %v616, 127
            %v618 = vmov %v617
            %v619 = vlaneseq
            %v620 = vshrl.u32 %v619, 7
            %v621 = vmov %v620
            %v622 = vadd.s32 %v621, 8
            %vm623 = vcmp.eq.s32.totalorder %v622, %v618
            %v624 = vsel %vm623, %v615, 0.0
            %625 = vadd.xlane.f32.xlu0 %v624
            %v626 = vpop.xlane.xlu0 %625
            %s627 = smov [#allocation23]
            %s628 = scalar_lea.vmem %s627, 8
            %629 = vst [vmem:[%s628] sm:$0xff] %v626
            %s630 = smov [#allocation22]
            %v631 = vld [vmem:[%s630] ss:$0 sm:$0xff]
            %v632 = vlaneseq
            %v633 = vand.u32 %v632, 127
            %v634 = vmov %v633
            %v635 = vlaneseq
            %v636 = vshrl.u32 %v635, 7
            %v637 = vmov %v636
            %vm639 = vcmp.eq.s32.totalorder %v637, %v634
            %v640 = vsel %vm639, %v631, 0.0
            %641 = vadd.xlane.f32.xlu0 %v640
            %v642 = vpop.xlane.xlu0 %641
            %s643 = smov [#allocation24]
            %644 = vst [vmem:[%s643] sm:$0xff] %v642
            %s645 = smov [#allocation22]
            %v646 = vld [vmem:[%s645] ss:$0 sm:$0xff]
            %v647 = vlaneseq
            %v648 = vand.u32 %v647, 127
            %v649 = vmov %v648
            %v650 = vlaneseq
            %v651 = vshrl.u32 %v650, 7
            %v652 = vmov %v651
            %v653 = vadd.s32 %v652, 8
            %vm654 = vcmp.eq.s32.totalorder %v653, %v649
            %v655 = vsel %vm654, %v646, 0.0
            %656 = vadd.xlane.f32.xlu0 %v655
            %v657 = vpop.xlane.xlu0 %656
            %s658 = smov [#allocation24]
            %s659 = scalar_lea.vmem %s658, 8
            %660 = vst [vmem:[%s659] sm:$0xff] %v657
            %s661 = smov [#allocation23]
            %v662 = vld [vmem:[%s661] sm:$0xff]
            %s663 = smov [#allocation24]
            %v664 = vld [vmem:[%s663] sm:$0xff]
            %s665 = smov [#allocation12]
            %s666 = smov [#allocation13]
            %s667 = smov [#allocation14]
            %s668 = smov [#allocation15]
            %v669 = vld [vmem:[%s665] sm:$0xff]
            %v670 = vld [vmem:[%s666] sm:$0xff]
            %v671 = vld [vmem:[%s667] sm:$0xff]
            %v672 = vld [vmem:[%s668] sm:$0xff]
            %v673 = vmul.f32 %v662, %v669
            %v674 = vmul.f32 %v664, %v671
            %v675 = vsub.f32 %v673, %v674
            %v676 = vmul.f32 %v662, %v670
            %v677 = vmul.f32 %v664, %v672
            %v678 = vsub.f32 %v676, %v677
            %v679 = vmul.f32 %v664, %v669
            %v680 = vmul.f32 %v662, %v671
            %v681 = vadd.f32 %v679, %v680
            %v682 = vmul.f32 %v664, %v670
            %v683 = vmul.f32 %v662, %v672
            %v684 = vadd.f32 %v682, %v683
            %685 = vst [vmem:[%s665] sm:$0xff] %v675
            %686 = vst [vmem:[%s666] sm:$0xff] %v678
            %687 = vst [vmem:[%s667] sm:$0xff] %v681
            %688 = vst [vmem:[%s668] sm:$0xff] %v684
            %s689 = smov [#allocation23]
            %s690 = scalar_lea.vmem %s689, 8
            %v691 = vld [vmem:[%s690] sm:$0xff]
            %s692 = smov [#allocation24]
            %s693 = scalar_lea.vmem %s692, 8
            %v694 = vld [vmem:[%s693] sm:$0xff]
            %s695 = smov [#allocation12]
            %s696 = scalar_lea.vmem %s695, 8
            %s697 = smov [#allocation13]
            %s698 = scalar_lea.vmem %s697, 8
            %s699 = smov [#allocation14]
            %s700 = scalar_lea.vmem %s699, 8
            %s701 = smov [#allocation15]
            %s702 = scalar_lea.vmem %s701, 8
            %v703 = vld [vmem:[%s696] sm:$0xff]
            %v704 = vld [vmem:[%s698] sm:$0xff]
            %v705 = vld [vmem:[%s700] sm:$0xff]
            %v706 = vld [vmem:[%s702] sm:$0xff]
            %v707 = vmul.f32 %v691, %v703
            %v708 = vmul.f32 %v694, %v705
            %v709 = vsub.f32 %v707, %v708
            %v710 = vmul.f32 %v691, %v704
            %v711 = vmul.f32 %v694, %v706
            %v712 = vsub.f32 %v710, %v711
            %v713 = vmul.f32 %v694, %v703
            %v714 = vmul.f32 %v691, %v705
            %v715 = vadd.f32 %v713, %v714
            %v716 = vmul.f32 %v694, %v704
            %v717 = vmul.f32 %v691, %v706
            %v718 = vadd.f32 %v716, %v717
            %719 = vst [vmem:[%s696] sm:$0xff] %v709
            %720 = vst [vmem:[%s698] sm:$0xff] %v712
            %721 = vst [vmem:[%s700] sm:$0xff] %v715
            %722 = vst [vmem:[%s702] sm:$0xff] %v718
            %s723 = smov [#allocation21]
            %v724 = vld [vmem:[%s723] ss:$0 sm:$0xff]
            %s725 = smov [#allocation22]
            %v726 = vld [vmem:[%s725] ss:$0 sm:$0xff]
            %s727 = smov [#allocation12]
            %s728 = smov [#allocation13]
            %s729 = smov [#allocation14]
            %s730 = smov [#allocation15]
            %v731 = vld [vmem:[%s727] sm:$0xff]
            %v732 = vld [vmem:[%s728] sm:$0xff]
            %v733 = vld [vmem:[%s729] sm:$0xff]
            %v734 = vld [vmem:[%s730] sm:$0xff]
            %v735 = vmul.f32 %v724, %v731
            %v736 = vmul.f32 %v726, %v732
            %v737 = vsub.f32 %v735, %v736
            %v738 = vmul.f32 %v726, %v731
            %v739 = vmul.f32 %v724, %v732
            %v740 = vadd.f32 %v738, %v739
            %v741 = vmul.f32 %v724, %v733
            %v742 = vmul.f32 %v726, %v734
            %v743 = vsub.f32 %v741, %v742
            %v744 = vmul.f32 %v726, %v733
            %v745 = vmul.f32 %v724, %v734
            %v746 = vadd.f32 %v744, %v745
            %747 = vst [vmem:[%s727] sm:$0xff] %v737
            %748 = vst [vmem:[%s728] sm:$0xff] %v740
            %749 = vst [vmem:[%s729] sm:$0xff] %v743
            %750 = vst [vmem:[%s730] sm:$0xff] %v746
            %s751 = smov [#allocation12]
            %s752 = scalar_lea.vmem %s751, 8
            %s753 = smov [#allocation13]
            %s754 = scalar_lea.vmem %s753, 8
            %s755 = smov [#allocation14]
            %s756 = scalar_lea.vmem %s755, 8
            %s757 = smov [#allocation15]
            %s758 = scalar_lea.vmem %s757, 8
            %v759 = vld [vmem:[%s752] sm:$0xff]
            %v760 = vld [vmem:[%s754] sm:$0xff]
            %v761 = vld [vmem:[%s756] sm:$0xff]
            %v762 = vld [vmem:[%s758] sm:$0xff]
            %v763 = vmul.f32 %v724, %v759
            %v764 = vmul.f32 %v726, %v760
            %v765 = vsub.f32 %v763, %v764
            %v766 = vmul.f32 %v726, %v759
            %v767 = vmul.f32 %v724, %v760
            %v768 = vadd.f32 %v766, %v767
            %v769 = vmul.f32 %v724, %v761
            %v770 = vmul.f32 %v726, %v762
            %v771 = vsub.f32 %v769, %v770
            %v772 = vmul.f32 %v726, %v761
            %v773 = vmul.f32 %v724, %v762
            %v774 = vadd.f32 %v772, %v773
            %775 = vst [vmem:[%s752] sm:$0xff] %v765
            %776 = vst [vmem:[%s754] sm:$0xff] %v768
            %777 = vst [vmem:[%s756] sm:$0xff] %v771
            %778 = vst [vmem:[%s758] sm:$0xff] %v774
            %s779 = smov [#allocation12]
            %s780 = smov [#allocation19]
            %v781 = vlaneseq
            %v782 = vand.u32 %v781, 127
            %v783 = vmov %v782
            %v784 = vlaneseq
            %v785 = vshrl.u32 %v784, 7
            %v786 = vmov %v785
            %v787 = vld [vmem:[%s780] ss:$0 sm:$0xff]
            %v788 = vld [vmem:[%s779] sm:$0xff]
            %vm791 = vcmp.eq.s32.totalorder %v786, %v783
            %v792 = vsel %vm791, %v787, %v788
            %793 = vst [vmem:[%s779] sm:$0xff] %v792
            %v794 = vld [vmem:[%s780] ss:$0 sm:$0xff]
            %s795 = scalar_lea.vmem %s779, 8
            %v796 = vld [vmem:[%s795] sm:$0xff]
            %v798 = vadd.s32 %v786, 8
            %vm799 = vcmp.eq.s32.totalorder %v798, %v783
            %v800 = vsel %vm799, %v794, %v796
            %801 = vst [vmem:[%s795] sm:$0xff] %v800
            %s802 = smov [#allocation13]
            %v803 = vlaneseq
            %v804 = vand.u32 %v803, 127
            %v805 = vmov %v804
            %v806 = vlaneseq
            %v807 = vshrl.u32 %v806, 7
            %v808 = vmov %v807
            %v809 = vld [vmem:[%s802] sm:$0xff]
            %vm812 = vcmp.eq.s32.totalorder %v808, %v805
            %v813 = vsel %vm812, 0.0, %v809
            %814 = vst [vmem:[%s802] sm:$0xff] %v813
            %s815 = scalar_lea.vmem %s802, 8
            %v816 = vld [vmem:[%s815] sm:$0xff]
            %v818 = vadd.s32 %v808, 8
            %vm819 = vcmp.eq.s32.totalorder %v818, %v805
            %v820 = vsel %vm819, 0.0, %v816
            %821 = vst [vmem:[%s815] sm:$0xff] %v820
            %s822 = smov [#allocation14]
            %v823 = vlaneseq
            %v824 = vand.u32 %v823, 127
            %v825 = vmov %v824
            %v826 = vlaneseq
            %v827 = vshrl.u32 %v826, 7
            %v828 = vmov %v827
            %v829 = vld [vmem:[%s822] sm:$0xff]
            %vm832 = vcmp.eq.s32.totalorder %v828, %v825
            %v833 = vsel %vm832, 0.0, %v829
            %834 = vst [vmem:[%s822] sm:$0xff] %v833
            %s835 = scalar_lea.vmem %s822, 8
            %v836 = vld [vmem:[%s835] sm:$0xff]
            %v838 = vadd.s32 %v828, 8
            %vm839 = vcmp.eq.s32.totalorder %v838, %v825
            %v840 = vsel %vm839, 0.0, %v836
            %841 = vst [vmem:[%s835] sm:$0xff] %v840
            %s842 = smov [#allocation15]
            %s843 = smov [#allocation20]
            %v844 = vlaneseq
            %v845 = vand.u32 %v844, 127
            %v846 = vmov %v845
            %v847 = vlaneseq
            %v848 = vshrl.u32 %v847, 7
            %v849 = vmov %v848
            %v850 = vld [vmem:[%s843] ss:$0 sm:$0xff]
            %v851 = vld [vmem:[%s842] sm:$0xff]
            %vm854 = vcmp.eq.s32.totalorder %v849, %v846
            %v855 = vsel %vm854, %v850, %v851
            %856 = vst [vmem:[%s842] sm:$0xff] %v855
            %v857 = vld [vmem:[%s843] ss:$0 sm:$0xff]
            %s858 = scalar_lea.vmem %s842, 8
            %v859 = vld [vmem:[%s858] sm:$0xff]
            %v861 = vadd.s32 %v849, 8
            %vm862 = vcmp.eq.s32.totalorder %v861, %v846
            %v863 = vsel %vm862, %v857, %v859
            %864 = vst [vmem:[%s858] sm:$0xff] %v863
            %s865 = smov [#allocation12]
            %s866 = smov [#allocation13]
            %v867 = vld [vmem:[%s866] sm:$0xff]
            %868 = vrot.lane.b32.xlu0 %v867, 1
            %v869 = vpop.permute.xlu0 %868
            %v870 = vld [vmem:[%s865] sm:$0xff]
            %v871 = vld [vmem:[%s865] sm:$0xff]
            %872 = vrot.lane.b32.xlu0 %v871, 1
            %v873 = vpop.permute.xlu0 %872
            %v874 = vlaneseq
            %v875 = vand.u32 %v874, 127
            %vm876 = vcmp.eq.s32.totalorder %v875, 0
            %v877 = vsel %vm876, %v871, %v873
            %v878 = vlaneseq
            %v879 = vand.u32 %v878, 127
            %vm880 = vcmp.eq.s32.totalorder %v879, 1
            %v881 = vsel %vm880, %v869, %v877
            %v882 = vlaneseq
            %v883 = vand.u32 %v882, 127
            %vm884 = vcmp.ge.s32.totalorder %v883, 0
            %vm885 = vcmp.lt.s32.totalorder %v883, 16
            %vm886 = vmand %vm884, %vm885
            %v887 = vsel %vm886, %v881, 0.0
            %v888 = vld [vmem:[%s866] sm:$0xff]
            %889 = vrot.lane.b32.xlu0 %v888, 127
            %v890 = vpop.permute.xlu0 %889
            %v891 = vlaneseq
            %v892 = vand.u32 %v891, 127
            %vm893 = vcmp.eq.s32.totalorder %v892, 15
            %v894 = vsel %vm893, %v870, %v890
            %s895 = smov [#allocation12]
            %s896 = scalar_lea.vmem %s895, 8
            %s897 = smov [#allocation13]
            %s898 = scalar_lea.vmem %s897, 8
            %v899 = vld [vmem:[%s898] sm:$0xff]
            %900 = vrot.lane.b32.xlu0 %v899, 1
            %v901 = vpop.permute.xlu0 %900
            %v902 = vld [vmem:[%s896] sm:$0xff]
            %v903 = vld [vmem:[%s896] sm:$0xff]
            %904 = vrot.lane.b32.xlu0 %v903, 1
            %v905 = vpop.permute.xlu0 %904
            %v906 = vlaneseq
            %v907 = vand.u32 %v906, 127
            %vm908 = vcmp.eq.s32.totalorder %v907, 0
            %v909 = vsel %vm908, %v903, %v905
            %v910 = vlaneseq
            %v911 = vand.u32 %v910, 127
            %vm912 = vcmp.eq.s32.totalorder %v911, 1
            %v913 = vsel %vm912, %v901, %v909
            %v914 = vlaneseq
            %v915 = vand.u32 %v914, 127
            %vm916 = vcmp.ge.s32.totalorder %v915, 0
            %vm917 = vcmp.lt.s32.totalorder %v915, 16
            %vm918 = vmand %vm916, %vm917
            %v919 = vsel %vm918, %v913, 0.0
            %v920 = vld [vmem:[%s898] sm:$0xff]
            %921 = vrot.lane.b32.xlu0 %v920, 127
            %v922 = vpop.permute.xlu0 %921
            %v923 = vlaneseq
            %v924 = vand.u32 %v923, 127
            %vm925 = vcmp.eq.s32.totalorder %v924, 15
            %v926 = vsel %vm925, %v902, %v922
            %927 = vst [vmem:[%s865] sm:$0xff] %v887
            %928 = vst [vmem:[%s866] sm:$0xff] %v894
            %929 = vst [vmem:[%s896] sm:$0xff] %v919
            %930 = vst [vmem:[%s898] sm:$0xff] %v926
            %s931 = smov [#allocation14]
            %s932 = smov [#allocation15]
            %v933 = vld [vmem:[%s932] sm:$0xff]
            %934 = vrot.lane.b32.xlu0 %v933, 1
            %v935 = vpop.permute.xlu0 %934
            %v936 = vld [vmem:[%s931] sm:$0xff]
            %v937 = vld [vmem:[%s931] sm:$0xff]
            %938 = vrot.lane.b32.xlu0 %v937, 1
            %v939 = vpop.permute.xlu0 %938
            %v940 = vlaneseq
            %v941 = vand.u32 %v940, 127
            %vm942 = vcmp.eq.s32.totalorder %v941, 0
            %v943 = vsel %vm942, %v937, %v939
            %v944 = vlaneseq
            %v945 = vand.u32 %v944, 127
            %vm946 = vcmp.eq.s32.totalorder %v945, 1
            %v947 = vsel %vm946, %v935, %v943
            %v948 = vlaneseq
            %v949 = vand.u32 %v948, 127
            %vm950 = vcmp.ge.s32.totalorder %v949, 0
            %vm951 = vcmp.lt.s32.totalorder %v949, 16
            %vm952 = vmand %vm950, %vm951
            %v953 = vsel %vm952, %v947, 0.0
            %v954 = vld [vmem:[%s932] sm:$0xff]
            %955 = vrot.lane.b32.xlu0 %v954, 127
            %v956 = vpop.permute.xlu0 %955
            %v957 = vlaneseq
            %v958 = vand.u32 %v957, 127
            %vm959 = vcmp.eq.s32.totalorder %v958, 15
            %v960 = vsel %vm959, %v936, %v956
            %s961 = smov [#allocation14]
            %s962 = scalar_lea.vmem %s961, 8
            %s963 = smov [#allocation15]
            %s964 = scalar_lea.vmem %s963, 8
            %v965 = vld [vmem:[%s964] sm:$0xff]
            %966 = vrot.lane.b32.xlu0 %v965, 1
            %v967 = vpop.permute.xlu0 %966
            %v968 = vld [vmem:[%s962] sm:$0xff]
            %v969 = vld [vmem:[%s962] sm:$0xff]
            %970 = vrot.lane.b32.xlu0 %v969, 1
            %v971 = vpop.permute.xlu0 %970
            %v972 = vlaneseq
            %v973 = vand.u32 %v972, 127
            %vm974 = vcmp.eq.s32.totalorder %v973, 0
            %v975 = vsel %vm974, %v969, %v971
            %v976 = vlaneseq
            %v977 = vand.u32 %v976, 127
            %vm978 = vcmp.eq.s32.totalorder %v977, 1
            %v979 = vsel %vm978, %v967, %v975
            %v980 = vlaneseq
            %v981 = vand.u32 %v980, 127
            %vm982 = vcmp.ge.s32.totalorder %v981, 0
            %vm983 = vcmp.lt.s32.totalorder %v981, 16
            %vm984 = vmand %vm982, %vm983
            %v985 = vsel %vm984, %v979, 0.0
            %v986 = vld [vmem:[%s964] sm:$0xff]
            %987 = vrot.lane.b32.xlu0 %v986, 127
            %v988 = vpop.permute.xlu0 %987
            %v989 = vlaneseq
            %v990 = vand.u32 %v989, 127
            %vm991 = vcmp.eq.s32.totalorder %v990, 15
            %v992 = vsel %vm991, %v968, %v988
            %993 = vst [vmem:[%s931] sm:$0xff] %v953
            %994 = vst [vmem:[%s932] sm:$0xff] %v960
            %995 = vst [vmem:[%s962] sm:$0xff] %v985
            %996 = vst [vmem:[%s964] sm:$0xff] %v992
            %s997 = smov [#allocation12]
            %s998 = smov [#allocation14]
            %v999 = vld [vmem:[%s997] ss:$0 sm:$0xff]
            %s1001 = scalar_lea.vmem %s997, 4294967295
            %v1002 = vld [vmem:[%s1001] sm:$0xfe]
            %v1003 = vlaneseq
            %v1004 = vshrl.u32 %v1003, 7
            %vm1005 = vcmp.eq.s32.totalorder %v1004, 0
            %v1006 = vsel %vm1005, %v999, %v1002
            %s1007 = scalar_lea.vmem %s997, 7
            %v1008 = vld [vmem:[%s1007] ss:$0 sm:$0xff]
            %1009 = vst [vmem:[%s997] sm:$0xff] %v1006
            %s1010 = scalar_lea.vmem %s997, 8
            %s1012 = scalar_lea.vmem %s1010, 4294967295
            %v1013 = vld [vmem:[%s1012] sm:$0xfe]
            %v1014 = vlaneseq
            %v1015 = vshrl.u32 %v1014, 7
            %vm1016 = vcmp.eq.s32.totalorder %v1015, 0
            %v1017 = vsel %vm1016, %v1008, %v1013
            %s1018 = scalar_lea.vmem %s1010, 7
            %v1019 = vld [vmem:[%s1018] ss:$0 sm:$0xff]
            %1020 = vst [vmem:[%s1010] sm:$0xff] %v1017
            %v1021 = vld [vmem:[%s998] ss:$0 sm:$0xff]
            %s1022 = scalar_lea.vmem %s997, 1
            %1023 = vst [vmem:[%s1022] sm:$0x1] %v1021
            %s1024 = scalar_lea.vmem %s998, 8
            %s1025 = scalar_lea.vmem %s1024, 1
            %v1026 = vld [vmem:[%s1025] sm:$0x7f]
            %v1027 = vlaneseq
            %v1028 = vshrl.u32 %v1027, 7
            %vm1029 = vcmp.eq.s32.totalorder %v1028, 7
            %v1030 = vsel %vm1029, %v1019, %v1026
            %v1031 = vld [vmem:[%s1024] ss:$0 sm:$0xff]
            %1032 = vst [vmem:[%s1024] sm:$0xff] %v1030
            %s1033 = scalar_lea.vmem %s998, 1
            %v1034 = vld [vmem:[%s1033] sm:$0x7f]
            %v1035 = vlaneseq
            %v1036 = vshrl.u32 %v1035, 7
            %vm1037 = vcmp.eq.s32.totalorder %v1036, 7
            %v1038 = vsel %vm1037, %v1031, %v1034
            %v1039 = vld [vmem:[%s998] ss:$0 sm:$0xff]
            %1040 = vst [vmem:[%s998] sm:$0xff] %v1038
            %s1041 = smov [#allocation13]
            %s1042 = smov [#allocation15]
            %v1043 = vld [vmem:[%s1041] ss:$0 sm:$0xff]
            %s1045 = scalar_lea.vmem %s1041, 4294967295
            %v1046 = vld [vmem:[%s1045] sm:$0xfe]
            %v1047 = vlaneseq
            %v1048 = vshrl.u32 %v1047, 7
            %vm1049 = vcmp.eq.s32.totalorder %v1048, 0
            %v1050 = vsel %vm1049, %v1043, %v1046
            %s1051 = scalar_lea.vmem %s1041, 7
            %v1052 = vld [vmem:[%s1051] ss:$0 sm:$0xff]
            %1053 = vst [vmem:[%s1041] sm:$0xff] %v1050
            %s1054 = scalar_lea.vmem %s1041, 8
            %s1056 = scalar_lea.vmem %s1054, 4294967295
            %v1057 = vld [vmem:[%s1056] sm:$0xfe]
            %v1058 = vlaneseq
            %v1059 = vshrl.u32 %v1058, 7
            %vm1060 = vcmp.eq.s32.totalorder %v1059, 0
            %v1061 = vsel %vm1060, %v1052, %v1057
            %s1062 = scalar_lea.vmem %s1054, 7
            %v1063 = vld [vmem:[%s1062] ss:$0 sm:$0xff]
            %1064 = vst [vmem:[%s1054] sm:$0xff] %v1061
            %v1065 = vld [vmem:[%s1042] ss:$0 sm:$0xff]
            %s1066 = scalar_lea.vmem %s1041, 1
            %1067 = vst [vmem:[%s1066] sm:$0x1] %v1065
            %s1068 = scalar_lea.vmem %s1042, 8
            %s1069 = scalar_lea.vmem %s1068, 1
            %v1070 = vld [vmem:[%s1069] sm:$0x7f]
            %v1071 = vlaneseq
            %v1072 = vshrl.u32 %v1071, 7
            %vm1073 = vcmp.eq.s32.totalorder %v1072, 7
            %v1074 = vsel %vm1073, %v1063, %v1070
            %v1075 = vld [vmem:[%s1068] ss:$0 sm:$0xff]
            %1076 = vst [vmem:[%s1068] sm:$0xff] %v1074
            %s1077 = scalar_lea.vmem %s1042, 1
            %v1078 = vld [vmem:[%s1077] sm:$0x7f]
            %v1079 = vlaneseq
            %v1080 = vshrl.u32 %v1079, 7
            %vm1081 = vcmp.eq.s32.totalorder %v1080, 7
            %v1082 = vsel %vm1081, %v1075, %v1078
            %v1083 = vld [vmem:[%s1042] ss:$0 sm:$0xff]
            %1084 = vst [vmem:[%s1042] sm:$0xff] %v1082
            %s1085 = smov [#allocation23]
            %v1086 = vld [vmem:[%s1085] sm:$0xff]
            %s1087 = smov [#allocation24]
            %v1088 = vld [vmem:[%s1087] sm:$0xff]
            %s1089 = smov %s241
            %s1090 = smov %s245
            %s1091 = smov %s249
            %s1092 = smov %s253
            %v1093 = vld [vmem:[%s1089] sm:$0xff]
            %v1094 = vld [vmem:[%s1090] sm:$0xff]
            %v1095 = vld [vmem:[%s1091] sm:$0xff]
            %v1096 = vld [vmem:[%s1092] sm:$0xff]
            %v1097 = vmul.f32 %v1086, %v1093
            %v1098 = vmul.f32 %v1088, %v1095
            %v1099 = vsub.f32 %v1097, %v1098
            %v1100 = vmul.f32 %v1086, %v1094
            %v1101 = vmul.f32 %v1088, %v1096
            %v1102 = vsub.f32 %v1100, %v1101
            %v1103 = vmul.f32 %v1088, %v1093
            %v1104 = vmul.f32 %v1086, %v1095
            %v1105 = vadd.f32 %v1103, %v1104
            %v1106 = vmul.f32 %v1088, %v1094
            %v1107 = vmul.f32 %v1086, %v1096
            %v1108 = vadd.f32 %v1106, %v1107
            %1109 = vst [vmem:[%s1089] sm:$0xff] %v1099
            %1110 = vst [vmem:[%s1090] sm:$0xff] %v1102
            %1111 = vst [vmem:[%s1091] sm:$0xff] %v1105
            %1112 = vst [vmem:[%s1092] sm:$0xff] %v1108
            %s1113 = smov [#allocation23]
            %s1114 = scalar_lea.vmem %s1113, 8
            %v1115 = vld [vmem:[%s1114] sm:$0xff]
            %s1116 = smov [#allocation24]
            %s1117 = scalar_lea.vmem %s1116, 8
            %v1118 = vld [vmem:[%s1117] sm:$0xff]
            %s1119 = smov %s241
            %s1120 = scalar_lea.vmem %s1119, 8
            %s1121 = smov %s245
            %s1122 = scalar_lea.vmem %s1121, 8
            %s1123 = smov %s249
            %s1124 = scalar_lea.vmem %s1123, 8
            %s1125 = smov %s253
            %s1126 = scalar_lea.vmem %s1125, 8
            %v1127 = vld [vmem:[%s1120] sm:$0xff]
            %v1128 = vld [vmem:[%s1122] sm:$0xff]
            %v1129 = vld [vmem:[%s1124] sm:$0xff]
            %v1130 = vld [vmem:[%s1126] sm:$0xff]
            %v1131 = vmul.f32 %v1115, %v1127
            %v1132 = vmul.f32 %v1118, %v1129
            %v1133 = vsub.f32 %v1131, %v1132
            %v1134 = vmul.f32 %v1115, %v1128
            %v1135 = vmul.f32 %v1118, %v1130
            %v1136 = vsub.f32 %v1134, %v1135
            %v1137 = vmul.f32 %v1118, %v1127
            %v1138 = vmul.f32 %v1115, %v1129
            %v1139 = vadd.f32 %v1137, %v1138
            %v1140 = vmul.f32 %v1118, %v1128
            %v1141 = vmul.f32 %v1115, %v1130
            %v1142 = vadd.f32 %v1140, %v1141
            %1143 = vst [vmem:[%s1120] sm:$0xff] %v1133
            %1144 = vst [vmem:[%s1122] sm:$0xff] %v1136
            %1145 = vst [vmem:[%s1124] sm:$0xff] %v1139
            %1146 = vst [vmem:[%s1126] sm:$0xff] %v1142
            %s1147 = smov %s241
            %s1148 = smov %s249
            %v1149 = vld [vmem:[%s1147] ss:$0 sm:$0xff]
            %s1151 = scalar_lea.vmem %s1147, 4294967295
            %v1152 = vld [vmem:[%s1151] sm:$0xfe]
            %v1153 = vlaneseq
            %v1154 = vshrl.u32 %v1153, 7
            %vm1155 = vcmp.eq.s32.totalorder %v1154, 0
            %v1156 = vsel %vm1155, %v1149, %v1152
            %s1157 = scalar_lea.vmem %s1147, 7
            %v1158 = vld [vmem:[%s1157] ss:$0 sm:$0xff]
            %1159 = vst [vmem:[%s1147] sm:$0xff] %v1156
            %s1160 = scalar_lea.vmem %s1147, 8
            %s1162 = scalar_lea.vmem %s1160, 4294967295
            %v1163 = vld [vmem:[%s1162] sm:$0xfe]
            %v1164 = vlaneseq
            %v1165 = vshrl.u32 %v1164, 7
            %vm1166 = vcmp.eq.s32.totalorder %v1165, 0
            %v1167 = vsel %vm1166, %v1158, %v1163
            %s1168 = scalar_lea.vmem %s1160, 7
            %v1169 = vld [vmem:[%s1168] ss:$0 sm:$0xff]
            %1170 = vst [vmem:[%s1160] sm:$0xff] %v1167
            %v1171 = vld [vmem:[%s1148] ss:$0 sm:$0xff]
            %s1172 = scalar_lea.vmem %s1147, 1
            %1173 = vst [vmem:[%s1172] sm:$0x1] %v1171
            %s1174 = scalar_lea.vmem %s1148, 8
            %s1175 = scalar_lea.vmem %s1174, 1
            %v1176 = vld [vmem:[%s1175] sm:$0x7f]
            %v1177 = vlaneseq
            %v1178 = vshrl.u32 %v1177, 7
            %vm1179 = vcmp.eq.s32.totalorder %v1178, 7
            %v1180 = vsel %vm1179, %v1169, %v1176
            %v1181 = vld [vmem:[%s1174] ss:$0 sm:$0xff]
            %1182 = vst [vmem:[%s1174] sm:$0xff] %v1180
            %s1183 = scalar_lea.vmem %s1148, 1
            %v1184 = vld [vmem:[%s1183] sm:$0x7f]
            %v1185 = vlaneseq
            %v1186 = vshrl.u32 %v1185, 7
            %vm1187 = vcmp.eq.s32.totalorder %v1186, 7
            %v1188 = vsel %vm1187, %v1181, %v1184
            %v1189 = vld [vmem:[%s1148] ss:$0 sm:$0xff]
            %1190 = vst [vmem:[%s1148] sm:$0xff] %v1188
            %s1191 = smov %s245
            %s1192 = smov %s253
            %v1193 = vld [vmem:[%s1191] ss:$0 sm:$0xff]
            %s1195 = scalar_lea.vmem %s1191, 4294967295
            %v1196 = vld [vmem:[%s1195] sm:$0xfe]
            %v1197 = vlaneseq
            %v1198 = vshrl.u32 %v1197, 7
            %vm1199 = vcmp.eq.s32.totalorder %v1198, 0
            %v1200 = vsel %vm1199, %v1193, %v1196
            %s1201 = scalar_lea.vmem %s1191, 7
            %v1202 = vld [vmem:[%s1201] ss:$0 sm:$0xff]
            %1203 = vst [vmem:[%s1191] sm:$0xff] %v1200
            %s1204 = scalar_lea.vmem %s1191, 8
            %s1206 = scalar_lea.vmem %s1204, 4294967295
            %v1207 = vld [vmem:[%s1206] sm:$0xfe]
            %v1208 = vlaneseq
            %v1209 = vshrl.u32 %v1208, 7
            %vm1210 = vcmp.eq.s32.totalorder %v1209, 0
            %v1211 = vsel %vm1210, %v1202, %v1207
            %s1212 = scalar_lea.vmem %s1204, 7
            %v1213 = vld [vmem:[%s1212] ss:$0 sm:$0xff]
            %1214 = vst [vmem:[%s1204] sm:$0xff] %v1211
            %v1215 = vld [vmem:[%s1192] ss:$0 sm:$0xff]
            %s1216 = scalar_lea.vmem %s1191, 1
            %1217 = vst [vmem:[%s1216] sm:$0x1] %v1215
            %s1218 = scalar_lea.vmem %s1192, 8
            %s1219 = scalar_lea.vmem %s1218, 1
            %v1220 = vld [vmem:[%s1219] sm:$0x7f]
            %v1221 = vlaneseq
            %v1222 = vshrl.u32 %v1221, 7
            %vm1223 = vcmp.eq.s32.totalorder %v1222, 7
            %v1224 = vsel %vm1223, %v1213, %v1220
            %v1225 = vld [vmem:[%s1218] ss:$0 sm:$0xff]
            %1226 = vst [vmem:[%s1218] sm:$0xff] %v1224
            %s1227 = scalar_lea.vmem %s1192, 1
            %v1228 = vld [vmem:[%s1227] sm:$0x7f]
            %v1229 = vlaneseq
            %v1230 = vshrl.u32 %v1229, 7
            %vm1231 = vcmp.eq.s32.totalorder %v1230, 7
            %v1232 = vsel %vm1231, %v1225, %v1228
            %v1233 = vld [vmem:[%s1192] ss:$0 sm:$0xff]
            %1234 = vst [vmem:[%s1192] sm:$0xff] %v1232
          $region108: #{custom-call.9} parent=100 // loop_footer
            %s471 = sadd.s32 1, %s467
          $region109: #{custom-call.9} parent=100 // loop_footer_branch
            %466 = sbr.rel target = $region105
          $region110: #{custom-call.9} parent=100 // loop_exit
            _
          %s1235 = sadd.s32 %s337, 1
        $region101: #{custom-call.9} parent=95 // loop_footer
          _
        $region102: #{custom-call.9} parent=95 // loop_footer_branch
          %336 = sbr.rel target = $region98
        $region103: #{custom-call.9} parent=95 // loop_exit
          _
        %s1238 = sand.u32 %s17, 7
        %s1239 = scalar_lea.vmem [#allocation4], %s1238
        %s1240 = sand.u32 %s17, 7
        %s1241 = scalar_lea.vmem [#allocation6], %s1240
        %s1242 = smov [#allocation12]
        %s1243 = smov %s1239
        %v1244 = vlaneseq
        %v1245 = vand.u32 %v1244, 127
        %v1246 = vmov %v1245
        %v1247 = vlaneseq
        %v1248 = vshrl.u32 %v1247, 7
        %v1249 = vmov %v1248
        %v1250 = vld [vmem:[%s1242] sm:$0xff]
        %vm1253 = vcmp.eq.s32.totalorder %v1249, %v1246
        %v1254 = vsel %vm1253, %v1250, 0.0
        %s1255 = scalar_lea.vmem %s1242, 8
        %v1256 = vld [vmem:[%s1255] sm:$0xff]
        %v1258 = vadd.s32 %v1249, 8
        %vm1259 = vcmp.eq.s32.totalorder %v1258, %v1246
        %v1260 = vsel %vm1259, %v1256, %v1254
        %v1261 = vrot.slane %v1260, 4
        %v1262 = vadd.f32 %v1260, %v1261
        %v1263 = vrot.slane %v1262, 2
        %v1264 = vadd.f32 %v1262, %v1263
        %v1265 = vrot.slane %v1264, 1
        %v1266 = vadd.f32 %v1264, %v1265
        %1267 = vst [vmem:[%s1243] sm:$0x1] %v1266
        %s1268 = smov [#allocation15]
        %s1269 = smov %s1241
        %v1270 = vlaneseq
        %v1271 = vand.u32 %v1270, 127
        %v1272 = vmov %v1271
        %v1273 = vlaneseq
        %v1274 = vshrl.u32 %v1273, 7
        %v1275 = vmov %v1274
        %v1276 = vld [vmem:[%s1268] sm:$0xff]
        %vm1279 = vcmp.eq.s32.totalorder %v1275, %v1272
        %v1280 = vsel %vm1279, %v1276, 0.0
        %s1281 = scalar_lea.vmem %s1268, 8
        %v1282 = vld [vmem:[%s1281] sm:$0xff]
        %v1284 = vadd.s32 %v1275, 8
        %vm1285 = vcmp.eq.s32.totalorder %v1284, %v1272
        %v1286 = vsel %vm1285, %v1282, %v1280
        %v1287 = vrot.slane %v1286, 4
        %v1288 = vadd.f32 %v1286, %v1287
        %v1289 = vrot.slane %v1288, 2
        %v1290 = vadd.f32 %v1288, %v1289
        %v1291 = vrot.slane %v1290, 1
        %v1292 = vadd.f32 %v1290, %v1291
        %1293 = vst [vmem:[%s1269] sm:$0x1] %v1292
        %s1295 = sshllo.u32 0, 2
        %v1297 = vld [vmem:[#allocation4] sm:%s1295]
        %s1298 = sshllo.u32 0, 2
        %1299 = vst [vmem:[%s231] sm:%s1298] %v1297
        %s1301 = sshllo.u32 0, 2
        %v1303 = vld [vmem:[#allocation6] sm:%s1301]
        %s1304 = sshllo.u32 0, 2
        %1305 = vst [vmem:[%s237] sm:%s1304] %v1303
        %s1306 = sand.u32 %s27, 1
        %s1307 = sand.u32 %s27, 1
        %s1308 = smul.addr %s1307, 2
        %s1309 = scalar_lea.vmem [#allocation5], %s1308
        %s1310 = sand.u32 %s55, 1
        %s1311 = sand.u32 %s55, 1
        %s1312 = smul.addr %s1311, 2
        %s1313 = scalar_lea.vmem [#allocation7], %s1312
        %s1314 = sand.u32 %s17, 1
        %s1315 = sand.u32 %s17, 1
        %s1316 = smul.addr %s1315, 16
        %s1317 = scalar_lea.vmem [#allocation8], %s1316
        %s1318 = sand.u32 %s17, 1
        %s1319 = sand.u32 %s17, 1
        %s1320 = smul.addr %s1319, 16
        %s1321 = scalar_lea.vmem [#allocation9], %s1320
        %s1322 = sand.u32 %s17, 1
        %s1323 = sand.u32 %s17, 1
        %s1324 = smul.addr %s1323, 16
        %s1325 = scalar_lea.vmem [#allocation10], %s1324
        %s1326 = sand.u32 %s17, 1
        %s1327 = sand.u32 %s17, 1
        %s1328 = smul.addr %s1327, 16
        %s1329 = scalar_lea.vmem [#allocation11], %s1328
        // Predicated region
        $region111: #{custom-call.9} parent=95 // pred_check
          %p1330 = pneg %p37
        $region112: #{custom-call.9} parent=95 // pred_check_branch
          %1332 = sbr.rel (%p1330) target = $region114
        $region113: #{custom-call.9} parent=95 // pred_region
          %s1333 = sshrl.u32 %s17, 3
          %s1334 = smul.addr %s1333, 2
          %s1335 = scalar_lea.vmem %s4, %s1334
          // Predicated region
          $region115: #{custom-call.9} parent=113 // pred_check
            _
          $region116: #{custom-call.9} parent=113 // pred_check_branch
            %1337 = sbr.rel (0) target = $region118
          $region117: #{custom-call.9} parent=113 // pred_region
            // Predicated region
            $region119: #{custom-call.9} parent=117 // pred_check
              _
            $region120: #{custom-call.9} parent=117 // pred_check_branch
              %1339 = sbr.rel target = $region122
            $region121: #{custom-call.9} parent=117 // pred_region
              // Predicated region
              $region134: #{custom-call.9} parent=121 // pred_check
                _
              $region135: #{custom-call.9} parent=121 // pred_check_branch
                %1354 = sbr.rel (0) target = $region137
              $region136: #{custom-call.9} parent=121 // pred_region
                loop: start=0, step=1, limit=1
                $region138: #{custom-call.9} parent=136 // loop_pre_header
                  _
                $region139: #{custom-call.9} parent=136 // loop_header
                  %s1357 = sphi 0, %s1361
                  %p1358 = scmp.ge.s32.totalorder %s1357, 1
                  %s1362 = sphi %s1309, %s1309
                  %s1363 = sphi %s1335, %s1335
                $region140: #{custom-call.9} parent=136 // loop_header_branch
                  %1360 = sbr.rel (%p1358) target = $region144
                $region141: #{custom-call.9} parent=136 // loop_body
                  %v1364 = vld [vmem:[%s1362] sm:$0x3]
                  %1365 = vst [vmem:[%s1363] sm:$0x3] %v1364
                $region142: #{custom-call.9} parent=136 // loop_footer
                  %s1361 = sadd.s32 1, %s1357
                $region143: #{custom-call.9} parent=136 // loop_footer_branch
                  %1356 = sbr.rel target = $region139
                $region144: #{custom-call.9} parent=136 // loop_exit
                  _
              $region137: #{custom-call.9} parent=121 // pred_fallthru
                _
            $region122: #{custom-call.9} parent=117 // pred_fallthru
              _
            // Predicated region
            $region123: #{custom-call.9} parent=117 // pred_check
              _
            $region124: #{custom-call.9} parent=117 // pred_check_branch
              %1341 = sbr.rel (0) target = $region126
            $region125: #{custom-call.9} parent=117 // pred_region
              loop: start=0, step=1, limit=1
              $region127: #{custom-call.9} parent=125 // loop_pre_header
                _
              $region128: #{custom-call.9} parent=125 // loop_header
                %s1344 = sphi 0, %s1348
                %p1345 = scmp.ge.s32.totalorder %s1344, 1
                %s1349 = sphi %s1309, %s1309
                %s1350 = sphi %s1335, %s1335
              $region129: #{custom-call.9} parent=125 // loop_header_branch
                %1347 = sbr.rel (%p1345) target = $region133
              $region130: #{custom-call.9} parent=125 // loop_body
                %v1351 = vld [vmem:[%s1349] sm:$0x3]
                %1352 = vst [vmem:[%s1350] sm:$0x3] %v1351
              $region131: #{custom-call.9} parent=125 // loop_footer
                %s1348 = sadd.s32 1, %s1344
              $region132: #{custom-call.9} parent=125 // loop_footer_branch
                %1343 = sbr.rel target = $region128
              $region133: #{custom-call.9} parent=125 // loop_exit
                _
            $region126: #{custom-call.9} parent=117 // pred_fallthru
              _
          $region118: #{custom-call.9} parent=113 // pred_fallthru
            _
          %1366 = vnop
        $region114: #{custom-call.9} parent=95 // pred_fallthru
          _
        // Predicated region
        $region145: #{custom-call.9} parent=95 // pred_check
          %p1367 = pneg %p65
        $region146: #{custom-call.9} parent=95 // pred_check_branch
          %1369 = sbr.rel (%p1367) target = $region148
        $region147: #{custom-call.9} parent=95 // pred_region
          %s1370 = sshrl.u32 %s17, 3
          %s1371 = smul.addr %s1370, 2
          %s1372 = scalar_lea.vmem %s5, %s1371
          // Predicated region
          $region149: #{custom-call.9} parent=147 // pred_check
            _
          $region150: #{custom-call.9} parent=147 // pred_check_branch
            %1374 = sbr.rel (0) target = $region152
          $region151: #{custom-call.9} parent=147 // pred_region
            // Predicated region
            $region153: #{custom-call.9} parent=151 // pred_check
              _
            $region154: #{custom-call.9} parent=151 // pred_check_branch
              %1376 = sbr.rel target = $region156
            $region155: #{custom-call.9} parent=151 // pred_region
              // Predicated region
              $region168: #{custom-call.9} parent=155 // pred_check
                _
              $region169: #{custom-call.9} parent=155 // pred_check_branch
                %1391 = sbr.rel (0) target = $region171
              $region170: #{custom-call.9} parent=155 // pred_region
                loop: start=0, step=1, limit=1
                $region172: #{custom-call.9} parent=170 // loop_pre_header
                  _
                $region173: #{custom-call.9} parent=170 // loop_header
                  %s1394 = sphi 0, %s1398
                  %p1395 = scmp.ge.s32.totalorder %s1394, 1
                  %s1399 = sphi %s1313, %s1313
                  %s1400 = sphi %s1372, %s1372
                $region174: #{custom-call.9} parent=170 // loop_header_branch
                  %1397 = sbr.rel (%p1395) target = $region178
                $region175: #{custom-call.9} parent=170 // loop_body
                  %v1401 = vld [vmem:[%s1399] sm:$0x3]
                  %1402 = vst [vmem:[%s1400] sm:$0x3] %v1401
                $region176: #{custom-call.9} parent=170 // loop_footer
                  %s1398 = sadd.s32 1, %s1394
                $region177: #{custom-call.9} parent=170 // loop_footer_branch
                  %1393 = sbr.rel target = $region173
                $region178: #{custom-call.9} parent=170 // loop_exit
                  _
              $region171: #{custom-call.9} parent=155 // pred_fallthru
                _
            $region156: #{custom-call.9} parent=151 // pred_fallthru
              _
            // Predicated region
            $region157: #{custom-call.9} parent=151 // pred_check
              _
            $region158: #{custom-call.9} parent=151 // pred_check_branch
              %1378 = sbr.rel (0) target = $region160
            $region159: #{custom-call.9} parent=151 // pred_region
              loop: start=0, step=1, limit=1
              $region161: #{custom-call.9} parent=159 // loop_pre_header
                _
              $region162: #{custom-call.9} parent=159 // loop_header
                %s1381 = sphi 0, %s1385
                %p1382 = scmp.ge.s32.totalorder %s1381, 1
                %s1386 = sphi %s1313, %s1313
                %s1387 = sphi %s1372, %s1372
              $region163: #{custom-call.9} parent=159 // loop_header_branch
                %1384 = sbr.rel (%p1382) target = $region167
              $region164: #{custom-call.9} parent=159 // loop_body
                %v1388 = vld [vmem:[%s1386] sm:$0x3]
                %1389 = vst [vmem:[%s1387] sm:$0x3] %v1388
              $region165: #{custom-call.9} parent=159 // loop_footer
                %s1385 = sadd.s32 1, %s1381
              $region166: #{custom-call.9} parent=159 // loop_footer_branch
                %1380 = sbr.rel target = $region162
              $region167: #{custom-call.9} parent=159 // loop_exit
                _
            $region160: #{custom-call.9} parent=151 // pred_fallthru
              _
          $region152: #{custom-call.9} parent=147 // pred_fallthru
            _
          %1403 = vnop
        $region148: #{custom-call.9} parent=95 // pred_fallthru
          _
        %s1404 = smul.addr %s17, 16
        %s1405 = scalar_lea.vmem %s6, %s1404
        // Predicated region
        $region179: #{custom-call.9} parent=95 // pred_check
          _
        $region180: #{custom-call.9} parent=95 // pred_check_branch
          %1407 = sbr.rel (0) target = $region182
        $region181: #{custom-call.9} parent=95 // pred_region
          // Predicated region
          $region183: #{custom-call.9} parent=181 // pred_check
            _
          $region184: #{custom-call.9} parent=181 // pred_check_branch
            %1409 = sbr.rel (0) target = $region186
          $region185: #{custom-call.9} parent=181 // pred_region
            loop: start=0, step=1, limit=1
            $region187: #{custom-call.9} parent=185 // loop_pre_header
              _
            $region188: #{custom-call.9} parent=185 // loop_header
              %s1411 = sphi 0, %s1415
              %p1412 = scmp.ge.s32.totalorder %s1411, 1
              %s1416 = sphi %s1317, %s1317
              %s1417 = sphi %s1405, %s1405
            $region189: #{custom-call.9} parent=185 // loop_header_branch
              %1414 = sbr.rel (%p1412) target = $region193
            $region190: #{custom-call.9} parent=185 // loop_body
              %v1418 = vld [vmem:[%s1416] sm:$0xff]
              %1419 = vst [vmem:[%s1417] sm:$0xff] %v1418
              %v1420 = vld [vmem:[%s1416 + $0x8] sm:$0xff]
              %1421 = vst [vmem:[%s1417 + $0x8] sm:$0xff] %v1420
            $region191: #{custom-call.9} parent=185 // loop_footer
              %s1415 = sadd.s32 1, %s1411
            $region192: #{custom-call.9} parent=185 // loop_footer_branch
              %1410 = sbr.rel target = $region188
            $region193: #{custom-call.9} parent=185 // loop_exit
              _
          $region186: #{custom-call.9} parent=181 // pred_fallthru
            _
          // Predicated region
          $region194: #{custom-call.9} parent=181 // pred_check
            _
          $region195: #{custom-call.9} parent=181 // pred_check_branch
            %1423 = sbr.rel target = $region197
          $region196: #{custom-call.9} parent=181 // pred_region
            _
          $region197: #{custom-call.9} parent=181 // pred_fallthru
            _
        $region182: #{custom-call.9} parent=95 // pred_fallthru
          _
        %1424 = vnop
        %s1425 = smul.addr %s17, 16
        %s1426 = scalar_lea.vmem %s7, %s1425
        // Predicated region
        $region198: #{custom-call.9} parent=95 // pred_check
          _
        $region199: #{custom-call.9} parent=95 // pred_check_branch
          %1428 = sbr.rel (0) target = $region201
        $region200: #{custom-call.9} parent=95 // pred_region
          // Predicated region
          $region202: #{custom-call.9} parent=200 // pred_check
            _
          $region203: #{custom-call.9} parent=200 // pred_check_branch
            %1430 = sbr.rel (0) target = $region205
          $region204: #{custom-call.9} parent=200 // pred_region
            loop: start=0, step=1, limit=1
            $region206: #{custom-call.9} parent=204 // loop_pre_header
              _
            $region207: #{custom-call.9} parent=204 // loop_header
              %s1432 = sphi 0, %s1436
              %p1433 = scmp.ge.s32.totalorder %s1432, 1
              %s1437 = sphi %s1321, %s1321
              %s1438 = sphi %s1426, %s1426
            $region208: #{custom-call.9} parent=204 // loop_header_branch
              %1435 = sbr.rel (%p1433) target = $region212
            $region209: #{custom-call.9} parent=204 // loop_body
              %v1439 = vld [vmem:[%s1437] sm:$0xff]
              %1440 = vst [vmem:[%s1438] sm:$0xff] %v1439
              %v1441 = vld [vmem:[%s1437 + $0x8] sm:$0xff]
              %1442 = vst [vmem:[%s1438 + $0x8] sm:$0xff] %v1441
            $region210: #{custom-call.9} parent=204 // loop_footer
              %s1436 = sadd.s32 1, %s1432
            $region211: #{custom-call.9} parent=204 // loop_footer_branch
              %1431 = sbr.rel target = $region207
            $region212: #{custom-call.9} parent=204 // loop_exit
              _
          $region205: #{custom-call.9} parent=200 // pred_fallthru
            _
          // Predicated region
          $region213: #{custom-call.9} parent=200 // pred_check
            _
          $region214: #{custom-call.9} parent=200 // pred_check_branch
            %1444 = sbr.rel target = $region216
          $region215: #{custom-call.9} parent=200 // pred_region
            _
          $region216: #{custom-call.9} parent=200 // pred_fallthru
            _
        $region201: #{custom-call.9} parent=95 // pred_fallthru
          _
        %1445 = vnop
        %s1446 = smul.addr %s17, 16
        %s1447 = scalar_lea.vmem %s8, %s1446
        // Predicated region
        $region217: #{custom-call.9} parent=95 // pred_check
          _
        $region218: #{custom-call.9} parent=95 // pred_check_branch
          %1449 = sbr.rel (0) target = $region220
        $region219: #{custom-call.9} parent=95 // pred_region
          // Predicated region
          $region221: #{custom-call.9} parent=219 // pred_check
            _
          $region222: #{custom-call.9} parent=219 // pred_check_branch
            %1451 = sbr.rel (0) target = $region224
          $region223: #{custom-call.9} parent=219 // pred_region
            loop: start=0, step=1, limit=1
            $region225: #{custom-call.9} parent=223 // loop_pre_header
              _
            $region226: #{custom-call.9} parent=223 // loop_header
              %s1453 = sphi 0, %s1457
              %p1454 = scmp.ge.s32.totalorder %s1453, 1
              %s1458 = sphi %s1325, %s1325
              %s1459 = sphi %s1447, %s1447
            $region227: #{custom-call.9} parent=223 // loop_header_branch
              %1456 = sbr.rel (%p1454) target = $region231
            $region228: #{custom-call.9} parent=223 // loop_body
              %v1460 = vld [vmem:[%s1458] sm:$0xff]
              %1461 = vst [vmem:[%s1459] sm:$0xff] %v1460
              %v1462 = vld [vmem:[%s1458 + $0x8] sm:$0xff]
              %1463 = vst [vmem:[%s1459 + $0x8] sm:$0xff] %v1462
            $region229: #{custom-call.9} parent=223 // loop_footer
              %s1457 = sadd.s32 1, %s1453
            $region230: #{custom-call.9} parent=223 // loop_footer_branch
              %1452 = sbr.rel target = $region226
            $region231: #{custom-call.9} parent=223 // loop_exit
              _
          $region224: #{custom-call.9} parent=219 // pred_fallthru
            _
          // Predicated region
          $region232: #{custom-call.9} parent=219 // pred_check
            _
          $region233: #{custom-call.9} parent=219 // pred_check_branch
            %1465 = sbr.rel target = $region235
          $region234: #{custom-call.9} parent=219 // pred_region
            _
          $region235: #{custom-call.9} parent=219 // pred_fallthru
            _
        $region220: #{custom-call.9} parent=95 // pred_fallthru
          _
        %1466 = vnop
        %s1467 = smul.addr %s17, 16
        %s1468 = scalar_lea.vmem %s9, %s1467
        // Predicated region
        $region236: #{custom-call.9} parent=95 // pred_check
          _
        $region237: #{custom-call.9} parent=95 // pred_check_branch
          %1470 = sbr.rel (0) target = $region239
        $region238: #{custom-call.9} parent=95 // pred_region
          // Predicated region
          $region240: #{custom-call.9} parent=238 // pred_check
            _
          $region241: #{custom-call.9} parent=238 // pred_check_branch
            %1472 = sbr.rel (0) target = $region243
          $region242: #{custom-call.9} parent=238 // pred_region
            loop: start=0, step=1, limit=1
            $region244: #{custom-call.9} parent=242 // loop_pre_header
              _
            $region245: #{custom-call.9} parent=242 // loop_header
              %s1474 = sphi 0, %s1478
              %p1475 = scmp.ge.s32.totalorder %s1474, 1
              %s1479 = sphi %s1329, %s1329
              %s1480 = sphi %s1468, %s1468
            $region246: #{custom-call.9} parent=242 // loop_header_branch
              %1477 = sbr.rel (%p1475) target = $region250
            $region247: #{custom-call.9} parent=242 // loop_body
              %v1481 = vld [vmem:[%s1479] sm:$0xff]
              %1482 = vst [vmem:[%s1480] sm:$0xff] %v1481
              %v1483 = vld [vmem:[%s1479 + $0x8] sm:$0xff]
              %1484 = vst [vmem:[%s1480 + $0x8] sm:$0xff] %v1483
            $region248: #{custom-call.9} parent=242 // loop_footer
              %s1478 = sadd.s32 1, %s1474
            $region249: #{custom-call.9} parent=242 // loop_footer_branch
              %1473 = sbr.rel target = $region245
            $region250: #{custom-call.9} parent=242 // loop_exit
              _
          $region243: #{custom-call.9} parent=238 // pred_fallthru
            _
          // Predicated region
          $region251: #{custom-call.9} parent=238 // pred_check
            _
          $region252: #{custom-call.9} parent=238 // pred_check_branch
            %1486 = sbr.rel target = $region254
          $region253: #{custom-call.9} parent=238 // pred_region
            _
          $region254: #{custom-call.9} parent=238 // pred_fallthru
            _
        $region239: #{custom-call.9} parent=95 // pred_fallthru
          _
        %1487 = vnop
      $region96: #{custom-call.9} parent=5 // pred_fallthru
        _
      %p1488 = scmp.le.s32.totalorder 2, %s12
      // Predicated region
      $region255: #{custom-call.9} parent=5 // pred_check
        %p1489 = pneg %p1488
      $region256: #{custom-call.9} parent=5 // pred_check_branch
        %1491 = sbr.rel (%p1489) target = $region258
      $region257: #{custom-call.9} parent=5 // pred_region
        %s1492 = ssub.s32 %s12, 2
        // Predicated region
        $region259: #{custom-call.9} parent=257 // pred_check
          %p1493 = pneg %p43
        $region260: #{custom-call.9} parent=257 // pred_check_branch
          %1495 = sbr.rel (%p1493) target = $region262
        $region261: #{custom-call.9} parent=257 // pred_region
          %s1496 = sand.u32 %s28, 1
          %s1497 = sand.u32 %s28, 1
          %s1498 = smul.addr %s1497, 2
          %s1499 = scalar_lea.vmem [#allocation5], %s1498
        $region262: #{custom-call.9} parent=257 // pred_fallthru
          _
        // Predicated region
        $region263: #{custom-call.9} parent=257 // pred_check
          %p1500 = pneg %p71
        $region264: #{custom-call.9} parent=257 // pred_check_branch
          %1502 = sbr.rel (%p1500) target = $region266
        $region265: #{custom-call.9} parent=257 // pred_region
          %s1503 = sand.u32 %s56, 1
          %s1504 = sand.u32 %s56, 1
          %s1505 = smul.addr %s1504, 2
          %s1506 = scalar_lea.vmem [#allocation7], %s1505
        $region266: #{custom-call.9} parent=257 // pred_fallthru
          _
        %s1507 = sand.u32 %s18, 1
        %s1508 = sand.u32 %s18, 1
        %s1509 = smul.addr %s1508, 16
        %s1510 = scalar_lea.vmem [#allocation8], %s1509
        %s1511 = sand.u32 %s18, 1
        %s1512 = sand.u32 %s18, 1
        %s1513 = smul.addr %s1512, 16
        %s1514 = scalar_lea.vmem [#allocation9], %s1513
        %s1515 = sand.u32 %s18, 1
        %s1516 = sand.u32 %s18, 1
        %s1517 = smul.addr %s1516, 16
        %s1518 = scalar_lea.vmem [#allocation10], %s1517
        %s1519 = sand.u32 %s18, 1
        %s1520 = sand.u32 %s18, 1
        %s1521 = smul.addr %s1520, 16
        %s1522 = scalar_lea.vmem [#allocation11], %s1521
      $region258: #{custom-call.9} parent=5 // pred_fallthru
        _
    $region6: #{custom-call.9} parent=1 // loop_footer
      %s16 = sadd.s32 1, %s12
    $region7: #{custom-call.9} parent=1 // loop_footer_branch
      %11 = sbr.rel target = $region3
    $region8: #{custom-call.9} parent=1 // loop_exit
      _

// kernel: dftb_forward.1
$region0: #{dftb_forward.1}
  #allocation0 [shape = 'u32[]', space=smem, size = 0x4, offset = 0x4, fixed_abs, tag = 'smem constant byte address 0x4 - core index']
  #allocation1 [shape = 'u32[144,128]{1,0:T(1,128)}', space=vmem, size = 0x12000, scoped, tag = 'internal scratch']
  %s0 = inlined_call_operand.vmem [shape: f32[2,32], index: 0, kind: input, shape index: {}]
  %s1 = inlined_call_operand.vmem [shape: f32[2,32,32], index: 1, kind: input, shape index: {}]
  %s2 = inlined_call_operand.vmem [shape: f32[2,32,32], index: 2, kind: input, shape index: {}]
  %s3 = inlined_call_operand.hbm [shape: f32[2,32,32], index: 3, kind: output, shape index: {0}]
  %s4 = inlined_call_operand.vmem [shape: f32[2,32], index: 4, kind: output, shape index: {1}]
  %5 = xla_tuple %s3, %s4
  %s6 = sld [smem:[#allocation0]]
  $region30: #{dftb_forward.1} parent=0
    _
  %s8 = ssub.s32 1, %s6
  %s9 = scalar_select 0, %s8, %s6
  $region1: #{dftb_forward.1} parent=0
    #allocation2 [shape = 'u8[32768]{0}', space=vmem, size = 0x8000, scoped, tag = 'output window, operand 0, single buffered']
    #allocation3 [shape = 's32[1]{0}', space=sflag, size = 0x4, scoped, tag = 'scoped memory for dftb_forward.1']
    %10 = vsyncpa [#allocation3], 0
    // Predicated region
    $region2: #{dftb_forward.1} parent=1 // pred_check
      _
    $region3: #{dftb_forward.1} parent=1 // pred_check_branch
      %12 = sbr.rel (0) target = $region5
    $region4: #{dftb_forward.1} parent=1 // pred_region
      _
    $region5: #{dftb_forward.1} parent=1 // pred_fallthru
      _
    // Predicated region
    $region6: #{dftb_forward.1} parent=1 // pred_check
      _
    $region7: #{dftb_forward.1} parent=1 // pred_check_branch
      %14 = sbr.rel (0) target = $region9
    $region8: #{dftb_forward.1} parent=1 // pred_region
      _
    $region9: #{dftb_forward.1} parent=1 // pred_fallthru
      _
    // Predicated region
    $region10: #{dftb_forward.1} parent=1 // pred_check
      _
    $region11: #{dftb_forward.1} parent=1 // pred_check_branch
      %16 = sbr.rel (0) target = $region13
    $region12: #{dftb_forward.1} parent=1 // pred_region
      _
    $region13: #{dftb_forward.1} parent=1 // pred_fallthru
      _
    %v17 = vld [vmem:[%s1] sm:$0xff]
    %v18 = vld [vmem:[%s1 + $0x8] sm:$0xff]
    %v19 = vld [vmem:[%s1 + $0x10] sm:$0xff]
    %v20 = vld [vmem:[%s1 + $0x18] sm:$0xff]
    %v21 = vld [vmem:[%s1 + $0x20] sm:$0xff]
    %v22 = vld [vmem:[%s1 + $0x28] sm:$0xff]
    %v23 = vld [vmem:[%s1 + $0x30] sm:$0xff]
    %v24 = vld [vmem:[%s1 + $0x38] sm:$0xff]
    %v25 = vld [vmem:[%s0] sm:$0x3]
    %v28 = vunpack.c.l.s4 1966171168
    %v29 = vunpack.c.0.s8 %v28
    %v30 = vlaneseq
    %v31 = vshrl.u32 %v30, 7
    %v32 = vsub.s32 %v29, %v31
    %v33 = vrot.slane %v25, %v32
    %v34 = vcombine.high %v33, %v33
    %v36 = vunpack.c.l.s4 1966171168
    %v37 = vunpack.c.0.s8 %v36
    %v38 = vlaneseq
    %v39 = vshrl.u32 %v38, 7
    %v40 = vsub.s32 %v37, %v39
    %v41 = vrot.slane %v33, %v40
    %v43 = vunpack.c.l.s4 1966171168
    %v44 = vunpack.c.0.s8 %v43
    %v45 = vlaneseq
    %v46 = vshrl.u32 %v45, 7
    %v47 = vsub.s32 %v44, %v46
    %v48 = vrot.slane %v34, %v47
    %v49 = vlaneseq
    %v50 = vshrl.u32 %v49, 7
    %v51 = vsub.s32 0, %v50
    %v52 = vrot.slane %v41, %v51
    %v53 = vlaneseq
    %v54 = vshrl.u32 %v53, 7
    %v55 = vsub.s32 0, %v54
    %v56 = vrot.slane %v48, %v55
    %v59 = vmul.f32 %v17, %v52
    %v60 = vmul.f32 %v18, %v52
    %v61 = vmul.f32 %v19, %v52
    %v62 = vmul.f32 %v20, %v52
    %v63 = vmul.f32 %v21, %v56
    %v64 = vmul.f32 %v22, %v56
    %v65 = vmul.f32 %v23, %v56
    %v66 = vmul.f32 %v24, %v56
    %vm67 = vcmask 261120
    %v69 = vsel %vm67, %v59, 0
    %v72 = vsel %vm67, %v60, 0
    %v75 = vsel %vm67, %v61, 0
    %v78 = vsel %vm67, %v62, 0
    %v81 = vsel %vm67, %v17, 0
    %v84 = vsel %vm67, %v18, 0
    %v87 = vsel %vm67, %v19, 0
    %v90 = vsel %vm67, %v20, 0
    %92 = vmatprep.subr.mxu0 0.0
    %93 = vmatpush1.xpose.msra.mxu0 %v81
    %94 = vmatprep.subr.mxu0 0.0
    %95 = vmatpush1.xpose.msra.mxu0 %v84
    %96 = vmatprep.subr.mxu0 0.0
    %97 = vmatpush1.xpose.msra.mxu0 %v87
    %98 = vmatprep.subr.mxu0 0.0
    %99 = vmatpush1.xpose.msra.mxu0 %v90
    %100 = vmatprep.subr.mxu0 0.0
    %101 = vmatpush1.xpose.msra.mxu0 0.0
    %102 = vmatprep.subr.mxu0 0.0
    %103 = vmatpush1.xpose.msra.mxu0 0.0
    %104 = vmatprep.subr.mxu0 0.0
    %105 = vmatpush1.xpose.msra.mxu0 0.0
    %106 = vmatprep.subr.mxu0 0.0
    %107 = vmatpush1.xpose.msra.mxu0 0.0
    %108 = vmatprep.subr.mxu0 0.0
    %109 = vmatpush1.xpose.msra.mxu0 0.0
    %110 = vmatprep.subr.mxu0 0.0
    %111 = vmatpush1.xpose.msra.mxu0 0.0
    %112 = vmatprep.subr.mxu0 0.0
    %113 = vmatpush1.xpose.msra.mxu0 0.0
    %114 = vmatprep.subr.mxu0 0.0
    %115 = vmatpush1.xpose.msra.mxu0 0.0
    %116 = vmatprep.subr.mxu0 0.0
    %117 = vmatpush1.xpose.msra.mxu0 0.0
    %118 = vmatprep.subr.mxu0 0.0
    %119 = vmatpush1.xpose.msra.mxu0 0.0
    %120 = vmatprep.subr.mxu0 0.0
    %121 = vmatpush1.xpose.msra.mxu0 0.0
    %122 = vmatprep.subr.mxu0 0.0
    %123 = vmatpush1.xpose.msra.mxu0 0.0
    %124 = vmatprep.subr.mxu0 0.0
    %125 = vmatpush1.xpose.msra.mxu0 0.0
    %126 = vmatprep.subr.mxu0 0.0
    %127 = vmatpush1.xpose.msra.mxu0 0.0
    %128 = vmatprep.subr.mxu0 0.0
    %129 = vmatpush1.xpose.msra.mxu0 0.0
    %130 = vmatprep.subr.mxu0 0.0
    %131 = vmatpush1.xpose.msra.mxu0 0.0
    %132 = vmatprep.subr.mxu0 0.0
    %133 = vmatpush1.xpose.msra.mxu0 0.0
    %134 = vmatprep.subr.mxu0 0.0
    %135 = vmatpush1.xpose.msra.mxu0 0.0
    %136 = vmatprep.subr.mxu0 0.0
    %137 = vmatpush1.xpose.msra.mxu0 0.0
    %138 = vmatprep.subr.mxu0 0.0
    %139 = vmatpush1.xpose.msra.mxu0 0.0
    %140 = vmatprep.subr.mxu0 0.0
    %141 = vmatpush1.xpose.msra.mxu0 0.0
    %142 = vmatprep.subr.mxu0 0.0
    %143 = vmatpush1.xpose.msra.mxu0 0.0
    %144 = vmatprep.subr.mxu0 0.0
    %145 = vmatpush1.xpose.msra.mxu0 0.0
    %146 = vmatprep.subr.mxu0 0.0
    %147 = vmatpush1.xpose.msra.mxu0 0.0
    %148 = vmatprep.subr.mxu0 0.0
    %149 = vmatpush1.xpose.msra.mxu0 0.0
    %150 = vmatprep.subr.mxu0 0.0
    %151 = vmatpush1.xpose.msra.mxu0 0.0
    %152 = vmatprep.subr.mxu0 0.0
    %153 = vmatpush1.xpose.msra.mxu0 0.0
    %154 = vmatprep.subr.mxu0 0.0
    %155 = vmatpush1.xpose.msra.mxu0 0.0
    %156 = vmatprep.mubr.f32.mxu0 0.0
    %157 = vmatmul.mubr.f32.gmra.mrb[0].mxu0 %v69
    %v158 = vpop.f32.mrb[0].mxu0
    %v159 = vadd.f32 0.0, %v158
    %v160 = vpop.f32.mrb[0].mxu0
    %161 = vmatprep.mubr.f32.mxu0 0.0
    %162 = vmatmul.mubr.f32.gmra.mrb[0].mxu0 %v72
    %v163 = vpop.f32.mrb[0].mxu0
    %v164 = vadd.f32 0.0, %v163
    %v165 = vpop.f32.mrb[0].mxu0
    %166 = vmatprep.mubr.f32.mxu0 0.0
    %167 = vmatmul.mubr.f32.gmra.mrb[0].mxu0 %v75
    %v168 = vpop.f32.mrb[0].mxu0
    %v169 = vadd.f32 0.0, %v168
    %v170 = vpop.f32.mrb[0].mxu0
    %171 = vmatprep.mubr.f32.mxu0 0.0
    %172 = vmatmul.mubr.f32.gmra.mrb[0].mxu0 %v78
    %v173 = vpop.f32.mrb[0].mxu0
    %v174 = vadd.f32 0.0, %v173
    %v175 = vpop.f32.mrb[0].mxu0
    %176 = vdwg.mxu0
    %v178 = vsel %vm67, %v63, 0
    %v181 = vsel %vm67, %v64, 0
    %v184 = vsel %vm67, %v65, 0
    %v187 = vsel %vm67, %v66, 0
    %v190 = vsel %vm67, %v21, 0
    %v193 = vsel %vm67, %v22, 0
    %v196 = vsel %vm67, %v23, 0
    %v199 = vsel %vm67, %v24, 0
    %201 = vmatprep.subr.mxu0 0.0
    %202 = vmatpush1.xpose.msra.mxu0 %v190
    %203 = vmatprep.subr.mxu0 0.0
    %204 = vmatpush1.xpose.msra.mxu0 %v193
    %205 = vmatprep.subr.mxu0 0.0
    %206 = vmatpush1.xpose.msra.mxu0 %v196
    %207 = vmatprep.subr.mxu0 0.0
    %208 = vmatpush1.xpose.msra.mxu0 %v199
    %209 = vmatprep.subr.mxu0 0.0
    %210 = vmatpush1.xpose.msra.mxu0 0.0
    %211 = vmatprep.subr.mxu0 0.0
    %212 = vmatpush1.xpose.msra.mxu0 0.0
    %213 = vmatprep.subr.mxu0 0.0
    %214 = vmatpush1.xpose.msra.mxu0 0.0
    %215 = vmatprep.subr.mxu0 0.0
    %216 = vmatpush1.xpose.msra.mxu0 0.0
    %217 = vmatprep.subr.mxu0 0.0
    %218 = vmatpush1.xpose.msra.mxu0 0.0
    %219 = vmatprep.subr.mxu0 0.0
    %220 = vmatpush1.xpose.msra.mxu0 0.0
    %221 = vmatprep.subr.mxu0 0.0
    %222 = vmatpush1.xpose.msra.mxu0 0.0
    %223 = vmatprep.subr.mxu0 0.0
    %224 = vmatpush1.xpose.msra.mxu0 0.0
    %225 = vmatprep.subr.mxu0 0.0
    %226 = vmatpush1.xpose.msra.mxu0 0.0
    %227 = vmatprep.subr.mxu0 0.0
    %228 = vmatpush1.xpose.msra.mxu0 0.0
    %229 = vmatprep.subr.mxu0 0.0
    %230 = vmatpush1.xpose.msra.mxu0 0.0
    %231 = vmatprep.subr.mxu0 0.0
    %232 = vmatpush1.xpose.msra.mxu0 0.0
    %233 = vmatprep.subr.mxu0 0.0
    %234 = vmatpush1.xpose.msra.mxu0 0.0
    %235 = vmatprep.subr.mxu0 0.0
    %236 = vmatpush1.xpose.msra.mxu0 0.0
    %237 = vmatprep.subr.mxu0 0.0
    %238 = vmatpush1.xpose.msra.mxu0 0.0
    %239 = vmatprep.subr.mxu0 0.0
    %240 = vmatpush1.xpose.msra.mxu0 0.0
    %241 = vmatprep.subr.mxu0 0.0
    %242 = vmatpush1.xpose.msra.mxu0 0.0
    %243 = vmatprep.subr.mxu0 0.0
    %244 = vmatpush1.xpose.msra.mxu0 0.0
    %245 = vmatprep.subr.mxu0 0.0
    %246 = vmatpush1.xpose.msra.mxu0 0.0
    %247 = vmatprep.subr.mxu0 0.0
    %248 = vmatpush1.xpose.msra.mxu0 0.0
    %249 = vmatprep.subr.mxu0 0.0
    %250 = vmatpush1.xpose.msra.mxu0 0.0
    %251 = vmatprep.subr.mxu0 0.0
    %252 = vmatpush1.xpose.msra.mxu0 0.0
    %253 = vmatprep.subr.mxu0 0.0
    %254 = vmatpush1.xpose.msra.mxu0 0.0
    %255 = vmatprep.subr.mxu0 0.0
    %256 = vmatpush1.xpose.msra.mxu0 0.0
    %257 = vmatprep.subr.mxu0 0.0
    %258 = vmatpush1.xpose.msra.mxu0 0.0
    %259 = vmatprep.subr.mxu0 0.0
    %260 = vmatpush1.xpose.msra.mxu0 0.0
    %261 = vmatprep.subr.mxu0 0.0
    %262 = vmatpush1.xpose.msra.mxu0 0.0
    %263 = vmatprep.subr.mxu0 0.0
    %264 = vmatpush1.xpose.msra.mxu0 0.0
    %265 = vmatprep.mubr.f32.mxu0 0.0
    %266 = vmatmul.mubr.f32.gmra.mrb[0].mxu0 %v178
    %v267 = vpop.f32.mrb[0].mxu0
    %v268 = vadd.f32 0.0, %v267
    %v269 = vpop.f32.mrb[0].mxu0
    %270 = vmatprep.mubr.f32.mxu0 0.0
    %271 = vmatmul.mubr.f32.gmra.mrb[0].mxu0 %v181
    %v272 = vpop.f32.mrb[0].mxu0
    %v273 = vadd.f32 0.0, %v272
    %v274 = vpop.f32.mrb[0].mxu0
    %275 = vmatprep.mubr.f32.mxu0 0.0
    %276 = vmatmul.mubr.f32.gmra.mrb[0].mxu0 %v184
    %v277 = vpop.f32.mrb[0].mxu0
    %v278 = vadd.f32 0.0, %v277
    %v279 = vpop.f32.mrb[0].mxu0
    %280 = vmatprep.mubr.f32.mxu0 0.0
    %281 = vmatmul.mubr.f32.gmra.mrb[0].mxu0 %v187
    %v282 = vpop.f32.mrb[0].mxu0
    %v283 = vadd.f32 0.0, %v282
    %v284 = vpop.f32.mrb[0].mxu0
    %285 = vdwg.mxu0
    %286 = vst.msk [vmem:[#allocation2] sm:$0xff] %vm67, %v159
    %287 = vst.msk [vmem:[#allocation2 + $0x8] sm:$0xff] %vm67, %v164
    %288 = vst.msk [vmem:[#allocation2 + $0x10] sm:$0xff] %vm67, %v169
    %289 = vst.msk [vmem:[#allocation2 + $0x18] sm:$0xff] %vm67, %v174
    %290 = vst.msk [vmem:[#allocation2 + $0x20] sm:$0xff] %vm67, %v268
    %291 = vst.msk [vmem:[#allocation2 + $0x28] sm:$0xff] %vm67, %v273
    %292 = vst.msk [vmem:[#allocation2 + $0x30] sm:$0xff] %vm67, %v278
    %293 = vst.msk [vmem:[#allocation2 + $0x38] sm:$0xff] %vm67, %v283
    %v294 = vld [vmem:[%s2] sm:$0xff]
    %v295 = vld [vmem:[%s2 + $0x8] sm:$0xff]
    %v296 = vld [vmem:[%s2 + $0x10] sm:$0xff]
    %v297 = vld [vmem:[%s2 + $0x18] sm:$0xff]
    %v298 = vld [vmem:[%s2 + $0x20] sm:$0xff]
    %v299 = vld [vmem:[%s2 + $0x28] sm:$0xff]
    %v300 = vld [vmem:[%s2 + $0x30] sm:$0xff]
    %v301 = vld [vmem:[%s2 + $0x38] sm:$0xff]
    %v302 = vmul.f32 %v294, %v159
    %v303 = vmul.f32 %v295, %v164
    %v304 = vmul.f32 %v296, %v169
    %v305 = vmul.f32 %v297, %v174
    %v306 = vmul.f32 %v298, %v268
    %v307 = vmul.f32 %v299, %v273
    %v308 = vmul.f32 %v300, %v278
    %v309 = vmul.f32 %v301, %v283
    %v310 = vsel %vm67, %v302, 0.0
    %311 = vadd.xlane.f32.xlu0 %v310
    %v312 = vpop.xlane.xlu0 %311
    %v313 = vsel %vm67, %v303, 0.0
    %314 = vadd.xlane.f32.xlu0 %v313
    %v315 = vpop.xlane.xlu0 %314
    %v316 = vsel %vm67, %v304, 0.0
    %317 = vadd.xlane.f32.xlu0 %v316
    %v318 = vpop.xlane.xlu0 %317
    %v319 = vsel %vm67, %v305, 0.0
    %320 = vadd.xlane.f32.xlu0 %v319
    %v321 = vpop.xlane.xlu0 %320
    %v322 = vsel %vm67, %v306, 0.0
    %323 = vadd.xlane.f32.xlu0 %v322
    %v324 = vpop.xlane.xlu0 %323
    %v325 = vsel %vm67, %v307, 0.0
    %326 = vadd.xlane.f32.xlu0 %v325
    %v327 = vpop.xlane.xlu0 %326
    %v328 = vsel %vm67, %v308, 0.0
    %329 = vadd.xlane.f32.xlu0 %v328
    %v330 = vpop.xlane.xlu0 %329
    %v331 = vsel %vm67, %v309, 0.0
    %332 = vadd.xlane.f32.xlu0 %v331
    %v333 = vpop.xlane.xlu0 %332
    %v342 = vlaneseq
    %v343 = vand.u32 %v342, 127
    %v344 = vlaneseq
    %v345 = vshrl.u32 %v344, 7
    %v346 = vsub.s32 %v343, %v345
    %v347 = vrot.slane %v312, %v346
    %v348 = vadd.s32 %v343, 4294967288
    %v349 = vlaneseq
    %v350 = vshrl.u32 %v349, 7
    %v351 = vsub.s32 %v348, %v350
    %v352 = vrot.slane %v315, %v351
    %vm353 = vcmask 130112
    %v354 = vsel %vm353, %v352, %v347
    %v355 = vadd.s32 %v343, 4294967280
    %v356 = vlaneseq
    %v357 = vshrl.u32 %v356, 7
    %v358 = vsub.s32 %v355, %v357
    %v359 = vrot.slane %v318, %v358
    %vm360 = vcmask 195712
    %v361 = vsel %vm360, %v359, %v354
    %v362 = vadd.s32 %v343, 4294967272
    %v363 = vlaneseq
    %v364 = vshrl.u32 %v363, 7
    %v365 = vsub.s32 %v362, %v364
    %v366 = vrot.slane %v321, %v365
    %vm367 = vcmask 261312
    %v368 = vsel %vm367, %v366, %v361
    %v369 = vlaneseq
    %v370 = vshrl.u32 %v369, 7
    %v371 = vsub.s32 %v343, %v370
    %v372 = vrot.slane %v324, %v371
    %v373 = vlaneseq
    %v374 = vshrl.u32 %v373, 7
    %v375 = vsub.s32 %v348, %v374
    %v376 = vrot.slane %v327, %v375
    %v377 = vsel %vm353, %v376, %v372
    %v378 = vlaneseq
    %v379 = vshrl.u32 %v378, 7
    %v380 = vsub.s32 %v355, %v379
    %v381 = vrot.slane %v330, %v380
    %v382 = vsel %vm360, %v381, %v377
    %v383 = vlaneseq
    %v384 = vshrl.u32 %v383, 7
    %v385 = vsub.s32 %v362, %v384
    %v386 = vrot.slane %v333, %v385
    %v387 = vsel %vm367, %v386, %v382
    %vm388 = vcmask 1041409
    %v389 = vsel %vm388, %v387, %v368
    %vm391 = vcmask 254976
    %392 = vst.msk [vmem:[%s4] sm:$0x3] %vm391, %v389
    // Predicated region
    $region14: #{dftb_forward.1} parent=1 // pred_check
      _
    $region15: #{dftb_forward.1} parent=1 // pred_check_branch
      %394 = sbr.rel (0) target = $region17
    $region16: #{dftb_forward.1} parent=1 // pred_region
      %s396 = ssub.s32 1024, 1024
      %397 = vsyncadd [#allocation3], %s396
      %s398 = sshll.u32 [#allocation2], 4
      %s399 = int_to_ptr.vmem [resolvable:$true] %s398
      %404 = dma.vmem_to_hbm [thread:$0]  %s399, 1024, %s3, [#allocation3], 128, 128, 8
    $region17: #{dftb_forward.1} parent=1 // pred_fallthru
      _
    // Predicated region
    $region18: #{dftb_forward.1} parent=1 // pred_check
      _
    $region19: #{dftb_forward.1} parent=1 // pred_check_branch
      %406 = sbr.rel (0) target = $region21
    $region20: #{dftb_forward.1} parent=1 // pred_region
      _
    $region21: #{dftb_forward.1} parent=1 // pred_fallthru
      _
    // Predicated region
    $region22: #{dftb_forward.1} parent=1 // pred_check
      _
    $region23: #{dftb_forward.1} parent=1 // pred_check_branch
      %408 = sbr.rel (0) target = $region25
    $region24: #{dftb_forward.1} parent=1 // pred_region
      %409 = dma.done [#allocation3], 1024
    $region25: #{dftb_forward.1} parent=1 // pred_fallthru
      _
    // Predicated region
    $region26: #{dftb_forward.1} parent=1 // pred_check
      _
    $region27: #{dftb_forward.1} parent=1 // pred_check_branch
      %411 = sbr.rel (0) target = $region29
    $region28: #{dftb_forward.1} parent=1 // pred_region
      _
    $region29: #{dftb_forward.1} parent=1 // pred_fallthru
      _
    %412 = vsyncpa [#allocation3], 1

</llo_original>
